<compile_context>
chip_gen: v7x
topology: tpu7x:2x2x1
jax: 0.10.0
libtpu: 0.0.40
codegen_flags: <defaults>
</compile_context>

<pallas_src>
import jax
import jax.numpy as jnp
from jax import lax
from jax.experimental import pallas as pl
from jax.experimental.pallas import tpu as pltpu

E = 1e-4          # BatchNorm eps from the torch module
NEG_SLOPE = 0.01  # F.leaky_relu default negative slope
KSIZE = 5
PAD = (KSIZE - 1) // 2


def _leaky(y):
    return jnp.where(y >= 0, y, NEG_SLOPE * y)


def _batchnorm(h, gamma, beta):
    # Training-mode batch statistics (fresh torch module called without .eval()).
    # Two-pass (subtract-mean) variance: same number of sublane reduces as the
    # E[x^2]-E[x]^2 form but without catastrophic cancellation. rsqrt -> EUP.
    mean = jnp.mean(h, axis=0, keepdims=True)
    centred = h - mean
    var = jnp.mean(centred * centred, axis=0, keepdims=True)
    return centred * lax.rsqrt(var + E) * gamma + beta


def make_fused_kernel(B, L0, Cin, CC, depth):
    """Builds the single fused forward kernel for fixed static shapes."""

    def make_masks(L):
        # Per-tap validity masks implementing the zero padding (PAD on both ends of every
        # length-L batch segment).  Compile-time constants per L, hoisted so both convs of
        # every block at this L reuse them.  L is a power of two -> use & instead of %.
        N = B * L
        row = lax.broadcasted_iota(jnp.int32, (N, 1), 0)
        j = (row & (L - 1)) if (L & (L - 1)) == 0 else (row % L)
        return [((j + (k - PAD) >= 0) & (j + (k - PAD) < L)).astype(jnp.float32)
                for k in range(KSIZE)]

    def conv5(x2, w_taps, masks):
        # x2: (N, C) f32 activations; w_taps: (KSIZE, C, Cout) bf16 tap weights.
        # Per-tap MXU accumulation: tap shifts are sublane rotations (XLU slot, overlaps
        # the MXU); boundary taps are zeroed by the precomputed multiplicative masks.
        # No im2col slab, no lane concatenation, bf16 operands with f32 accumulation.
        N = x2.shape[0]
        acc = None
        for k in range(KSIZE):
            s = k - PAD                  # tap offset in [-PAD, PAD]
            shifted = x2 if s == 0 else pltpu.roll(x2, (-s) % N, 0)
            tap = (shifted * masks[k]).astype(jnp.bfloat16)
            part = jnp.dot(tap, w_taps[k], preferred_element_type=jnp.float32)
            acc = part if acc is None else acc + part
        return acc

    def residual_block(x2, w1, g1, b1, w2, g2, b2, masks, use_residual):
        h = _leaky(_batchnorm(conv5(x2, w1, masks), g1, b1))
        h = _batchnorm(conv5(h, w2, masks), g2, b2)
        if use_residual:                 # torch: only when in_channels == out_channels
            h = h + x2
        return _leaky(h)

    def kernel(x_ref,
               w1i_ref, g1i_ref, b1i_ref, w2i_ref, g2i_ref, b2i_ref,
               w1s_ref, g1s_ref, b1s_ref, w2s_ref, g2s_ref, b2s_ref,
               lw_ref, lb_ref, o_ref):
        L = L0
        y = x_ref[...].reshape(B * L, Cin)            # NLC -> (B*L, C): channels on lanes
        masks = make_masks(L)

        # init block
        y = residual_block(y, w1i_ref[...], g1i_ref[...], b1i_ref[...],
                           w2i_ref[...], g2i_ref[...], b2i_ref[...],
                           masks, use_residual=(Cin == CC))

        for d in range(1, depth):
            # F.max_pool1d(kernel_size=2): max over adjacent length positions.
            # TODO(synk): at production sizes fold this pool into the next conv's tap
            # masks (stride-2 im2col) so the reshape relayout disappears entirely.
            L //= 2
            y2 = y.reshape(B * L, 2, CC)
            y = jnp.maximum(y2[:, 0, :], y2[:, 1, :])
            masks = make_masks(L)
            y = residual_block(y, w1s_ref[d - 1], g1s_ref[d - 1], b1s_ref[d - 1],
                               w2s_ref[d - 1], g2s_ref[d - 1], b2s_ref[d - 1],
                               masks, use_residual=True)

        # avg_pool1d over the full remaining length, then the Linear head (bf16 MXU).
        ap = jnp.mean(y.reshape(B, L, CC), axis=1)    # (B, CC)
        # TODO(synk): nn.Dropout(p=0.25) is stochastic in train mode; identity here (eval
        # semantics), while BN uses batch stats — mixed semantics carried over from spec.
        # Note: at production output sizes keep O a multiple of 128 (or stage through a
        # lane-padded scratch) so this final store is lane-dense, not a masked vst.
        o_ref[...] = (jnp.dot(ap.astype(jnp.bfloat16), lw_ref[...],
                              preferred_element_type=jnp.float32) + lb_ref[...])

    return kernel


def resnet_forward(x_ncw, params, depth):
    # x_ncw: (B, Cin, L) -- PyTorch NCW layout.
    B, Cin, L0 = x_ncw.shape
    CC, O = params["lin_w"].shape
    assert L0 % (2 ** (depth - 1)) == 0, "length must survive depth-1 maxpools"

    # TODO(synk): at production sizes fuse this NCW->NLC transpose into the kernel
    # (in-kernel XLU transpose overlapping the first conv) to avoid an extra HBM pass.
    x_nlc = jnp.transpose(x_ncw, (0, 2, 1)).astype(jnp.float32)

    bf = jnp.bfloat16
    w1i, g1i, b1i, w2i, g2i, b2i = params["init"]
    inputs = [
        x_nlc,
        w1i.astype(bf), g1i, b1i, w2i.astype(bf), g2i, b2i,
        params["w1s"].astype(bf), params["g1s"], params["b1s"],
        params["w2s"].astype(bf), params["g2s"], params["b2s"],
        params["lin_w"].astype(bf), params["lin_b"],
    ]

    # TODO(synk): for v7x (2 TC/chip), tile the grid over B with
    # dimension_semantics=("parallel",) and accumulate per-tile BN partial sums over an
    # "arbitrary" axis (BN batch stats span all of B); gridless at these toy shapes.
    vmem = pl.BlockSpec(memory_space=pltpu.MemorySpace.VMEM)
    return pl.pallas_call(
        make_fused_kernel(B, L0, Cin, CC, depth),
        out_shape=jax.ShapeDtypeStruct((B, O), jnp.float32),
        in_specs=[vmem] * len(inputs),
        out_specs=vmem,
        compiler_params=pltpu.CompilerParams(vmem_limit_bytes=32 * 1024 * 1024),
    )(*inputs)


def make_params(key, in_channels, conv_channels, output_size, depth):
    # torch-default inits, deterministic from `key`.  Conv weights stored per-tap as
    # (KSIZE, cin, cout); depth-1 identical-shape blocks are stacked along a leading axis.
    keys = jax.random.split(key, 2 * depth + 2)

    def conv_w(k, cin, cout):
        # nn.Conv1d default: kaiming_uniform_(a=sqrt(5)) == U(-1/sqrt(fan_in), 1/sqrt(fan_in)),
        # fan_in = cin * KSIZE.
        bound = 1.0 / (float(cin * KSIZE) ** 0.5)
        return jax.random.uniform(k, (KSIZE, cin, cout), jnp.float32,
                                  minval=-bound, maxval=bound)

    def bn_g():
        return jnp.ones((1, conv_channels), jnp.float32)

    def bn_b():
        return jnp.zeros((1, conv_channels), jnp.float32)

    params = {}
    params["init"] = (conv_w(keys[0], in_channels, conv_channels), bn_g(), bn_b(),
                      conv_w(keys[1], conv_channels, conv_channels), bn_g(), bn_b())

    R = max(depth - 1, 1)
    if depth > 1:
        w1_list = [conv_w(keys[2 * d], conv_channels, conv_channels) for d in range(1, depth)]
        w2_list = [conv_w(keys[2 * d + 1], conv_channels, conv_channels) for d in range(1, depth)]
    else:  # dummies, never read by the kernel when depth == 1
        w1_list = [jnp.zeros((KSIZE, conv_channels, conv_channels), jnp.float32)]
        w2_list = [jnp.zeros((KSIZE, conv_channels, conv_channels), jnp.float32)]
    params["w1s"] = jnp.stack(w1_list)
    params["w2s"] = jnp.stack(w2_list)
    params["g1s"] = jnp.ones((R, 1, conv_channels), jnp.float32)
    params["b1s"] = jnp.zeros((R, 1, conv_channels), jnp.float32)
    params["g2s"] = jnp.ones((R, 1, conv_channels), jnp.float32)
    params["b2s"] = jnp.zeros((R, 1, conv_channels), jnp.float32)

    bound = 1.0 / (float(conv_channels) ** 0.5)
    params["lin_w"] = jax.random.uniform(keys[-2], (conv_channels, output_size),
                                         jnp.float32, minval=-bound, maxval=bound)
    params["lin_b"] = jax.random.uniform(keys[-1], (1, output_size),
                                         jnp.float32, minval=-bound, maxval=bound)
    return params


if __name__ == "__main__":
    # Shapes consistent with the module: input_shape=(Cin, L)=(4, 16), output_size=3,
    # depth=3, conv_channels=16, batch=2.
    B, Cin, L = 2, 4, 16
    conv_channels = 16
    output_size = 3
    depth = 3

    key = jax.random.PRNGKey(0)
    kx, kp = jax.random.split(key)
    x = jax.random.normal(kx, (B, Cin, L), jnp.float32)
    params = make_params(kp, Cin, conv_channels, output_size, depth)

    fwd = jax.jit(resnet_forward, static_argnums=(2,))
    out = jax.block_until_ready(fwd(x, params, depth))
    assert out.shape == (B, output_size), out.shape
    assert bool(jnp.all(jnp.isfinite(out))), "non-finite output"
    print("KERNEL_OK")
</pallas_src>

<mosaic_0001>
module attributes {stable_mosaic.version = 11 : i64} {
  func.func @kernel(%arg0: memref<2x16x4xf32, #tpu.memory_space<vmem>>, %arg1: memref<5x4x16xbf16, #tpu.memory_space<vmem>>, %arg2: memref<1x16xf32, #tpu.memory_space<vmem>>, %arg3: memref<1x16xf32, #tpu.memory_space<vmem>>, %arg4: memref<5x16x16xbf16, #tpu.memory_space<vmem>>, %arg5: memref<1x16xf32, #tpu.memory_space<vmem>>, %arg6: memref<1x16xf32, #tpu.memory_space<vmem>>, %arg7: memref<2x5x16x16xbf16, #tpu.memory_space<vmem>>, %arg8: memref<2x1x16xf32, #tpu.memory_space<vmem>>, %arg9: memref<2x1x16xf32, #tpu.memory_space<vmem>>, %arg10: memref<2x5x16x16xbf16, #tpu.memory_space<vmem>>, %arg11: memref<2x1x16xf32, #tpu.memory_space<vmem>>, %arg12: memref<2x1x16xf32, #tpu.memory_space<vmem>>, %arg13: memref<16x3xbf16, #tpu.memory_space<vmem>>, %arg14: memref<1x3xf32, #tpu.memory_space<vmem>>, %arg15: memref<2x3xf32, #tpu.memory_space<vmem>>) attributes {dimension_semantics = [], scalar_prefetch = 0 : i64, scratch_operands = 0 : i64, tpu.core_type = #tpu.core_type<tc>} {
    %c0 = arith.constant 0 : index
    %c0_0 = arith.constant 0 : index
    %c0_1 = arith.constant 0 : index
    %0 = vector.load %arg0[%c0, %c0_0, %c0_1] : memref<2x16x4xf32, #tpu.memory_space<vmem>>, vector<2x16x4xf32>
    %1 = vector.shape_cast %0 : vector<2x16x4xf32> to vector<32x4xf32>
    %2 = tpu.iota {dimensions = array<i32: 0>} : vector<32x1xi32>
    %c15_i32 = arith.constant 15 : i32
    %3 = vector.broadcast %c15_i32 : i32 to vector<32x1xi32>
    %4 = arith.andi %2, %3 : vector<32x1xi32>
    %c-2_i32 = arith.constant -2 : i32
    %5 = vector.broadcast %c-2_i32 : i32 to vector<32x1xi32>
    %6 = arith.addi %4, %5 : vector<32x1xi32>
    %c0_i32 = arith.constant 0 : i32
    %7 = vector.broadcast %c0_i32 : i32 to vector<32x1xi32>
    %8 = arith.cmpi sge, %6, %7 : vector<32x1xi32>
    %c-2_i32_2 = arith.constant -2 : i32
    %9 = vector.broadcast %c-2_i32_2 : i32 to vector<32x1xi32>
    %10 = arith.addi %4, %9 : vector<32x1xi32>
    %c16_i32 = arith.constant 16 : i32
    %11 = vector.broadcast %c16_i32 : i32 to vector<32x1xi32>
    %12 = arith.cmpi slt, %10, %11 : vector<32x1xi32>
    %13 = arith.andi %8, %12 : vector<32x1xi1>
    %14 = arith.extui %13 : vector<32x1xi1> to vector<32x1xi32>
    %15 = arith.sitofp %14 : vector<32x1xi32> to vector<32x1xf32>
    %c-1_i32 = arith.constant -1 : i32
    %16 = vector.broadcast %c-1_i32 : i32 to vector<32x1xi32>
    %17 = arith.addi %4, %16 : vector<32x1xi32>
    %c0_i32_3 = arith.constant 0 : i32
    %18 = vector.broadcast %c0_i32_3 : i32 to vector<32x1xi32>
    %19 = arith.cmpi sge, %17, %18 : vector<32x1xi32>
    %c-1_i32_4 = arith.constant -1 : i32
    %20 = vector.broadcast %c-1_i32_4 : i32 to vector<32x1xi32>
    %21 = arith.addi %4, %20 : vector<32x1xi32>
    %c16_i32_5 = arith.constant 16 : i32
    %22 = vector.broadcast %c16_i32_5 : i32 to vector<32x1xi32>
    %23 = arith.cmpi slt, %21, %22 : vector<32x1xi32>
    %24 = arith.andi %19, %23 : vector<32x1xi1>
    %25 = arith.extui %24 : vector<32x1xi1> to vector<32x1xi32>
    %26 = arith.sitofp %25 : vector<32x1xi32> to vector<32x1xf32>
    %c0_i32_6 = arith.constant 0 : i32
    %27 = vector.broadcast %c0_i32_6 : i32 to vector<32x1xi32>
    %28 = arith.addi %4, %27 : vector<32x1xi32>
    %c0_i32_7 = arith.constant 0 : i32
    %29 = vector.broadcast %c0_i32_7 : i32 to vector<32x1xi32>
    %30 = arith.cmpi sge, %28, %29 : vector<32x1xi32>
    %c0_i32_8 = arith.constant 0 : i32
    %31 = vector.broadcast %c0_i32_8 : i32 to vector<32x1xi32>
    %32 = arith.addi %4, %31 : vector<32x1xi32>
    %c16_i32_9 = arith.constant 16 : i32
    %33 = vector.broadcast %c16_i32_9 : i32 to vector<32x1xi32>
    %34 = arith.cmpi slt, %32, %33 : vector<32x1xi32>
    %35 = arith.andi %30, %34 : vector<32x1xi1>
    %36 = arith.extui %35 : vector<32x1xi1> to vector<32x1xi32>
    %37 = arith.sitofp %36 : vector<32x1xi32> to vector<32x1xf32>
    %c1_i32 = arith.constant 1 : i32
    %38 = vector.broadcast %c1_i32 : i32 to vector<32x1xi32>
    %39 = arith.addi %4, %38 : vector<32x1xi32>
    %c0_i32_10 = arith.constant 0 : i32
    %40 = vector.broadcast %c0_i32_10 : i32 to vector<32x1xi32>
    %41 = arith.cmpi sge, %39, %40 : vector<32x1xi32>
    %c1_i32_11 = arith.constant 1 : i32
    %42 = vector.broadcast %c1_i32_11 : i32 to vector<32x1xi32>
    %43 = arith.addi %4, %42 : vector<32x1xi32>
    %c16_i32_12 = arith.constant 16 : i32
    %44 = vector.broadcast %c16_i32_12 : i32 to vector<32x1xi32>
    %45 = arith.cmpi slt, %43, %44 : vector<32x1xi32>
    %46 = arith.andi %41, %45 : vector<32x1xi1>
    %47 = arith.extui %46 : vector<32x1xi1> to vector<32x1xi32>
    %48 = arith.sitofp %47 : vector<32x1xi32> to vector<32x1xf32>
    %c2_i32 = arith.constant 2 : i32
    %49 = vector.broadcast %c2_i32 : i32 to vector<32x1xi32>
    %50 = arith.addi %4, %49 : vector<32x1xi32>
    %c0_i32_13 = arith.constant 0 : i32
    %51 = vector.broadcast %c0_i32_13 : i32 to vector<32x1xi32>
    %52 = arith.cmpi sge, %50, %51 : vector<32x1xi32>
    %c2_i32_14 = arith.constant 2 : i32
    %53 = vector.broadcast %c2_i32_14 : i32 to vector<32x1xi32>
    %54 = arith.addi %4, %53 : vector<32x1xi32>
    %c16_i32_15 = arith.constant 16 : i32
    %55 = vector.broadcast %c16_i32_15 : i32 to vector<32x1xi32>
    %56 = arith.cmpi slt, %54, %55 : vector<32x1xi32>
    %57 = arith.andi %52, %56 : vector<32x1xi1>
    %58 = arith.extui %57 : vector<32x1xi1> to vector<32x1xi32>
    %59 = arith.sitofp %58 : vector<32x1xi32> to vector<32x1xf32>
    %c0_16 = arith.constant 0 : index
    %c0_17 = arith.constant 0 : index
    %c0_18 = arith.constant 0 : index
    %60 = vector.load %arg1[%c0_16, %c0_17, %c0_18] : memref<5x4x16xbf16, #tpu.memory_space<vmem>>, vector<5x4x16xbf16>
    %c0_19 = arith.constant 0 : index
    %c0_20 = arith.constant 0 : index
    %61 = vector.load %arg2[%c0_19, %c0_20] : memref<1x16xf32, #tpu.memory_space<vmem>>, vector<1x16xf32>
    %c0_21 = arith.constant 0 : index
    %c0_22 = arith.constant 0 : index
    %62 = vector.load %arg3[%c0_21, %c0_22] : memref<1x16xf32, #tpu.memory_space<vmem>>, vector<1x16xf32>
    %c0_23 = arith.constant 0 : index
    %c0_24 = arith.constant 0 : index
    %c0_25 = arith.constant 0 : index
    %63 = vector.load %arg4[%c0_23, %c0_24, %c0_25] : memref<5x16x16xbf16, #tpu.memory_space<vmem>>, vector<5x16x16xbf16>
    %c0_26 = arith.constant 0 : index
    %c0_27 = arith.constant 0 : index
    %64 = vector.load %arg5[%c0_26, %c0_27] : memref<1x16xf32, #tpu.memory_space<vmem>>, vector<1x16xf32>
    %c0_28 = arith.constant 0 : index
    %c0_29 = arith.constant 0 : index
    %65 = vector.load %arg6[%c0_28, %c0_29] : memref<1x16xf32, #tpu.memory_space<vmem>>, vector<1x16xf32>
    %c2_i32_30 = arith.constant 2 : i32
    %66 = tpu.dynamic_rotate %1 by %c2_i32_30 dim 0 : vector<32x4xf32>, i32 -> vector<32x4xf32>
    %67 = vector.broadcast %15 : vector<32x1xf32> to vector<32x4xf32>
    %68 = arith.mulf %66, %67 : vector<32x4xf32>
    %69 = arith.truncf %68 : vector<32x4xf32> to vector<32x4xbf16>
    %70 = vector.extract_strided_slice %60 {offsets = [0, 0, 0], sizes = [1, 4, 16], strides = [1, 1, 1]} : vector<5x4x16xbf16> to vector<1x4x16xbf16>
    %71 = vector.shape_cast %70 : vector<1x4x16xbf16> to vector<4x16xbf16>
    %cst = arith.constant dense<0.000000e+00> : vector<32x16xf32>
    %72 = tpu.matmul %69, %71, %cst {dimension_numbers = #tpu.dot_dimension_numbers<[1], [0], [0], [1], [0, 0, 1, 1], [], []>} : vector<32x4xbf16>, vector<4x16xbf16>, vector<32x16xf32> -> vector<32x16xf32>
    %c1_i32_31 = arith.constant 1 : i32
    %73 = tpu.dynamic_rotate %1 by %c1_i32_31 dim 0 : vector<32x4xf32>, i32 -> vector<32x4xf32>
    %74 = vector.broadcast %26 : vector<32x1xf32> to vector<32x4xf32>
    %75 = arith.mulf %73, %74 : vector<32x4xf32>
    %76 = arith.truncf %75 : vector<32x4xf32> to vector<32x4xbf16>
    %77 = vector.extract_strided_slice %60 {offsets = [1, 0, 0], sizes = [1, 4, 16], strides = [1, 1, 1]} : vector<5x4x16xbf16> to vector<1x4x16xbf16>
    %78 = vector.shape_cast %77 : vector<1x4x16xbf16> to vector<4x16xbf16>
    %cst_32 = arith.constant dense<0.000000e+00> : vector<32x16xf32>
    %79 = tpu.matmul %76, %78, %cst_32 {dimension_numbers = #tpu.dot_dimension_numbers<[1], [0], [0], [1], [0, 0, 1, 1], [], []>} : vector<32x4xbf16>, vector<4x16xbf16>, vector<32x16xf32> -> vector<32x16xf32>
    %80 = arith.addf %72, %79 : vector<32x16xf32>
    %81 = vector.broadcast %37 : vector<32x1xf32> to vector<32x4xf32>
    %82 = arith.mulf %1, %81 : vector<32x4xf32>
    %83 = arith.truncf %82 : vector<32x4xf32> to vector<32x4xbf16>
    %84 = vector.extract_strided_slice %60 {offsets = [2, 0, 0], sizes = [1, 4, 16], strides = [1, 1, 1]} : vector<5x4x16xbf16> to vector<1x4x16xbf16>
    %85 = vector.shape_cast %84 : vector<1x4x16xbf16> to vector<4x16xbf16>
    %cst_33 = arith.constant dense<0.000000e+00> : vector<32x16xf32>
    %86 = tpu.matmul %83, %85, %cst_33 {dimension_numbers = #tpu.dot_dimension_numbers<[1], [0], [0], [1], [0, 0, 1, 1], [], []>} : vector<32x4xbf16>, vector<4x16xbf16>, vector<32x16xf32> -> vector<32x16xf32>
    %87 = arith.addf %80, %86 : vector<32x16xf32>
    %c31_i32 = arith.constant 31 : i32
    %88 = tpu.dynamic_rotate %1 by %c31_i32 dim 0 : vector<32x4xf32>, i32 -> vector<32x4xf32>
    %89 = vector.broadcast %48 : vector<32x1xf32> to vector<32x4xf32>
    %90 = arith.mulf %88, %89 : vector<32x4xf32>
    %91 = arith.truncf %90 : vector<32x4xf32> to vector<32x4xbf16>
    %92 = vector.extract_strided_slice %60 {offsets = [3, 0, 0], sizes = [1, 4, 16], strides = [1, 1, 1]} : vector<5x4x16xbf16> to vector<1x4x16xbf16>
    %93 = vector.shape_cast %92 : vector<1x4x16xbf16> to vector<4x16xbf16>
    %cst_34 = arith.constant dense<0.000000e+00> : vector<32x16xf32>
    %94 = tpu.matmul %91, %93, %cst_34 {dimension_numbers = #tpu.dot_dimension_numbers<[1], [0], [0], [1], [0, 0, 1, 1], [], []>} : vector<32x4xbf16>, vector<4x16xbf16>, vector<32x16xf32> -> vector<32x16xf32>
    %95 = arith.addf %87, %94 : vector<32x16xf32>
    %c30_i32 = arith.constant 30 : i32
    %96 = tpu.dynamic_rotate %1 by %c30_i32 dim 0 : vector<32x4xf32>, i32 -> vector<32x4xf32>
    %97 = vector.broadcast %59 : vector<32x1xf32> to vector<32x4xf32>
    %98 = arith.mulf %96, %97 : vector<32x4xf32>
    %99 = arith.truncf %98 : vector<32x4xf32> to vector<32x4xbf16>
    %100 = vector.extract_strided_slice %60 {offsets = [4, 0, 0], sizes = [1, 4, 16], strides = [1, 1, 1]} : vector<5x4x16xbf16> to vector<1x4x16xbf16>
    %101 = vector.shape_cast %100 : vector<1x4x16xbf16> to vector<4x16xbf16>
    %cst_35 = arith.constant dense<0.000000e+00> : vector<32x16xf32>
    %102 = tpu.matmul %99, %101, %cst_35 {dimension_numbers = #tpu.dot_dimension_numbers<[1], [0], [0], [1], [0, 0, 1, 1], [], []>} : vector<32x4xbf16>, vector<4x16xbf16>, vector<32x16xf32> -> vector<32x16xf32>
    %103 = arith.addf %95, %102 : vector<32x16xf32>
    %cst_36 = arith.constant dense<0.000000e+00> : vector<16xf32>
    %104 = vector.multi_reduction <add>, %103, %cst_36 [0] : vector<32x16xf32> to vector<16xf32>
    %105 = vector.shape_cast %104 : vector<16xf32> to vector<1x16xf32>
    %cst_37 = arith.constant 3.200000e+01 : f32
    %106 = vector.broadcast %cst_37 : f32 to vector<1x16xf32>
    %107 = arith.divf %105, %106 : vector<1x16xf32>
    %108 = vector.broadcast %107 : vector<1x16xf32> to vector<32x16xf32>
    %109 = arith.subf %103, %108 : vector<32x16xf32>
    %110 = arith.mulf %109, %109 : vector<32x16xf32>
    %cst_38 = arith.constant dense<0.000000e+00> : vector<16xf32>
    %111 = vector.multi_reduction <add>, %110, %cst_38 [0] : vector<32x16xf32> to vector<16xf32>
    %112 = vector.shape_cast %111 : vector<16xf32> to vector<1x16xf32>
    %cst_39 = arith.constant 3.200000e+01 : f32
    %113 = vector.broadcast %cst_39 : f32 to vector<1x16xf32>
    %114 = arith.divf %112, %113 : vector<1x16xf32>
    %cst_40 = arith.constant 9.99999974E-5 : f32
    %115 = vector.broadcast %cst_40 : f32 to vector<1x16xf32>
    %116 = arith.addf %114, %115 : vector<1x16xf32>
    %117 = math.rsqrt %116 : vector<1x16xf32>
    %118 = vector.broadcast %117 : vector<1x16xf32> to vector<32x16xf32>
    %119 = arith.mulf %109, %118 : vector<32x16xf32>
    %120 = vector.broadcast %61 : vector<1x16xf32> to vector<32x16xf32>
    %121 = arith.mulf %119, %120 : vector<32x16xf32>
    %122 = vector.broadcast %62 : vector<1x16xf32> to vector<32x16xf32>
    %123 = arith.addf %121, %122 : vector<32x16xf32>
    %cst_41 = arith.constant 0.000000e+00 : f32
    %124 = vector.broadcast %cst_41 : f32 to vector<32x16xf32>
    %125 = arith.cmpf oge, %123, %124 : vector<32x16xf32>
    %cst_42 = arith.constant 0.00999999977 : f32
    %126 = vector.broadcast %cst_42 : f32 to vector<32x16xf32>
    %127 = arith.mulf %126, %123 : vector<32x16xf32>
    %128 = arith.select %125, %123, %127 : vector<32x16xi1>, vector<32x16xf32>
    %c2_i32_43 = arith.constant 2 : i32
    %129 = tpu.dynamic_rotate %128 by %c2_i32_43 dim 0 : vector<32x16xf32>, i32 -> vector<32x16xf32>
    %130 = vector.broadcast %15 : vector<32x1xf32> to vector<32x16xf32>
    %131 = arith.mulf %129, %130 : vector<32x16xf32>
    %132 = arith.truncf %131 : vector<32x16xf32> to vector<32x16xbf16>
    %133 = vector.extract_strided_slice %63 {offsets = [0, 0, 0], sizes = [1, 16, 16], strides = [1, 1, 1]} : vector<5x16x16xbf16> to vector<1x16x16xbf16>
    %134 = vector.shape_cast %133 : vector<1x16x16xbf16> to vector<16x16xbf16>
    %cst_44 = arith.constant dense<0.000000e+00> : vector<32x16xf32>
    %135 = tpu.matmul %132, %134, %cst_44 {dimension_numbers = #tpu.dot_dimension_numbers<[1], [0], [0], [1], [0, 0, 1, 1], [], []>} : vector<32x16xbf16>, vector<16x16xbf16>, vector<32x16xf32> -> vector<32x16xf32>
    %c1_i32_45 = arith.constant 1 : i32
    %136 = tpu.dynamic_rotate %128 by %c1_i32_45 dim 0 : vector<32x16xf32>, i32 -> vector<32x16xf32>
    %137 = vector.broadcast %26 : vector<32x1xf32> to vector<32x16xf32>
    %138 = arith.mulf %136, %137 : vector<32x16xf32>
    %139 = arith.truncf %138 : vector<32x16xf32> to vector<32x16xbf16>
    %140 = vector.extract_strided_slice %63 {offsets = [1, 0, 0], sizes = [1, 16, 16], strides = [1, 1, 1]} : vector<5x16x16xbf16> to vector<1x16x16xbf16>
    %141 = vector.shape_cast %140 : vector<1x16x16xbf16> to vector<16x16xbf16>
    %cst_46 = arith.constant dense<0.000000e+00> : vector<32x16xf32>
    %142 = tpu.matmul %139, %141, %cst_46 {dimension_numbers = #tpu.dot_dimension_numbers<[1], [0], [0], [1], [0, 0, 1, 1], [], []>} : vector<32x16xbf16>, vector<16x16xbf16>, vector<32x16xf32> -> vector<32x16xf32>
    %143 = arith.addf %135, %142 : vector<32x16xf32>
    %144 = vector.broadcast %37 : vector<32x1xf32> to vector<32x16xf32>
    %145 = arith.mulf %128, %144 : vector<32x16xf32>
    %146 = arith.truncf %145 : vector<32x16xf32> to vector<32x16xbf16>
    %147 = vector.extract_strided_slice %63 {offsets = [2, 0, 0], sizes = [1, 16, 16], strides = [1, 1, 1]} : vector<5x16x16xbf16> to vector<1x16x16xbf16>
    %148 = vector.shape_cast %147 : vector<1x16x16xbf16> to vector<16x16xbf16>
    %cst_47 = arith.constant dense<0.000000e+00> : vector<32x16xf32>
    %149 = tpu.matmul %146, %148, %cst_47 {dimension_numbers = #tpu.dot_dimension_numbers<[1], [0], [0], [1], [0, 0, 1, 1], [], []>} : vector<32x16xbf16>, vector<16x16xbf16>, vector<32x16xf32> -> vector<32x16xf32>
    %150 = arith.addf %143, %149 : vector<32x16xf32>
    %c31_i32_48 = arith.constant 31 : i32
    %151 = tpu.dynamic_rotate %128 by %c31_i32_48 dim 0 : vector<32x16xf32>, i32 -> vector<32x16xf32>
    %152 = vector.broadcast %48 : vector<32x1xf32> to vector<32x16xf32>
    %153 = arith.mulf %151, %152 : vector<32x16xf32>
    %154 = arith.truncf %153 : vector<32x16xf32> to vector<32x16xbf16>
    %155 = vector.extract_strided_slice %63 {offsets = [3, 0, 0], sizes = [1, 16, 16], strides = [1, 1, 1]} : vector<5x16x16xbf16> to vector<1x16x16xbf16>
    %156 = vector.shape_cast %155 : vector<1x16x16xbf16> to vector<16x16xbf16>
    %cst_49 = arith.constant dense<0.000000e+00> : vector<32x16xf32>
    %157 = tpu.matmul %154, %156, %cst_49 {dimension_numbers = #tpu.dot_dimension_numbers<[1], [0], [0], [1], [0, 0, 1, 1], [], []>} : vector<32x16xbf16>, vector<16x16xbf16>, vector<32x16xf32> -> vector<32x16xf32>
    %158 = arith.addf %150, %157 : vector<32x16xf32>
    %c30_i32_50 = arith.constant 30 : i32
    %159 = tpu.dynamic_rotate %128 by %c30_i32_50 dim 0 : vector<32x16xf32>, i32 -> vector<32x16xf32>
    %160 = vector.broadcast %59 : vector<32x1xf32> to vector<32x16xf32>
    %161 = arith.mulf %159, %160 : vector<32x16xf32>
    %162 = arith.truncf %161 : vector<32x16xf32> to vector<32x16xbf16>
    %163 = vector.extract_strided_slice %63 {offsets = [4, 0, 0], sizes = [1, 16, 16], strides = [1, 1, 1]} : vector<5x16x16xbf16> to vector<1x16x16xbf16>
    %164 = vector.shape_cast %163 : vector<1x16x16xbf16> to vector<16x16xbf16>
    %cst_51 = arith.constant dense<0.000000e+00> : vector<32x16xf32>
    %165 = tpu.matmul %162, %164, %cst_51 {dimension_numbers = #tpu.dot_dimension_numbers<[1], [0], [0], [1], [0, 0, 1, 1], [], []>} : vector<32x16xbf16>, vector<16x16xbf16>, vector<32x16xf32> -> vector<32x16xf32>
    %166 = arith.addf %158, %165 : vector<32x16xf32>
    %cst_52 = arith.constant dense<0.000000e+00> : vector<16xf32>
    %167 = vector.multi_reduction <add>, %166, %cst_52 [0] : vector<32x16xf32> to vector<16xf32>
    %168 = vector.shape_cast %167 : vector<16xf32> to vector<1x16xf32>
    %cst_53 = arith.constant 3.200000e+01 : f32
    %169 = vector.broadcast %cst_53 : f32 to vector<1x16xf32>
    %170 = arith.divf %168, %169 : vector<1x16xf32>
    %171 = vector.broadcast %170 : vector<1x16xf32> to vector<32x16xf32>
    %172 = arith.subf %166, %171 : vector<32x16xf32>
    %173 = arith.mulf %172, %172 : vector<32x16xf32>
    %cst_54 = arith.constant dense<0.000000e+00> : vector<16xf32>
    %174 = vector.multi_reduction <add>, %173, %cst_54 [0] : vector<32x16xf32> to vector<16xf32>
    %175 = vector.shape_cast %174 : vector<16xf32> to vector<1x16xf32>
    %cst_55 = arith.constant 3.200000e+01 : f32
    %176 = vector.broadcast %cst_55 : f32 to vector<1x16xf32>
    %177 = arith.divf %175, %176 : vector<1x16xf32>
    %cst_56 = arith.constant 9.99999974E-5 : f32
    %178 = vector.broadcast %cst_56 : f32 to vector<1x16xf32>
    %179 = arith.addf %177, %178 : vector<1x16xf32>
    %180 = math.rsqrt %179 : vector<1x16xf32>
    %181 = vector.broadcast %180 : vector<1x16xf32> to vector<32x16xf32>
    %182 = arith.mulf %172, %181 : vector<32x16xf32>
    %183 = vector.broadcast %64 : vector<1x16xf32> to vector<32x16xf32>
    %184 = arith.mulf %182, %183 : vector<32x16xf32>
    %185 = vector.broadcast %65 : vector<1x16xf32> to vector<32x16xf32>
    %186 = arith.addf %184, %185 : vector<32x16xf32>
    %cst_57 = arith.constant 0.000000e+00 : f32
    %187 = vector.broadcast %cst_57 : f32 to vector<32x16xf32>
    %188 = arith.cmpf oge, %186, %187 : vector<32x16xf32>
    %cst_58 = arith.constant 0.00999999977 : f32
    %189 = vector.broadcast %cst_58 : f32 to vector<32x16xf32>
    %190 = arith.mulf %189, %186 : vector<32x16xf32>
    %191 = arith.select %188, %186, %190 : vector<32x16xi1>, vector<32x16xf32>
    %192 = vector.shape_cast %191 : vector<32x16xf32> to vector<16x2x16xf32>
    %193 = vector.extract_strided_slice %192 {offsets = [0, 0, 0], sizes = [16, 1, 16], strides = [1, 1, 1]} : vector<16x2x16xf32> to vector<16x1x16xf32>
    %194 = vector.shape_cast %193 : vector<16x1x16xf32> to vector<16x16xf32>
    %195 = vector.extract_strided_slice %192 {offsets = [0, 1, 0], sizes = [16, 1, 16], strides = [1, 1, 1]} : vector<16x2x16xf32> to vector<16x1x16xf32>
    %196 = vector.shape_cast %195 : vector<16x1x16xf32> to vector<16x16xf32>
    %197 = arith.maximumf %194, %196 : vector<16x16xf32>
    %198 = tpu.iota {dimensions = array<i32: 0>} : vector<16x1xi32>
    %c7_i32 = arith.constant 7 : i32
    %199 = vector.broadcast %c7_i32 : i32 to vector<16x1xi32>
    %200 = arith.andi %198, %199 : vector<16x1xi32>
    %c-2_i32_59 = arith.constant -2 : i32
    %201 = vector.broadcast %c-2_i32_59 : i32 to vector<16x1xi32>
    %202 = arith.addi %200, %201 : vector<16x1xi32>
    %c0_i32_60 = arith.constant 0 : i32
    %203 = vector.broadcast %c0_i32_60 : i32 to vector<16x1xi32>
    %204 = arith.cmpi sge, %202, %203 : vector<16x1xi32>
    %c-2_i32_61 = arith.constant -2 : i32
    %205 = vector.broadcast %c-2_i32_61 : i32 to vector<16x1xi32>
    %206 = arith.addi %200, %205 : vector<16x1xi32>
    %c8_i32 = arith.constant 8 : i32
    %207 = vector.broadcast %c8_i32 : i32 to vector<16x1xi32>
    %208 = arith.cmpi slt, %206, %207 : vector<16x1xi32>
    %209 = arith.andi %204, %208 : vector<16x1xi1>
    %210 = arith.extui %209 : vector<16x1xi1> to vector<16x1xi32>
    %211 = arith.sitofp %210 : vector<16x1xi32> to vector<16x1xf32>
    %c-1_i32_62 = arith.constant -1 : i32
    %212 = vector.broadcast %c-1_i32_62 : i32 to vector<16x1xi32>
    %213 = arith.addi %200, %212 : vector<16x1xi32>
    %c0_i32_63 = arith.constant 0 : i32
    %214 = vector.broadcast %c0_i32_63 : i32 to vector<16x1xi32>
    %215 = arith.cmpi sge, %213, %214 : vector<16x1xi32>
    %c-1_i32_64 = arith.constant -1 : i32
    %216 = vector.broadcast %c-1_i32_64 : i32 to vector<16x1xi32>
    %217 = arith.addi %200, %216 : vector<16x1xi32>
    %c8_i32_65 = arith.constant 8 : i32
    %218 = vector.broadcast %c8_i32_65 : i32 to vector<16x1xi32>
    %219 = arith.cmpi slt, %217, %218 : vector<16x1xi32>
    %220 = arith.andi %215, %219 : vector<16x1xi1>
    %221 = arith.extui %220 : vector<16x1xi1> to vector<16x1xi32>
    %222 = arith.sitofp %221 : vector<16x1xi32> to vector<16x1xf32>
    %c0_i32_66 = arith.constant 0 : i32
    %223 = vector.broadcast %c0_i32_66 : i32 to vector<16x1xi32>
    %224 = arith.addi %200, %223 : vector<16x1xi32>
    %c0_i32_67 = arith.constant 0 : i32
    %225 = vector.broadcast %c0_i32_67 : i32 to vector<16x1xi32>
    %226 = arith.cmpi sge, %224, %225 : vector<16x1xi32>
    %c0_i32_68 = arith.constant 0 : i32
    %227 = vector.broadcast %c0_i32_68 : i32 to vector<16x1xi32>
    %228 = arith.addi %200, %227 : vector<16x1xi32>
    %c8_i32_69 = arith.constant 8 : i32
    %229 = vector.broadcast %c8_i32_69 : i32 to vector<16x1xi32>
    %230 = arith.cmpi slt, %228, %229 : vector<16x1xi32>
    %231 = arith.andi %226, %230 : vector<16x1xi1>
    %232 = arith.extui %231 : vector<16x1xi1> to vector<16x1xi32>
    %233 = arith.sitofp %232 : vector<16x1xi32> to vector<16x1xf32>
    %c1_i32_70 = arith.constant 1 : i32
    %234 = vector.broadcast %c1_i32_70 : i32 to vector<16x1xi32>
    %235 = arith.addi %200, %234 : vector<16x1xi32>
    %c0_i32_71 = arith.constant 0 : i32
    %236 = vector.broadcast %c0_i32_71 : i32 to vector<16x1xi32>
    %237 = arith.cmpi sge, %235, %236 : vector<16x1xi32>
    %c1_i32_72 = arith.constant 1 : i32
    %238 = vector.broadcast %c1_i32_72 : i32 to vector<16x1xi32>
    %239 = arith.addi %200, %238 : vector<16x1xi32>
    %c8_i32_73 = arith.constant 8 : i32
    %240 = vector.broadcast %c8_i32_73 : i32 to vector<16x1xi32>
    %241 = arith.cmpi slt, %239, %240 : vector<16x1xi32>
    %242 = arith.andi %237, %241 : vector<16x1xi1>
    %243 = arith.extui %242 : vector<16x1xi1> to vector<16x1xi32>
    %244 = arith.sitofp %243 : vector<16x1xi32> to vector<16x1xf32>
    %c2_i32_74 = arith.constant 2 : i32
    %245 = vector.broadcast %c2_i32_74 : i32 to vector<16x1xi32>
    %246 = arith.addi %200, %245 : vector<16x1xi32>
    %c0_i32_75 = arith.constant 0 : i32
    %247 = vector.broadcast %c0_i32_75 : i32 to vector<16x1xi32>
    %248 = arith.cmpi sge, %246, %247 : vector<16x1xi32>
    %c2_i32_76 = arith.constant 2 : i32
    %249 = vector.broadcast %c2_i32_76 : i32 to vector<16x1xi32>
    %250 = arith.addi %200, %249 : vector<16x1xi32>
    %c8_i32_77 = arith.constant 8 : i32
    %251 = vector.broadcast %c8_i32_77 : i32 to vector<16x1xi32>
    %252 = arith.cmpi slt, %250, %251 : vector<16x1xi32>
    %253 = arith.andi %248, %252 : vector<16x1xi1>
    %254 = arith.extui %253 : vector<16x1xi1> to vector<16x1xi32>
    %255 = arith.sitofp %254 : vector<16x1xi32> to vector<16x1xf32>
    %c0_78 = arith.constant 0 : index
    %c0_79 = arith.constant 0 : index
    %c0_80 = arith.constant 0 : index
    %c0_81 = arith.constant 0 : index
    %256 = vector.load %arg7[%c0_78, %c0_79, %c0_80, %c0_81] : memref<2x5x16x16xbf16, #tpu.memory_space<vmem>>, vector<1x5x16x16xbf16>
    %257 = vector.shape_cast %256 : vector<1x5x16x16xbf16> to vector<5x16x16xbf16>
    %c0_82 = arith.constant 0 : index
    %c0_83 = arith.constant 0 : index
    %c0_84 = arith.constant 0 : index
    %258 = vector.load %arg8[%c0_82, %c0_83, %c0_84] : memref<2x1x16xf32, #tpu.memory_space<vmem>>, vector<1x1x16xf32>
    %259 = vector.shape_cast %258 : vector<1x1x16xf32> to vector<1x16xf32>
    %c0_85 = arith.constant 0 : index
    %c0_86 = arith.constant 0 : index
    %c0_87 = arith.constant 0 : index
    %260 = vector.load %arg9[%c0_85, %c0_86, %c0_87] : memref<2x1x16xf32, #tpu.memory_space<vmem>>, vector<1x1x16xf32>
    %261 = vector.shape_cast %260 : vector<1x1x16xf32> to vector<1x16xf32>
    %c0_88 = arith.constant 0 : index
    %c0_89 = arith.constant 0 : index
    %c0_90 = arith.constant 0 : index
    %c0_91 = arith.constant 0 : index
    %262 = vector.load %arg10[%c0_88, %c0_89, %c0_90, %c0_91] : memref<2x5x16x16xbf16, #tpu.memory_space<vmem>>, vector<1x5x16x16xbf16>
    %263 = vector.shape_cast %262 : vector<1x5x16x16xbf16> to vector<5x16x16xbf16>
    %c0_92 = arith.constant 0 : index
    %c0_93 = arith.constant 0 : index
    %c0_94 = arith.constant 0 : index
    %264 = vector.load %arg11[%c0_92, %c0_93, %c0_94] : memref<2x1x16xf32, #tpu.memory_space<vmem>>, vector<1x1x16xf32>
    %265 = vector.shape_cast %264 : vector<1x1x16xf32> to vector<1x16xf32>
    %c0_95 = arith.constant 0 : index
    %c0_96 = arith.constant 0 : index
    %c0_97 = arith.constant 0 : index
    %266 = vector.load %arg12[%c0_95, %c0_96, %c0_97] : memref<2x1x16xf32, #tpu.memory_space<vmem>>, vector<1x1x16xf32>
    %267 = vector.shape_cast %266 : vector<1x1x16xf32> to vector<1x16xf32>
    %c2_i32_98 = arith.constant 2 : i32
    %268 = tpu.dynamic_rotate %197 by %c2_i32_98 dim 0 : vector<16x16xf32>, i32 -> vector<16x16xf32>
    %269 = vector.broadcast %211 : vector<16x1xf32> to vector<16x16xf32>
    %270 = arith.mulf %268, %269 : vector<16x16xf32>
    %271 = arith.truncf %270 : vector<16x16xf32> to vector<16x16xbf16>
    %272 = vector.extract_strided_slice %257 {offsets = [0, 0, 0], sizes = [1, 16, 16], strides = [1, 1, 1]} : vector<5x16x16xbf16> to vector<1x16x16xbf16>
    %273 = vector.shape_cast %272 : vector<1x16x16xbf16> to vector<16x16xbf16>
    %cst_99 = arith.constant dense<0.000000e+00> : vector<16x16xf32>
    %274 = tpu.matmul %271, %273, %cst_99 {dimension_numbers = #tpu.dot_dimension_numbers<[1], [0], [0], [1], [0, 0, 1, 1], [], []>} : vector<16x16xbf16>, vector<16x16xbf16>, vector<16x16xf32> -> vector<16x16xf32>
    %c1_i32_100 = arith.constant 1 : i32
    %275 = tpu.dynamic_rotate %197 by %c1_i32_100 dim 0 : vector<16x16xf32>, i32 -> vector<16x16xf32>
    %276 = vector.broadcast %222 : vector<16x1xf32> to vector<16x16xf32>
    %277 = arith.mulf %275, %276 : vector<16x16xf32>
    %278 = arith.truncf %277 : vector<16x16xf32> to vector<16x16xbf16>
    %279 = vector.extract_strided_slice %257 {offsets = [1, 0, 0], sizes = [1, 16, 16], strides = [1, 1, 1]} : vector<5x16x16xbf16> to vector<1x16x16xbf16>
    %280 = vector.shape_cast %279 : vector<1x16x16xbf16> to vector<16x16xbf16>
    %cst_101 = arith.constant dense<0.000000e+00> : vector<16x16xf32>
    %281 = tpu.matmul %278, %280, %cst_101 {dimension_numbers = #tpu.dot_dimension_numbers<[1], [0], [0], [1], [0, 0, 1, 1], [], []>} : vector<16x16xbf16>, vector<16x16xbf16>, vector<16x16xf32> -> vector<16x16xf32>
    %282 = arith.addf %274, %281 : vector<16x16xf32>
    %283 = vector.broadcast %233 : vector<16x1xf32> to vector<16x16xf32>
    %284 = arith.mulf %197, %283 : vector<16x16xf32>
    %285 = arith.truncf %284 : vector<16x16xf32> to vector<16x16xbf16>
    %286 = vector.extract_strided_slice %257 {offsets = [2, 0, 0], sizes = [1, 16, 16], strides = [1, 1, 1]} : vector<5x16x16xbf16> to vector<1x16x16xbf16>
    %287 = vector.shape_cast %286 : vector<1x16x16xbf16> to vector<16x16xbf16>
    %cst_102 = arith.constant dense<0.000000e+00> : vector<16x16xf32>
    %288 = tpu.matmul %285, %287, %cst_102 {dimension_numbers = #tpu.dot_dimension_numbers<[1], [0], [0], [1], [0, 0, 1, 1], [], []>} : vector<16x16xbf16>, vector<16x16xbf16>, vector<16x16xf32> -> vector<16x16xf32>
    %289 = arith.addf %282, %288 : vector<16x16xf32>
    %c15_i32_103 = arith.constant 15 : i32
    %290 = tpu.dynamic_rotate %197 by %c15_i32_103 dim 0 : vector<16x16xf32>, i32 -> vector<16x16xf32>
    %291 = vector.broadcast %244 : vector<16x1xf32> to vector<16x16xf32>
    %292 = arith.mulf %290, %291 : vector<16x16xf32>
    %293 = arith.truncf %292 : vector<16x16xf32> to vector<16x16xbf16>
    %294 = vector.extract_strided_slice %257 {offsets = [3, 0, 0], sizes = [1, 16, 16], strides = [1, 1, 1]} : vector<5x16x16xbf16> to vector<1x16x16xbf16>
    %295 = vector.shape_cast %294 : vector<1x16x16xbf16> to vector<16x16xbf16>
    %cst_104 = arith.constant dense<0.000000e+00> : vector<16x16xf32>
    %296 = tpu.matmul %293, %295, %cst_104 {dimension_numbers = #tpu.dot_dimension_numbers<[1], [0], [0], [1], [0, 0, 1, 1], [], []>} : vector<16x16xbf16>, vector<16x16xbf16>, vector<16x16xf32> -> vector<16x16xf32>
    %297 = arith.addf %289, %296 : vector<16x16xf32>
    %c14_i32 = arith.constant 14 : i32
    %298 = tpu.dynamic_rotate %197 by %c14_i32 dim 0 : vector<16x16xf32>, i32 -> vector<16x16xf32>
    %299 = vector.broadcast %255 : vector<16x1xf32> to vector<16x16xf32>
    %300 = arith.mulf %298, %299 : vector<16x16xf32>
    %301 = arith.truncf %300 : vector<16x16xf32> to vector<16x16xbf16>
    %302 = vector.extract_strided_slice %257 {offsets = [4, 0, 0], sizes = [1, 16, 16], strides = [1, 1, 1]} : vector<5x16x16xbf16> to vector<1x16x16xbf16>
    %303 = vector.shape_cast %302 : vector<1x16x16xbf16> to vector<16x16xbf16>
    %cst_105 = arith.constant dense<0.000000e+00> : vector<16x16xf32>
    %304 = tpu.matmul %301, %303, %cst_105 {dimension_numbers = #tpu.dot_dimension_numbers<[1], [0], [0], [1], [0, 0, 1, 1], [], []>} : vector<16x16xbf16>, vector<16x16xbf16>, vector<16x16xf32> -> vector<16x16xf32>
    %305 = arith.addf %297, %304 : vector<16x16xf32>
    %cst_106 = arith.constant dense<0.000000e+00> : vector<16xf32>
    %306 = vector.multi_reduction <add>, %305, %cst_106 [0] : vector<16x16xf32> to vector<16xf32>
    %307 = vector.shape_cast %306 : vector<16xf32> to vector<1x16xf32>
    %cst_107 = arith.constant 1.600000e+01 : f32
    %308 = vector.broadcast %cst_107 : f32 to vector<1x16xf32>
    %309 = arith.divf %307, %308 : vector<1x16xf32>
    %310 = vector.broadcast %309 : vector<1x16xf32> to vector<16x16xf32>
    %311 = arith.subf %305, %310 : vector<16x16xf32>
    %312 = arith.mulf %311, %311 : vector<16x16xf32>
    %cst_108 = arith.constant dense<0.000000e+00> : vector<16xf32>
    %313 = vector.multi_reduction <add>, %312, %cst_108 [0] : vector<16x16xf32> to vector<16xf32>
    %314 = vector.shape_cast %313 : vector<16xf32> to vector<1x16xf32>
    %cst_109 = arith.constant 1.600000e+01 : f32
    %315 = vector.broadcast %cst_109 : f32 to vector<1x16xf32>
    %316 = arith.divf %314, %315 : vector<1x16xf32>
    %cst_110 = arith.constant 9.99999974E-5 : f32
    %317 = vector.broadcast %cst_110 : f32 to vector<1x16xf32>
    %318 = arith.addf %316, %317 : vector<1x16xf32>
    %319 = math.rsqrt %318 : vector<1x16xf32>
    %320 = vector.broadcast %319 : vector<1x16xf32> to vector<16x16xf32>
    %321 = arith.mulf %311, %320 : vector<16x16xf32>
    %322 = vector.broadcast %259 : vector<1x16xf32> to vector<16x16xf32>
    %323 = arith.mulf %321, %322 : vector<16x16xf32>
    %324 = vector.broadcast %261 : vector<1x16xf32> to vector<16x16xf32>
    %325 = arith.addf %323, %324 : vector<16x16xf32>
    %cst_111 = arith.constant 0.000000e+00 : f32
    %326 = vector.broadcast %cst_111 : f32 to vector<16x16xf32>
    %327 = arith.cmpf oge, %325, %326 : vector<16x16xf32>
    %cst_112 = arith.constant 0.00999999977 : f32
    %328 = vector.broadcast %cst_112 : f32 to vector<16x16xf32>
    %329 = arith.mulf %328, %325 : vector<16x16xf32>
    %330 = arith.select %327, %325, %329 : vector<16x16xi1>, vector<16x16xf32>
    %c2_i32_113 = arith.constant 2 : i32
    %331 = tpu.dynamic_rotate %330 by %c2_i32_113 dim 0 : vector<16x16xf32>, i32 -> vector<16x16xf32>
    %332 = vector.broadcast %211 : vector<16x1xf32> to vector<16x16xf32>
    %333 = arith.mulf %331, %332 : vector<16x16xf32>
    %334 = arith.truncf %333 : vector<16x16xf32> to vector<16x16xbf16>
    %335 = vector.extract_strided_slice %263 {offsets = [0, 0, 0], sizes = [1, 16, 16], strides = [1, 1, 1]} : vector<5x16x16xbf16> to vector<1x16x16xbf16>
    %336 = vector.shape_cast %335 : vector<1x16x16xbf16> to vector<16x16xbf16>
    %cst_114 = arith.constant dense<0.000000e+00> : vector<16x16xf32>
    %337 = tpu.matmul %334, %336, %cst_114 {dimension_numbers = #tpu.dot_dimension_numbers<[1], [0], [0], [1], [0, 0, 1, 1], [], []>} : vector<16x16xbf16>, vector<16x16xbf16>, vector<16x16xf32> -> vector<16x16xf32>
    %c1_i32_115 = arith.constant 1 : i32
    %338 = tpu.dynamic_rotate %330 by %c1_i32_115 dim 0 : vector<16x16xf32>, i32 -> vector<16x16xf32>
    %339 = vector.broadcast %222 : vector<16x1xf32> to vector<16x16xf32>
    %340 = arith.mulf %338, %339 : vector<16x16xf32>
    %341 = arith.truncf %340 : vector<16x16xf32> to vector<16x16xbf16>
    %342 = vector.extract_strided_slice %263 {offsets = [1, 0, 0], sizes = [1, 16, 16], strides = [1, 1, 1]} : vector<5x16x16xbf16> to vector<1x16x16xbf16>
    %343 = vector.shape_cast %342 : vector<1x16x16xbf16> to vector<16x16xbf16>
    %cst_116 = arith.constant dense<0.000000e+00> : vector<16x16xf32>
    %344 = tpu.matmul %341, %343, %cst_116 {dimension_numbers = #tpu.dot_dimension_numbers<[1], [0], [0], [1], [0, 0, 1, 1], [], []>} : vector<16x16xbf16>, vector<16x16xbf16>, vector<16x16xf32> -> vector<16x16xf32>
    %345 = arith.addf %337, %344 : vector<16x16xf32>
    %346 = vector.broadcast %233 : vector<16x1xf32> to vector<16x16xf32>
    %347 = arith.mulf %330, %346 : vector<16x16xf32>
    %348 = arith.truncf %347 : vector<16x16xf32> to vector<16x16xbf16>
    %349 = vector.extract_strided_slice %263 {offsets = [2, 0, 0], sizes = [1, 16, 16], strides = [1, 1, 1]} : vector<5x16x16xbf16> to vector<1x16x16xbf16>
    %350 = vector.shape_cast %349 : vector<1x16x16xbf16> to vector<16x16xbf16>
    %cst_117 = arith.constant dense<0.000000e+00> : vector<16x16xf32>
    %351 = tpu.matmul %348, %350, %cst_117 {dimension_numbers = #tpu.dot_dimension_numbers<[1], [0], [0], [1], [0, 0, 1, 1], [], []>} : vector<16x16xbf16>, vector<16x16xbf16>, vector<16x16xf32> -> vector<16x16xf32>
    %352 = arith.addf %345, %351 : vector<16x16xf32>
    %c15_i32_118 = arith.constant 15 : i32
    %353 = tpu.dynamic_rotate %330 by %c15_i32_118 dim 0 : vector<16x16xf32>, i32 -> vector<16x16xf32>
    %354 = vector.broadcast %244 : vector<16x1xf32> to vector<16x16xf32>
    %355 = arith.mulf %353, %354 : vector<16x16xf32>
    %356 = arith.truncf %355 : vector<16x16xf32> to vector<16x16xbf16>
    %357 = vector.extract_strided_slice %263 {offsets = [3, 0, 0], sizes = [1, 16, 16], strides = [1, 1, 1]} : vector<5x16x16xbf16> to vector<1x16x16xbf16>
    %358 = vector.shape_cast %357 : vector<1x16x16xbf16> to vector<16x16xbf16>
    %cst_119 = arith.constant dense<0.000000e+00> : vector<16x16xf32>
    %359 = tpu.matmul %356, %358, %cst_119 {dimension_numbers = #tpu.dot_dimension_numbers<[1], [0], [0], [1], [0, 0, 1, 1], [], []>} : vector<16x16xbf16>, vector<16x16xbf16>, vector<16x16xf32> -> vector<16x16xf32>
    %360 = arith.addf %352, %359 : vector<16x16xf32>
    %c14_i32_120 = arith.constant 14 : i32
    %361 = tpu.dynamic_rotate %330 by %c14_i32_120 dim 0 : vector<16x16xf32>, i32 -> vector<16x16xf32>
    %362 = vector.broadcast %255 : vector<16x1xf32> to vector<16x16xf32>
    %363 = arith.mulf %361, %362 : vector<16x16xf32>
    %364 = arith.truncf %363 : vector<16x16xf32> to vector<16x16xbf16>
    %365 = vector.extract_strided_slice %263 {offsets = [4, 0, 0], sizes = [1, 16, 16], strides = [1, 1, 1]} : vector<5x16x16xbf16> to vector<1x16x16xbf16>
    %366 = vector.shape_cast %365 : vector<1x16x16xbf16> to vector<16x16xbf16>
    %cst_121 = arith.constant dense<0.000000e+00> : vector<16x16xf32>
    %367 = tpu.matmul %364, %366, %cst_121 {dimension_numbers = #tpu.dot_dimension_numbers<[1], [0], [0], [1], [0, 0, 1, 1], [], []>} : vector<16x16xbf16>, vector<16x16xbf16>, vector<16x16xf32> -> vector<16x16xf32>
    %368 = arith.addf %360, %367 : vector<16x16xf32>
    %cst_122 = arith.constant dense<0.000000e+00> : vector<16xf32>
    %369 = vector.multi_reduction <add>, %368, %cst_122 [0] : vector<16x16xf32> to vector<16xf32>
    %370 = vector.shape_cast %369 : vector<16xf32> to vector<1x16xf32>
    %cst_123 = arith.constant 1.600000e+01 : f32
    %371 = vector.broadcast %cst_123 : f32 to vector<1x16xf32>
    %372 = arith.divf %370, %371 : vector<1x16xf32>
    %373 = vector.broadcast %372 : vector<1x16xf32> to vector<16x16xf32>
    %374 = arith.subf %368, %373 : vector<16x16xf32>
    %375 = arith.mulf %374, %374 : vector<16x16xf32>
    %cst_124 = arith.constant dense<0.000000e+00> : vector<16xf32>
    %376 = vector.multi_reduction <add>, %375, %cst_124 [0] : vector<16x16xf32> to vector<16xf32>
    %377 = vector.shape_cast %376 : vector<16xf32> to vector<1x16xf32>
    %cst_125 = arith.constant 1.600000e+01 : f32
    %378 = vector.broadcast %cst_125 : f32 to vector<1x16xf32>
    %379 = arith.divf %377, %378 : vector<1x16xf32>
    %cst_126 = arith.constant 9.99999974E-5 : f32
    %380 = vector.broadcast %cst_126 : f32 to vector<1x16xf32>
    %381 = arith.addf %379, %380 : vector<1x16xf32>
    %382 = math.rsqrt %381 : vector<1x16xf32>
    %383 = vector.broadcast %382 : vector<1x16xf32> to vector<16x16xf32>
    %384 = arith.mulf %374, %383 : vector<16x16xf32>
    %385 = vector.broadcast %265 : vector<1x16xf32> to vector<16x16xf32>
    %386 = arith.mulf %384, %385 : vector<16x16xf32>
    %387 = vector.broadcast %267 : vector<1x16xf32> to vector<16x16xf32>
    %388 = arith.addf %386, %387 : vector<16x16xf32>
    %389 = arith.addf %388, %197 : vector<16x16xf32>
    %cst_127 = arith.constant 0.000000e+00 : f32
    %390 = vector.broadcast %cst_127 : f32 to vector<16x16xf32>
    %391 = arith.cmpf oge, %389, %390 : vector<16x16xf32>
    %cst_128 = arith.constant 0.00999999977 : f32
    %392 = vector.broadcast %cst_128 : f32 to vector<16x16xf32>
    %393 = arith.mulf %392, %389 : vector<16x16xf32>
    %394 = arith.select %391, %389, %393 : vector<16x16xi1>, vector<16x16xf32>
    %395 = vector.shape_cast %394 : vector<16x16xf32> to vector<8x2x16xf32>
    %396 = vector.extract_strided_slice %395 {offsets = [0, 0, 0], sizes = [8, 1, 16], strides = [1, 1, 1]} : vector<8x2x16xf32> to vector<8x1x16xf32>
    %397 = vector.shape_cast %396 : vector<8x1x16xf32> to vector<8x16xf32>
    %398 = vector.extract_strided_slice %395 {offsets = [0, 1, 0], sizes = [8, 1, 16], strides = [1, 1, 1]} : vector<8x2x16xf32> to vector<8x1x16xf32>
    %399 = vector.shape_cast %398 : vector<8x1x16xf32> to vector<8x16xf32>
    %400 = arith.maximumf %397, %399 : vector<8x16xf32>
    %401 = tpu.iota {dimensions = array<i32: 0>} : vector<8x1xi32>
    %c3_i32 = arith.constant 3 : i32
    %402 = vector.broadcast %c3_i32 : i32 to vector<8x1xi32>
    %403 = arith.andi %401, %402 : vector<8x1xi32>
    %c-2_i32_129 = arith.constant -2 : i32
    %404 = vector.broadcast %c-2_i32_129 : i32 to vector<8x1xi32>
    %405 = arith.addi %403, %404 : vector<8x1xi32>
    %c0_i32_130 = arith.constant 0 : i32
    %406 = vector.broadcast %c0_i32_130 : i32 to vector<8x1xi32>
    %407 = arith.cmpi sge, %405, %406 : vector<8x1xi32>
    %c-2_i32_131 = arith.constant -2 : i32
    %408 = vector.broadcast %c-2_i32_131 : i32 to vector<8x1xi32>
    %409 = arith.addi %403, %408 : vector<8x1xi32>
    %c4_i32 = arith.constant 4 : i32
    %410 = vector.broadcast %c4_i32 : i32 to vector<8x1xi32>
    %411 = arith.cmpi slt, %409, %410 : vector<8x1xi32>
    %412 = arith.andi %407, %411 : vector<8x1xi1>
    %413 = arith.extui %412 : vector<8x1xi1> to vector<8x1xi32>
    %414 = arith.sitofp %413 : vector<8x1xi32> to vector<8x1xf32>
    %c-1_i32_132 = arith.constant -1 : i32
    %415 = vector.broadcast %c-1_i32_132 : i32 to vector<8x1xi32>
    %416 = arith.addi %403, %415 : vector<8x1xi32>
    %c0_i32_133 = arith.constant 0 : i32
    %417 = vector.broadcast %c0_i32_133 : i32 to vector<8x1xi32>
    %418 = arith.cmpi sge, %416, %417 : vector<8x1xi32>
    %c-1_i32_134 = arith.constant -1 : i32
    %419 = vector.broadcast %c-1_i32_134 : i32 to vector<8x1xi32>
    %420 = arith.addi %403, %419 : vector<8x1xi32>
    %c4_i32_135 = arith.constant 4 : i32
    %421 = vector.broadcast %c4_i32_135 : i32 to vector<8x1xi32>
    %422 = arith.cmpi slt, %420, %421 : vector<8x1xi32>
    %423 = arith.andi %418, %422 : vector<8x1xi1>
    %424 = arith.extui %423 : vector<8x1xi1> to vector<8x1xi32>
    %425 = arith.sitofp %424 : vector<8x1xi32> to vector<8x1xf32>
    %c0_i32_136 = arith.constant 0 : i32
    %426 = vector.broadcast %c0_i32_136 : i32 to vector<8x1xi32>
    %427 = arith.addi %403, %426 : vector<8x1xi32>
    %c0_i32_137 = arith.constant 0 : i32
    %428 = vector.broadcast %c0_i32_137 : i32 to vector<8x1xi32>
    %429 = arith.cmpi sge, %427, %428 : vector<8x1xi32>
    %c0_i32_138 = arith.constant 0 : i32
    %430 = vector.broadcast %c0_i32_138 : i32 to vector<8x1xi32>
    %431 = arith.addi %403, %430 : vector<8x1xi32>
    %c4_i32_139 = arith.constant 4 : i32
    %432 = vector.broadcast %c4_i32_139 : i32 to vector<8x1xi32>
    %433 = arith.cmpi slt, %431, %432 : vector<8x1xi32>
    %434 = arith.andi %429, %433 : vector<8x1xi1>
    %435 = arith.extui %434 : vector<8x1xi1> to vector<8x1xi32>
    %436 = arith.sitofp %435 : vector<8x1xi32> to vector<8x1xf32>
    %c1_i32_140 = arith.constant 1 : i32
    %437 = vector.broadcast %c1_i32_140 : i32 to vector<8x1xi32>
    %438 = arith.addi %403, %437 : vector<8x1xi32>
    %c0_i32_141 = arith.constant 0 : i32
    %439 = vector.broadcast %c0_i32_141 : i32 to vector<8x1xi32>
    %440 = arith.cmpi sge, %438, %439 : vector<8x1xi32>
    %c1_i32_142 = arith.constant 1 : i32
    %441 = vector.broadcast %c1_i32_142 : i32 to vector<8x1xi32>
    %442 = arith.addi %403, %441 : vector<8x1xi32>
    %c4_i32_143 = arith.constant 4 : i32
    %443 = vector.broadcast %c4_i32_143 : i32 to vector<8x1xi32>
    %444 = arith.cmpi slt, %442, %443 : vector<8x1xi32>
    %445 = arith.andi %440, %444 : vector<8x1xi1>
    %446 = arith.extui %445 : vector<8x1xi1> to vector<8x1xi32>
    %447 = arith.sitofp %446 : vector<8x1xi32> to vector<8x1xf32>
    %c2_i32_144 = arith.constant 2 : i32
    %448 = vector.broadcast %c2_i32_144 : i32 to vector<8x1xi32>
    %449 = arith.addi %403, %448 : vector<8x1xi32>
    %c0_i32_145 = arith.constant 0 : i32
    %450 = vector.broadcast %c0_i32_145 : i32 to vector<8x1xi32>
    %451 = arith.cmpi sge, %449, %450 : vector<8x1xi32>
    %c2_i32_146 = arith.constant 2 : i32
    %452 = vector.broadcast %c2_i32_146 : i32 to vector<8x1xi32>
    %453 = arith.addi %403, %452 : vector<8x1xi32>
    %c4_i32_147 = arith.constant 4 : i32
    %454 = vector.broadcast %c4_i32_147 : i32 to vector<8x1xi32>
    %455 = arith.cmpi slt, %453, %454 : vector<8x1xi32>
    %456 = arith.andi %451, %455 : vector<8x1xi1>
    %457 = arith.extui %456 : vector<8x1xi1> to vector<8x1xi32>
    %458 = arith.sitofp %457 : vector<8x1xi32> to vector<8x1xf32>
    %c1 = arith.constant 1 : index
    %c0_148 = arith.constant 0 : index
    %c0_149 = arith.constant 0 : index
    %c0_150 = arith.constant 0 : index
    %459 = vector.load %arg7[%c1, %c0_148, %c0_149, %c0_150] : memref<2x5x16x16xbf16, #tpu.memory_space<vmem>>, vector<1x5x16x16xbf16>
    %460 = vector.shape_cast %459 : vector<1x5x16x16xbf16> to vector<5x16x16xbf16>
    %c1_151 = arith.constant 1 : index
    %c0_152 = arith.constant 0 : index
    %c0_153 = arith.constant 0 : index
    %461 = vector.load %arg8[%c1_151, %c0_152, %c0_153] : memref<2x1x16xf32, #tpu.memory_space<vmem>>, vector<1x1x16xf32>
    %462 = vector.shape_cast %461 : vector<1x1x16xf32> to vector<1x16xf32>
    %c1_154 = arith.constant 1 : index
    %c0_155 = arith.constant 0 : index
    %c0_156 = arith.constant 0 : index
    %463 = vector.load %arg9[%c1_154, %c0_155, %c0_156] : memref<2x1x16xf32, #tpu.memory_space<vmem>>, vector<1x1x16xf32>
    %464 = vector.shape_cast %463 : vector<1x1x16xf32> to vector<1x16xf32>
    %c1_157 = arith.constant 1 : index
    %c0_158 = arith.constant 0 : index
    %c0_159 = arith.constant 0 : index
    %c0_160 = arith.constant 0 : index
    %465 = vector.load %arg10[%c1_157, %c0_158, %c0_159, %c0_160] : memref<2x5x16x16xbf16, #tpu.memory_space<vmem>>, vector<1x5x16x16xbf16>
    %466 = vector.shape_cast %465 : vector<1x5x16x16xbf16> to vector<5x16x16xbf16>
    %c1_161 = arith.constant 1 : index
    %c0_162 = arith.constant 0 : index
    %c0_163 = arith.constant 0 : index
    %467 = vector.load %arg11[%c1_161, %c0_162, %c0_163] : memref<2x1x16xf32, #tpu.memory_space<vmem>>, vector<1x1x16xf32>
    %468 = vector.shape_cast %467 : vector<1x1x16xf32> to vector<1x16xf32>
    %c1_164 = arith.constant 1 : index
    %c0_165 = arith.constant 0 : index
    %c0_166 = arith.constant 0 : index
    %469 = vector.load %arg12[%c1_164, %c0_165, %c0_166] : memref<2x1x16xf32, #tpu.memory_space<vmem>>, vector<1x1x16xf32>
    %470 = vector.shape_cast %469 : vector<1x1x16xf32> to vector<1x16xf32>
    %c2_i32_167 = arith.constant 2 : i32
    %471 = tpu.dynamic_rotate %400 by %c2_i32_167 dim 0 : vector<8x16xf32>, i32 -> vector<8x16xf32>
    %472 = vector.broadcast %414 : vector<8x1xf32> to vector<8x16xf32>
    %473 = arith.mulf %471, %472 : vector<8x16xf32>
    %474 = arith.truncf %473 : vector<8x16xf32> to vector<8x16xbf16>
    %475 = vector.extract_strided_slice %460 {offsets = [0, 0, 0], sizes = [1, 16, 16], strides = [1, 1, 1]} : vector<5x16x16xbf16> to vector<1x16x16xbf16>
    %476 = vector.shape_cast %475 : vector<1x16x16xbf16> to vector<16x16xbf16>
    %cst_168 = arith.constant dense<0.000000e+00> : vector<8x16xf32>
    %477 = tpu.matmul %474, %476, %cst_168 {dimension_numbers = #tpu.dot_dimension_numbers<[1], [0], [0], [1], [0, 0, 1, 1], [], []>} : vector<8x16xbf16>, vector<16x16xbf16>, vector<8x16xf32> -> vector<8x16xf32>
    %c1_i32_169 = arith.constant 1 : i32
    %478 = tpu.dynamic_rotate %400 by %c1_i32_169 dim 0 : vector<8x16xf32>, i32 -> vector<8x16xf32>
    %479 = vector.broadcast %425 : vector<8x1xf32> to vector<8x16xf32>
    %480 = arith.mulf %478, %479 : vector<8x16xf32>
    %481 = arith.truncf %480 : vector<8x16xf32> to vector<8x16xbf16>
    %482 = vector.extract_strided_slice %460 {offsets = [1, 0, 0], sizes = [1, 16, 16], strides = [1, 1, 1]} : vector<5x16x16xbf16> to vector<1x16x16xbf16>
    %483 = vector.shape_cast %482 : vector<1x16x16xbf16> to vector<16x16xbf16>
    %cst_170 = arith.constant dense<0.000000e+00> : vector<8x16xf32>
    %484 = tpu.matmul %481, %483, %cst_170 {dimension_numbers = #tpu.dot_dimension_numbers<[1], [0], [0], [1], [0, 0, 1, 1], [], []>} : vector<8x16xbf16>, vector<16x16xbf16>, vector<8x16xf32> -> vector<8x16xf32>
    %485 = arith.addf %477, %484 : vector<8x16xf32>
    %486 = vector.broadcast %436 : vector<8x1xf32> to vector<8x16xf32>
    %487 = arith.mulf %400, %486 : vector<8x16xf32>
    %488 = arith.truncf %487 : vector<8x16xf32> to vector<8x16xbf16>
    %489 = vector.extract_strided_slice %460 {offsets = [2, 0, 0], sizes = [1, 16, 16], strides = [1, 1, 1]} : vector<5x16x16xbf16> to vector<1x16x16xbf16>
    %490 = vector.shape_cast %489 : vector<1x16x16xbf16> to vector<16x16xbf16>
    %cst_171 = arith.constant dense<0.000000e+00> : vector<8x16xf32>
    %491 = tpu.matmul %488, %490, %cst_171 {dimension_numbers = #tpu.dot_dimension_numbers<[1], [0], [0], [1], [0, 0, 1, 1], [], []>} : vector<8x16xbf16>, vector<16x16xbf16>, vector<8x16xf32> -> vector<8x16xf32>
    %492 = arith.addf %485, %491 : vector<8x16xf32>
    %c7_i32_172 = arith.constant 7 : i32
    %493 = tpu.dynamic_rotate %400 by %c7_i32_172 dim 0 : vector<8x16xf32>, i32 -> vector<8x16xf32>
    %494 = vector.broadcast %447 : vector<8x1xf32> to vector<8x16xf32>
    %495 = arith.mulf %493, %494 : vector<8x16xf32>
    %496 = arith.truncf %495 : vector<8x16xf32> to vector<8x16xbf16>
    %497 = vector.extract_strided_slice %460 {offsets = [3, 0, 0], sizes = [1, 16, 16], strides = [1, 1, 1]} : vector<5x16x16xbf16> to vector<1x16x16xbf16>
    %498 = vector.shape_cast %497 : vector<1x16x16xbf16> to vector<16x16xbf16>
    %cst_173 = arith.constant dense<0.000000e+00> : vector<8x16xf32>
    %499 = tpu.matmul %496, %498, %cst_173 {dimension_numbers = #tpu.dot_dimension_numbers<[1], [0], [0], [1], [0, 0, 1, 1], [], []>} : vector<8x16xbf16>, vector<16x16xbf16>, vector<8x16xf32> -> vector<8x16xf32>
    %500 = arith.addf %492, %499 : vector<8x16xf32>
    %c6_i32 = arith.constant 6 : i32
    %501 = tpu.dynamic_rotate %400 by %c6_i32 dim 0 : vector<8x16xf32>, i32 -> vector<8x16xf32>
    %502 = vector.broadcast %458 : vector<8x1xf32> to vector<8x16xf32>
    %503 = arith.mulf %501, %502 : vector<8x16xf32>
    %504 = arith.truncf %503 : vector<8x16xf32> to vector<8x16xbf16>
    %505 = vector.extract_strided_slice %460 {offsets = [4, 0, 0], sizes = [1, 16, 16], strides = [1, 1, 1]} : vector<5x16x16xbf16> to vector<1x16x16xbf16>
    %506 = vector.shape_cast %505 : vector<1x16x16xbf16> to vector<16x16xbf16>
    %cst_174 = arith.constant dense<0.000000e+00> : vector<8x16xf32>
    %507 = tpu.matmul %504, %506, %cst_174 {dimension_numbers = #tpu.dot_dimension_numbers<[1], [0], [0], [1], [0, 0, 1, 1], [], []>} : vector<8x16xbf16>, vector<16x16xbf16>, vector<8x16xf32> -> vector<8x16xf32>
    %508 = arith.addf %500, %507 : vector<8x16xf32>
    %cst_175 = arith.constant dense<0.000000e+00> : vector<16xf32>
    %509 = vector.multi_reduction <add>, %508, %cst_175 [0] : vector<8x16xf32> to vector<16xf32>
    %510 = vector.shape_cast %509 : vector<16xf32> to vector<1x16xf32>
    %cst_176 = arith.constant 8.000000e+00 : f32
    %511 = vector.broadcast %cst_176 : f32 to vector<1x16xf32>
    %512 = arith.divf %510, %511 : vector<1x16xf32>
    %513 = vector.broadcast %512 : vector<1x16xf32> to vector<8x16xf32>
    %514 = arith.subf %508, %513 : vector<8x16xf32>
    %515 = arith.mulf %514, %514 : vector<8x16xf32>
    %cst_177 = arith.constant dense<0.000000e+00> : vector<16xf32>
    %516 = vector.multi_reduction <add>, %515, %cst_177 [0] : vector<8x16xf32> to vector<16xf32>
    %517 = vector.shape_cast %516 : vector<16xf32> to vector<1x16xf32>
    %cst_178 = arith.constant 8.000000e+00 : f32
    %518 = vector.broadcast %cst_178 : f32 to vector<1x16xf32>
    %519 = arith.divf %517, %518 : vector<1x16xf32>
    %cst_179 = arith.constant 9.99999974E-5 : f32
    %520 = vector.broadcast %cst_179 : f32 to vector<1x16xf32>
    %521 = arith.addf %519, %520 : vector<1x16xf32>
    %522 = math.rsqrt %521 : vector<1x16xf32>
    %523 = vector.broadcast %522 : vector<1x16xf32> to vector<8x16xf32>
    %524 = arith.mulf %514, %523 : vector<8x16xf32>
    %525 = vector.broadcast %462 : vector<1x16xf32> to vector<8x16xf32>
    %526 = arith.mulf %524, %525 : vector<8x16xf32>
    %527 = vector.broadcast %464 : vector<1x16xf32> to vector<8x16xf32>
    %528 = arith.addf %526, %527 : vector<8x16xf32>
    %cst_180 = arith.constant 0.000000e+00 : f32
    %529 = vector.broadcast %cst_180 : f32 to vector<8x16xf32>
    %530 = arith.cmpf oge, %528, %529 : vector<8x16xf32>
    %cst_181 = arith.constant 0.00999999977 : f32
    %531 = vector.broadcast %cst_181 : f32 to vector<8x16xf32>
    %532 = arith.mulf %531, %528 : vector<8x16xf32>
    %533 = arith.select %530, %528, %532 : vector<8x16xi1>, vector<8x16xf32>
    %c2_i32_182 = arith.constant 2 : i32
    %534 = tpu.dynamic_rotate %533 by %c2_i32_182 dim 0 : vector<8x16xf32>, i32 -> vector<8x16xf32>
    %535 = vector.broadcast %414 : vector<8x1xf32> to vector<8x16xf32>
    %536 = arith.mulf %534, %535 : vector<8x16xf32>
    %537 = arith.truncf %536 : vector<8x16xf32> to vector<8x16xbf16>
    %538 = vector.extract_strided_slice %466 {offsets = [0, 0, 0], sizes = [1, 16, 16], strides = [1, 1, 1]} : vector<5x16x16xbf16> to vector<1x16x16xbf16>
    %539 = vector.shape_cast %538 : vector<1x16x16xbf16> to vector<16x16xbf16>
    %cst_183 = arith.constant dense<0.000000e+00> : vector<8x16xf32>
    %540 = tpu.matmul %537, %539, %cst_183 {dimension_numbers = #tpu.dot_dimension_numbers<[1], [0], [0], [1], [0, 0, 1, 1], [], []>} : vector<8x16xbf16>, vector<16x16xbf16>, vector<8x16xf32> -> vector<8x16xf32>
    %c1_i32_184 = arith.constant 1 : i32
    %541 = tpu.dynamic_rotate %533 by %c1_i32_184 dim 0 : vector<8x16xf32>, i32 -> vector<8x16xf32>
    %542 = vector.broadcast %425 : vector<8x1xf32> to vector<8x16xf32>
    %543 = arith.mulf %541, %542 : vector<8x16xf32>
    %544 = arith.truncf %543 : vector<8x16xf32> to vector<8x16xbf16>
    %545 = vector.extract_strided_slice %466 {offsets = [1, 0, 0], sizes = [1, 16, 16], strides = [1, 1, 1]} : vector<5x16x16xbf16> to vector<1x16x16xbf16>
    %546 = vector.shape_cast %545 : vector<1x16x16xbf16> to vector<16x16xbf16>
    %cst_185 = arith.constant dense<0.000000e+00> : vector<8x16xf32>
    %547 = tpu.matmul %544, %546, %cst_185 {dimension_numbers = #tpu.dot_dimension_numbers<[1], [0], [0], [1], [0, 0, 1, 1], [], []>} : vector<8x16xbf16>, vector<16x16xbf16>, vector<8x16xf32> -> vector<8x16xf32>
    %548 = arith.addf %540, %547 : vector<8x16xf32>
    %549 = vector.broadcast %436 : vector<8x1xf32> to vector<8x16xf32>
    %550 = arith.mulf %533, %549 : vector<8x16xf32>
    %551 = arith.truncf %550 : vector<8x16xf32> to vector<8x16xbf16>
    %552 = vector.extract_strided_slice %466 {offsets = [2, 0, 0], sizes = [1, 16, 16], strides = [1, 1, 1]} : vector<5x16x16xbf16> to vector<1x16x16xbf16>
    %553 = vector.shape_cast %552 : vector<1x16x16xbf16> to vector<16x16xbf16>
    %cst_186 = arith.constant dense<0.000000e+00> : vector<8x16xf32>
    %554 = tpu.matmul %551, %553, %cst_186 {dimension_numbers = #tpu.dot_dimension_numbers<[1], [0], [0], [1], [0, 0, 1, 1], [], []>} : vector<8x16xbf16>, vector<16x16xbf16>, vector<8x16xf32> -> vector<8x16xf32>
    %555 = arith.addf %548, %554 : vector<8x16xf32>
    %c7_i32_187 = arith.constant 7 : i32
    %556 = tpu.dynamic_rotate %533 by %c7_i32_187 dim 0 : vector<8x16xf32>, i32 -> vector<8x16xf32>
    %557 = vector.broadcast %447 : vector<8x1xf32> to vector<8x16xf32>
    %558 = arith.mulf %556, %557 : vector<8x16xf32>
    %559 = arith.truncf %558 : vector<8x16xf32> to vector<8x16xbf16>
    %560 = vector.extract_strided_slice %466 {offsets = [3, 0, 0], sizes = [1, 16, 16], strides = [1, 1, 1]} : vector<5x16x16xbf16> to vector<1x16x16xbf16>
    %561 = vector.shape_cast %560 : vector<1x16x16xbf16> to vector<16x16xbf16>
    %cst_188 = arith.constant dense<0.000000e+00> : vector<8x16xf32>
    %562 = tpu.matmul %559, %561, %cst_188 {dimension_numbers = #tpu.dot_dimension_numbers<[1], [0], [0], [1], [0, 0, 1, 1], [], []>} : vector<8x16xbf16>, vector<16x16xbf16>, vector<8x16xf32> -> vector<8x16xf32>
    %563 = arith.addf %555, %562 : vector<8x16xf32>
    %c6_i32_189 = arith.constant 6 : i32
    %564 = tpu.dynamic_rotate %533 by %c6_i32_189 dim 0 : vector<8x16xf32>, i32 -> vector<8x16xf32>
    %565 = vector.broadcast %458 : vector<8x1xf32> to vector<8x16xf32>
    %566 = arith.mulf %564, %565 : vector<8x16xf32>
    %567 = arith.truncf %566 : vector<8x16xf32> to vector<8x16xbf16>
    %568 = vector.extract_strided_slice %466 {offsets = [4, 0, 0], sizes = [1, 16, 16], strides = [1, 1, 1]} : vector<5x16x16xbf16> to vector<1x16x16xbf16>
    %569 = vector.shape_cast %568 : vector<1x16x16xbf16> to vector<16x16xbf16>
    %cst_190 = arith.constant dense<0.000000e+00> : vector<8x16xf32>
    %570 = tpu.matmul %567, %569, %cst_190 {dimension_numbers = #tpu.dot_dimension_numbers<[1], [0], [0], [1], [0, 0, 1, 1], [], []>} : vector<8x16xbf16>, vector<16x16xbf16>, vector<8x16xf32> -> vector<8x16xf32>
    %571 = arith.addf %563, %570 : vector<8x16xf32>
    %cst_191 = arith.constant dense<0.000000e+00> : vector<16xf32>
    %572 = vector.multi_reduction <add>, %571, %cst_191 [0] : vector<8x16xf32> to vector<16xf32>
    %573 = vector.shape_cast %572 : vector<16xf32> to vector<1x16xf32>
    %cst_192 = arith.constant 8.000000e+00 : f32
    %574 = vector.broadcast %cst_192 : f32 to vector<1x16xf32>
    %575 = arith.divf %573, %574 : vector<1x16xf32>
    %576 = vector.broadcast %575 : vector<1x16xf32> to vector<8x16xf32>
    %577 = arith.subf %571, %576 : vector<8x16xf32>
    %578 = arith.mulf %577, %577 : vector<8x16xf32>
    %cst_193 = arith.constant dense<0.000000e+00> : vector<16xf32>
    %579 = vector.multi_reduction <add>, %578, %cst_193 [0] : vector<8x16xf32> to vector<16xf32>
    %580 = vector.shape_cast %579 : vector<16xf32> to vector<1x16xf32>
    %cst_194 = arith.constant 8.000000e+00 : f32
    %581 = vector.broadcast %cst_194 : f32 to vector<1x16xf32>
    %582 = arith.divf %580, %581 : vector<1x16xf32>
    %cst_195 = arith.constant 9.99999974E-5 : f32
    %583 = vector.broadcast %cst_195 : f32 to vector<1x16xf32>
    %584 = arith.addf %582, %583 : vector<1x16xf32>
    %585 = math.rsqrt %584 : vector<1x16xf32>
    %586 = vector.broadcast %585 : vector<1x16xf32> to vector<8x16xf32>
    %587 = arith.mulf %577, %586 : vector<8x16xf32>
    %588 = vector.broadcast %468 : vector<1x16xf32> to vector<8x16xf32>
    %589 = arith.mulf %587, %588 : vector<8x16xf32>
    %590 = vector.broadcast %470 : vector<1x16xf32> to vector<8x16xf32>
    %591 = arith.addf %589, %590 : vector<8x16xf32>
    %592 = arith.addf %591, %400 : vector<8x16xf32>
    %cst_196 = arith.constant 0.000000e+00 : f32
    %593 = vector.broadcast %cst_196 : f32 to vector<8x16xf32>
    %594 = arith.cmpf oge, %592, %593 : vector<8x16xf32>
    %cst_197 = arith.constant 0.00999999977 : f32
    %595 = vector.broadcast %cst_197 : f32 to vector<8x16xf32>
    %596 = arith.mulf %595, %592 : vector<8x16xf32>
    %597 = arith.select %594, %592, %596 : vector<8x16xi1>, vector<8x16xf32>
    %598 = vector.shape_cast %597 : vector<8x16xf32> to vector<2x4x16xf32>
    %cst_198 = arith.constant dense<0.000000e+00> : vector<2x16xf32>
    %599 = vector.multi_reduction <add>, %598, %cst_198 [1] : vector<2x4x16xf32> to vector<2x16xf32>
    %cst_199 = arith.constant 4.000000e+00 : f32
    %600 = vector.broadcast %cst_199 : f32 to vector<2x16xf32>
    %601 = arith.divf %599, %600 : vector<2x16xf32>
    %602 = arith.truncf %601 : vector<2x16xf32> to vector<2x16xbf16>
    %c0_200 = arith.constant 0 : index
    %c0_201 = arith.constant 0 : index
    %603 = vector.load %arg13[%c0_200, %c0_201] : memref<16x3xbf16, #tpu.memory_space<vmem>>, vector<16x3xbf16>
    %cst_202 = arith.constant dense<0.000000e+00> : vector<2x3xf32>
    %604 = tpu.matmul %602, %603, %cst_202 {dimension_numbers = #tpu.dot_dimension_numbers<[1], [0], [0], [1], [0, 0, 1, 1], [], []>} : vector<2x16xbf16>, vector<16x3xbf16>, vector<2x3xf32> -> vector<2x3xf32>
    %c0_203 = arith.constant 0 : index
    %c0_204 = arith.constant 0 : index
    %605 = vector.load %arg14[%c0_203, %c0_204] : memref<1x3xf32, #tpu.memory_space<vmem>>, vector<1x3xf32>
    %606 = vector.broadcast %605 : vector<1x3xf32> to vector<2x3xf32>
    %607 = arith.addf %604, %606 : vector<2x3xf32>
    %c0_205 = arith.constant 0 : index
    %c0_206 = arith.constant 0 : index
    %608 = vector.load %arg15[%c0_205, %c0_206] : memref<2x3xf32, #tpu.memory_space<vmem>>, vector<2x3xf32>
    tpu.vector_store %arg15[%c0_205, %c0_206], %607 {strides = array<i32>} : memref<2x3xf32, #tpu.memory_space<vmem>>, vector<2x3xf32>,
    return
  }
}

</mosaic_0001>

<llo_original>
// kernel: resnet_forward.1
$region0: #{resnet_forward.1}
  #allocation0 [shape = 'u32[]', space=smem, size = 0x4, offset = 0x4, fixed_abs, tag = 'smem constant byte address 0x4 - core index']
  #allocation1 [shape = 'u32[144,128]{1,0:T(1,128)}', space=vmem, size = 0x12000, scoped, tag = 'internal scratch']
  %s0 = inlined_call_operand.vmem [shape: f32[2,16,4], index: 0, kind: input, shape index: {}]
  %s1 = inlined_call_operand.vmem [shape: bf16[5,4,16], index: 1, kind: input, shape index: {}]
  %s2 = inlined_call_operand.vmem [shape: f32[1,16], index: 2, kind: input, shape index: {}]
  %s3 = inlined_call_operand.vmem [shape: f32[1,16], index: 3, kind: input, shape index: {}]
  %s4 = inlined_call_operand.vmem [shape: bf16[5,16,16], index: 4, kind: input, shape index: {}]
  %s5 = inlined_call_operand.vmem [shape: f32[1,16], index: 5, kind: input, shape index: {}]
  %s6 = inlined_call_operand.vmem [shape: f32[1,16], index: 6, kind: input, shape index: {}]
  %s7 = inlined_call_operand.vmem [shape: bf16[2,5,16,16], index: 7, kind: input, shape index: {}]
  %s8 = inlined_call_operand.vmem [shape: f32[2,1,16], index: 8, kind: input, shape index: {}]
  %s9 = inlined_call_operand.vmem [shape: f32[2,1,16], index: 9, kind: input, shape index: {}]
  %s10 = inlined_call_operand.vmem [shape: bf16[2,5,16,16], index: 10, kind: input, shape index: {}]
  %s11 = inlined_call_operand.vmem [shape: f32[2,1,16], index: 11, kind: input, shape index: {}]
  %s12 = inlined_call_operand.vmem [shape: f32[2,1,16], index: 12, kind: input, shape index: {}]
  %s13 = inlined_call_operand.vmem [shape: bf16[16,3], index: 13, kind: input, shape index: {}]
  %s14 = inlined_call_operand.vmem [shape: f32[1,3], index: 14, kind: input, shape index: {}]
  %s15 = inlined_call_operand.hbm [shape: f32[2,3], index: 15, kind: output, shape index: {}]
  %s16 = sld [smem:[#allocation0]]
  $region70: #{resnet_forward.1} parent=0
    _
  %s18 = ssub.s32 1, %s16
  %s19 = scalar_select 0, %s18, %s16
  $region1: #{resnet_forward.1} parent=0
    #allocation2 [shape = 'u8[1024]{0}', space=vmem, size = 0x400, scoped, tag = 'output window, operand 0, single buffered']
    #allocation3 [shape = 's32[1]{0}', space=sflag, size = 0x4, scoped, tag = 'scoped memory for resnet_forward.1']
    %20 = vsyncpa [#allocation3], 0
    // Predicated region
    $region2: #{resnet_forward.1} parent=1 // pred_check
      _
    $region3: #{resnet_forward.1} parent=1 // pred_check_branch
      %22 = sbr.rel (0) target = $region5
    $region4: #{resnet_forward.1} parent=1 // pred_region
      _
    $region5: #{resnet_forward.1} parent=1 // pred_fallthru
      _
    // Predicated region
    $region6: #{resnet_forward.1} parent=1 // pred_check
      _
    $region7: #{resnet_forward.1} parent=1 // pred_check_branch
      %24 = sbr.rel (0) target = $region9
    $region8: #{resnet_forward.1} parent=1 // pred_region
      _
    $region9: #{resnet_forward.1} parent=1 // pred_fallthru
      _
    // Predicated region
    $region10: #{resnet_forward.1} parent=1 // pred_check
      _
    $region11: #{resnet_forward.1} parent=1 // pred_check_branch
      %26 = sbr.rel (0) target = $region13
    $region12: #{resnet_forward.1} parent=1 // pred_region
      _
    $region13: #{resnet_forward.1} parent=1 // pred_fallthru
      _
    // Predicated region
    $region14: #{resnet_forward.1} parent=1 // pred_check
      _
    $region15: #{resnet_forward.1} parent=1 // pred_check_branch
      %28 = sbr.rel (0) target = $region17
    $region16: #{resnet_forward.1} parent=1 // pred_region
      _
    $region17: #{resnet_forward.1} parent=1 // pred_fallthru
      _
    // Predicated region
    $region18: #{resnet_forward.1} parent=1 // pred_check
      _
    $region19: #{resnet_forward.1} parent=1 // pred_check_branch
      %30 = sbr.rel (0) target = $region21
    $region20: #{resnet_forward.1} parent=1 // pred_region
      _
    $region21: #{resnet_forward.1} parent=1 // pred_fallthru
      _
    // Predicated region
    $region22: #{resnet_forward.1} parent=1 // pred_check
      _
    $region23: #{resnet_forward.1} parent=1 // pred_check_branch
      %32 = sbr.rel (0) target = $region25
    $region24: #{resnet_forward.1} parent=1 // pred_region
      _
    $region25: #{resnet_forward.1} parent=1 // pred_fallthru
      _
    // Predicated region
    $region26: #{resnet_forward.1} parent=1 // pred_check
      _
    $region27: #{resnet_forward.1} parent=1 // pred_check_branch
      %34 = sbr.rel (0) target = $region29
    $region28: #{resnet_forward.1} parent=1 // pred_region
      _
    $region29: #{resnet_forward.1} parent=1 // pred_fallthru
      _
    // Predicated region
    $region30: #{resnet_forward.1} parent=1 // pred_check
      _
    $region31: #{resnet_forward.1} parent=1 // pred_check_branch
      %36 = sbr.rel (0) target = $region33
    $region32: #{resnet_forward.1} parent=1 // pred_region
      _
    $region33: #{resnet_forward.1} parent=1 // pred_fallthru
      _
    // Predicated region
    $region34: #{resnet_forward.1} parent=1 // pred_check
      _
    $region35: #{resnet_forward.1} parent=1 // pred_check_branch
      %38 = sbr.rel (0) target = $region37
    $region36: #{resnet_forward.1} parent=1 // pred_region
      _
    $region37: #{resnet_forward.1} parent=1 // pred_fallthru
      _
    // Predicated region
    $region38: #{resnet_forward.1} parent=1 // pred_check
      _
    $region39: #{resnet_forward.1} parent=1 // pred_check_branch
      %40 = sbr.rel (0) target = $region41
    $region40: #{resnet_forward.1} parent=1 // pred_region
      _
    $region41: #{resnet_forward.1} parent=1 // pred_fallthru
      _
    // Predicated region
    $region42: #{resnet_forward.1} parent=1 // pred_check
      _
    $region43: #{resnet_forward.1} parent=1 // pred_check_branch
      %42 = sbr.rel (0) target = $region45
    $region44: #{resnet_forward.1} parent=1 // pred_region
      _
    $region45: #{resnet_forward.1} parent=1 // pred_fallthru
      _
    // Predicated region
    $region46: #{resnet_forward.1} parent=1 // pred_check
      _
    $region47: #{resnet_forward.1} parent=1 // pred_check_branch
      %44 = sbr.rel (0) target = $region49
    $region48: #{resnet_forward.1} parent=1 // pred_region
      _
    $region49: #{resnet_forward.1} parent=1 // pred_fallthru
      _
    // Predicated region
    $region50: #{resnet_forward.1} parent=1 // pred_check
      _
    $region51: #{resnet_forward.1} parent=1 // pred_check_branch
      %46 = sbr.rel (0) target = $region53
    $region52: #{resnet_forward.1} parent=1 // pred_region
      _
    $region53: #{resnet_forward.1} parent=1 // pred_fallthru
      _
    // Predicated region
    $region54: #{resnet_forward.1} parent=1 // pred_check
      _
    $region55: #{resnet_forward.1} parent=1 // pred_check_branch
      %48 = sbr.rel (0) target = $region57
    $region56: #{resnet_forward.1} parent=1 // pred_region
      _
    $region57: #{resnet_forward.1} parent=1 // pred_fallthru
      _
    // Predicated region
    $region58: #{resnet_forward.1} parent=1 // pred_check
      _
    $region59: #{resnet_forward.1} parent=1 // pred_check_branch
      %50 = sbr.rel (0) target = $region61
    $region60: #{resnet_forward.1} parent=1 // pred_region
      _
    $region61: #{resnet_forward.1} parent=1 // pred_fallthru
      _
    %v52 = vld [vmem:[%s0] sm:$0xff]
    %v53 = vld [vmem:[%s0 + $0x8] sm:$0xff]
    %v54 = vld [vmem:[%s0 + $0x10] sm:$0xff]
    %v55 = vld [vmem:[%s0 + $0x18] sm:$0xff]
    %v56 = vlaneseq
    %v57 = vshrl.u32 %v56, 7
    %v58 = vadd.s32 %v57, 8
    %v59 = vadd.s32 %v57, 16
    %v60 = vadd.s32 %v57, 24
    %v61 = vand.u32 %v57, 15
    %v62 = vand.u32 %v58, 15
    %v63 = vand.u32 %v59, 15
    %v64 = vand.u32 %v60, 15
    %v65 = vadd.s32 %v61, 4294967294
    %v66 = vadd.s32 %v62, 4294967294
    %v67 = vadd.s32 %v63, 4294967294
    %v68 = vadd.s32 %v64, 4294967294
    %vm69 = vcmp.ge.s32.totalorder %v65, 0
    %vm70 = vcmp.ge.s32.totalorder %v66, 0
    %vm71 = vcmp.ge.s32.totalorder %v67, 0
    %vm72 = vcmp.ge.s32.totalorder %v68, 0
    %vm73 = vcmp.lt.s32.totalorder %v65, 16
    %vm74 = vcmp.lt.s32.totalorder %v66, 16
    %vm75 = vcmp.lt.s32.totalorder %v67, 16
    %vm76 = vcmp.lt.s32.totalorder %v68, 16
    %vm77 = vmand %vm69, %vm73
    %vm78 = vmand %vm70, %vm74
    %vm79 = vmand %vm71, %vm75
    %vm80 = vmand %vm72, %vm76
    %v81 = vsel %vm77, 1, 0
    %v82 = vsel %vm78, 1, 0
    %v83 = vsel %vm79, 1, 0
    %v84 = vsel %vm80, 1, 0
    %v85 = vcvt.s32.f32 %v81
    %v86 = vcvt.s32.f32 %v82
    %v87 = vcvt.s32.f32 %v83
    %v88 = vcvt.s32.f32 %v84
    %v89 = vadd.s32 %v61, 4294967295
    %v90 = vadd.s32 %v62, 4294967295
    %v91 = vadd.s32 %v63, 4294967295
    %v92 = vadd.s32 %v64, 4294967295
    %vm93 = vcmp.ge.s32.totalorder %v89, 0
    %vm94 = vcmp.ge.s32.totalorder %v90, 0
    %vm95 = vcmp.ge.s32.totalorder %v91, 0
    %vm96 = vcmp.ge.s32.totalorder %v92, 0
    %vm97 = vcmp.lt.s32.totalorder %v89, 16
    %vm98 = vcmp.lt.s32.totalorder %v90, 16
    %vm99 = vcmp.lt.s32.totalorder %v91, 16
    %vm100 = vcmp.lt.s32.totalorder %v92, 16
    %vm101 = vmand %vm93, %vm97
    %vm102 = vmand %vm94, %vm98
    %vm103 = vmand %vm95, %vm99
    %vm104 = vmand %vm96, %vm100
    %v105 = vsel %vm101, 1, 0
    %v106 = vsel %vm102, 1, 0
    %v107 = vsel %vm103, 1, 0
    %v108 = vsel %vm104, 1, 0
    %v109 = vcvt.s32.f32 %v105
    %v110 = vcvt.s32.f32 %v106
    %v111 = vcvt.s32.f32 %v107
    %v112 = vcvt.s32.f32 %v108
    %vm113 = vcmp.ge.s32.totalorder %v61, 0
    %vm114 = vcmp.ge.s32.totalorder %v62, 0
    %vm115 = vcmp.ge.s32.totalorder %v63, 0
    %vm116 = vcmp.ge.s32.totalorder %v64, 0
    %vm117 = vcmp.lt.s32.totalorder %v61, 16
    %vm118 = vcmp.lt.s32.totalorder %v62, 16
    %vm119 = vcmp.lt.s32.totalorder %v63, 16
    %vm120 = vcmp.lt.s32.totalorder %v64, 16
    %vm121 = vmand %vm113, %vm117
    %vm122 = vmand %vm114, %vm118
    %vm123 = vmand %vm115, %vm119
    %vm124 = vmand %vm116, %vm120
    %v125 = vsel %vm121, 1, 0
    %v126 = vsel %vm122, 1, 0
    %v127 = vsel %vm123, 1, 0
    %v128 = vsel %vm124, 1, 0
    %v129 = vcvt.s32.f32 %v125
    %v130 = vcvt.s32.f32 %v126
    %v131 = vcvt.s32.f32 %v127
    %v132 = vcvt.s32.f32 %v128
    %v133 = vadd.s32 %v61, 1
    %v134 = vadd.s32 %v62, 1
    %v135 = vadd.s32 %v63, 1
    %v136 = vadd.s32 %v64, 1
    %vm137 = vcmp.ge.s32.totalorder %v133, 0
    %vm138 = vcmp.ge.s32.totalorder %v134, 0
    %vm139 = vcmp.ge.s32.totalorder %v135, 0
    %vm140 = vcmp.ge.s32.totalorder %v136, 0
    %vm141 = vcmp.lt.s32.totalorder %v133, 16
    %vm142 = vcmp.lt.s32.totalorder %v134, 16
    %vm143 = vcmp.lt.s32.totalorder %v135, 16
    %vm144 = vcmp.lt.s32.totalorder %v136, 16
    %vm145 = vmand %vm137, %vm141
    %vm146 = vmand %vm138, %vm142
    %vm147 = vmand %vm139, %vm143
    %vm148 = vmand %vm140, %vm144
    %v149 = vsel %vm145, 1, 0
    %v150 = vsel %vm146, 1, 0
    %v151 = vsel %vm147, 1, 0
    %v152 = vsel %vm148, 1, 0
    %v153 = vcvt.s32.f32 %v149
    %v154 = vcvt.s32.f32 %v150
    %v155 = vcvt.s32.f32 %v151
    %v156 = vcvt.s32.f32 %v152
    %v157 = vadd.s32 %v61, 2
    %v158 = vadd.s32 %v62, 2
    %v159 = vadd.s32 %v63, 2
    %v160 = vadd.s32 %v64, 2
    %vm161 = vcmp.ge.s32.totalorder %v157, 0
    %vm162 = vcmp.ge.s32.totalorder %v158, 0
    %vm163 = vcmp.ge.s32.totalorder %v159, 0
    %vm164 = vcmp.ge.s32.totalorder %v160, 0
    %vm165 = vcmp.lt.s32.totalorder %v157, 16
    %vm166 = vcmp.lt.s32.totalorder %v158, 16
    %vm167 = vcmp.lt.s32.totalorder %v159, 16
    %vm168 = vcmp.lt.s32.totalorder %v160, 16
    %vm169 = vmand %vm161, %vm165
    %vm170 = vmand %vm162, %vm166
    %vm171 = vmand %vm163, %vm167
    %vm172 = vmand %vm164, %vm168
    %v173 = vsel %vm169, 1, 0
    %v174 = vsel %vm170, 1, 0
    %v175 = vsel %vm171, 1, 0
    %v176 = vsel %vm172, 1, 0
    %v177 = vcvt.s32.f32 %v173
    %v178 = vcvt.s32.f32 %v174
    %v179 = vcvt.s32.f32 %v175
    %v180 = vcvt.s32.f32 %v176
    %v181 = vld [vmem:[%s1] sm:$0x3]
    %v182 = vld [vmem:[%s1 + $0x2] sm:$0x3]
    %v183 = vld [vmem:[%s1 + $0x4] sm:$0x3]
    %v184 = vld [vmem:[%s1 + $0x6] sm:$0x3]
    %v185 = vld [vmem:[%s1 + $0x8] sm:$0x3]
    %v186 = vld [vmem:[%s2] sm:$0x1]
    %v187 = vld [vmem:[%s3] sm:$0x1]
    %v188 = vld [vmem:[%s4] sm:$0xf]
    %v189 = vld [vmem:[%s4 + $0x4] sm:$0xf]
    %v190 = vld [vmem:[%s4 + $0x8] sm:$0xf]
    %v191 = vld [vmem:[%s4 + $0xc] sm:$0xf]
    %v192 = vld [vmem:[%s4 + $0x10] sm:$0xf]
    %v193 = vld [vmem:[%s4 + $0x14] sm:$0xf]
    %v194 = vld [vmem:[%s4 + $0x18] sm:$0xf]
    %v195 = vld [vmem:[%s4 + $0x1c] sm:$0xf]
    %v196 = vld [vmem:[%s4 + $0x20] sm:$0xf]
    %v197 = vld [vmem:[%s4 + $0x24] sm:$0xf]
    %v198 = vld [vmem:[%s5] sm:$0x1]
    %v199 = vld [vmem:[%s6] sm:$0x1]
    %v200 = vrot.slane %v52, 6
    %v201 = vrot.slane %v53, 6
    %v202 = vrot.slane %v54, 6
    %v203 = vrot.slane %v55, 6
    %vm204 = vcmp.lt.s32.totalorder %v57, 2
    %v205 = vsel %vm204, %v202, %v203
    %v206 = vsel %vm204, %v201, %v202
    %v207 = vsel %vm204, %v200, %v201
    %v208 = vsel %vm204, %v203, %v200
    %v209 = vmul.f32 %v208, %v85
    %v210 = vmul.f32 %v207, %v86
    %v211 = vmul.f32 %v206, %v87
    %v212 = vmul.f32 %v205, %v88
    %v213 = vpack.c.bf16 %v210, %v209
    %v214 = vpack.c.bf16 %v212, %v211
    %v215 = vrot.slane %v52, 7
    %v216 = vrot.slane %v53, 7
    %v217 = vrot.slane %v54, 7
    %v218 = vrot.slane %v55, 7
    %vm219 = vcmp.lt.s32.totalorder %v57, 1
    %v220 = vsel %vm219, %v217, %v218
    %v221 = vsel %vm219, %v216, %v217
    %v222 = vsel %vm219, %v215, %v216
    %v223 = vsel %vm219, %v218, %v215
    %v224 = vmul.f32 %v223, %v109
    %v225 = vmul.f32 %v222, %v110
    %v226 = vmul.f32 %v221, %v111
    %v227 = vmul.f32 %v220, %v112
    %v228 = vpack.c.bf16 %v225, %v224
    %v229 = vpack.c.bf16 %v227, %v226
    %vm230 = vcmask 31744
    %v232 = vsel %vm230, %v228, 0
    %v235 = vsel %vm230, %v229, 0
    %vm237 = vcmask 1041408
    %v239 = vsel %vm237, %v182, 0
    %241 = vmatprep.subr.bf16.mxu0 0
    %242 = vmatpush1.bf16.msra.mxu0 %v239
    %243 = vmatprep.subr.bf16.mxu0 0
    %244 = vmatpush1.bf16.msra.mxu0 0
    %245 = vmatprep.subr.bf16.mxu0 0
    %246 = vmatpush1.bf16.msra.mxu0 0
    %247 = vmatprep.subr.bf16.mxu0 0
    %248 = vmatpush1.bf16.msra.mxu0 0
    %249 = vmatprep.subr.bf16.mxu0 0
    %250 = vmatpush1.bf16.msra.mxu0 0
    %251 = vmatprep.subr.bf16.mxu0 0
    %252 = vmatpush1.bf16.msra.mxu0 0
    %253 = vmatprep.subr.bf16.mxu0 0
    %254 = vmatpush1.bf16.msra.mxu0 0
    %255 = vmatprep.subr.bf16.mxu0 0
    %256 = vmatpush1.bf16.msra.mxu0 0
    %257 = vmatprep.subr.bf16.mxu0 0
    %258 = vmatpush1.bf16.msra.mxu0 0
    %259 = vmatprep.subr.bf16.mxu0 0
    %260 = vmatpush1.bf16.msra.mxu0 0
    %261 = vmatprep.subr.bf16.mxu0 0
    %262 = vmatpush1.bf16.msra.mxu0 0
    %263 = vmatprep.subr.bf16.mxu0 0
    %264 = vmatpush1.bf16.msra.mxu0 0
    %265 = vmatprep.subr.bf16.mxu0 0
    %266 = vmatpush1.bf16.msra.mxu0 0
    %267 = vmatprep.subr.bf16.mxu0 0
    %268 = vmatpush1.bf16.msra.mxu0 0
    %269 = vmatprep.subr.bf16.mxu0 0
    %270 = vmatpush1.bf16.msra.mxu0 0
    %271 = vmatprep.subr.bf16.mxu0 0
    %272 = vmatpush1.bf16.msra.mxu0 0
    %273 = vmatprep.mubr.bf16.mxu0 0
    %274 = vmatmul.mubr.bf16.gmra.mrb[0].mxu0 %v232
    %v275 = vpop.f32.mrb[0].mxu0
    %v276 = vadd.f32 0.0, %v275
    %v277 = vpop.f32.mrb[0].mxu0
    %v278 = vpop.f32.mrb[0].mxu0
    %v279 = vadd.f32 0.0, %v278
    %v280 = vpop.f32.mrb[0].mxu0
    %281 = vmatprep.mubr.bf16.mxu0 0
    %282 = vmatmul.mubr.bf16.gmra.mrb[0].mxu0 %v235
    %v283 = vpop.f32.mrb[0].mxu0
    %v284 = vadd.f32 0.0, %v283
    %v285 = vpop.f32.mrb[0].mxu0
    %v286 = vpop.f32.mrb[0].mxu0
    %v287 = vadd.f32 0.0, %v286
    %v288 = vpop.f32.mrb[0].mxu0
    %289 = vdwg.mxu0
    %v291 = vsel %vm230, %v213, 0
    %v294 = vsel %vm230, %v214, 0
    %v297 = vsel %vm237, %v181, 0
    %299 = vmatprep.subr.bf16.mxu0 0
    %300 = vmatpush1.bf16.msra.mxu0 %v297
    %301 = vmatprep.subr.bf16.mxu0 0
    %302 = vmatpush1.bf16.msra.mxu0 0
    %303 = vmatprep.subr.bf16.mxu0 0
    %304 = vmatpush1.bf16.msra.mxu0 0
    %305 = vmatprep.subr.bf16.mxu0 0
    %306 = vmatpush1.bf16.msra.mxu0 0
    %307 = vmatprep.subr.bf16.mxu0 0
    %308 = vmatpush1.bf16.msra.mxu0 0
    %309 = vmatprep.subr.bf16.mxu0 0
    %310 = vmatpush1.bf16.msra.mxu0 0
    %311 = vmatprep.subr.bf16.mxu0 0
    %312 = vmatpush1.bf16.msra.mxu0 0
    %313 = vmatprep.subr.bf16.mxu0 0
    %314 = vmatpush1.bf16.msra.mxu0 0
    %315 = vmatprep.subr.bf16.mxu0 0
    %316 = vmatpush1.bf16.msra.mxu0 0
    %317 = vmatprep.subr.bf16.mxu0 0
    %318 = vmatpush1.bf16.msra.mxu0 0
    %319 = vmatprep.subr.bf16.mxu0 0
    %320 = vmatpush1.bf16.msra.mxu0 0
    %321 = vmatprep.subr.bf16.mxu0 0
    %322 = vmatpush1.bf16.msra.mxu0 0
    %323 = vmatprep.subr.bf16.mxu0 0
    %324 = vmatpush1.bf16.msra.mxu0 0
    %325 = vmatprep.subr.bf16.mxu0 0
    %326 = vmatpush1.bf16.msra.mxu0 0
    %327 = vmatprep.subr.bf16.mxu0 0
    %328 = vmatpush1.bf16.msra.mxu0 0
    %329 = vmatprep.subr.bf16.mxu0 0
    %330 = vmatpush1.bf16.msra.mxu0 0
    %331 = vmatprep.mubr.bf16.mxu0 0
    %332 = vmatmul.mubr.bf16.gmra.mrb[0].mxu0 %v291
    %v333 = vpop.f32.mrb[0].mxu0
    %v334 = vadd.f32 %v276, %v333
    %v335 = vpop.f32.mrb[0].mxu0
    %v336 = vpop.f32.mrb[0].mxu0
    %v337 = vadd.f32 %v279, %v336
    %v338 = vpop.f32.mrb[0].mxu0
    %339 = vmatprep.mubr.bf16.mxu0 0
    %340 = vmatmul.mubr.bf16.gmra.mrb[0].mxu0 %v294
    %v341 = vpop.f32.mrb[0].mxu0
    %v342 = vadd.f32 %v284, %v341
    %v343 = vpop.f32.mrb[0].mxu0
    %v344 = vpop.f32.mrb[0].mxu0
    %v345 = vadd.f32 %v287, %v344
    %v346 = vpop.f32.mrb[0].mxu0
    %347 = vdwg.mxu0
    %v348 = vmul.f32 %v52, %v129
    %v349 = vmul.f32 %v53, %v130
    %v350 = vmul.f32 %v54, %v131
    %v351 = vmul.f32 %v55, %v132
    %v352 = vpack.c.bf16 %v349, %v348
    %v353 = vpack.c.bf16 %v351, %v350
    %v355 = vsel %vm230, %v352, 0
    %v358 = vsel %vm230, %v353, 0
    %v361 = vsel %vm237, %v183, 0
    %363 = vmatprep.subr.bf16.mxu0 0
    %364 = vmatpush1.bf16.msra.mxu0 %v361
    %365 = vmatprep.subr.bf16.mxu0 0
    %366 = vmatpush1.bf16.msra.mxu0 0
    %367 = vmatprep.subr.bf16.mxu0 0
    %368 = vmatpush1.bf16.msra.mxu0 0
    %369 = vmatprep.subr.bf16.mxu0 0
    %370 = vmatpush1.bf16.msra.mxu0 0
    %371 = vmatprep.subr.bf16.mxu0 0
    %372 = vmatpush1.bf16.msra.mxu0 0
    %373 = vmatprep.subr.bf16.mxu0 0
    %374 = vmatpush1.bf16.msra.mxu0 0
    %375 = vmatprep.subr.bf16.mxu0 0
    %376 = vmatpush1.bf16.msra.mxu0 0
    %377 = vmatprep.subr.bf16.mxu0 0
    %378 = vmatpush1.bf16.msra.mxu0 0
    %379 = vmatprep.subr.bf16.mxu0 0
    %380 = vmatpush1.bf16.msra.mxu0 0
    %381 = vmatprep.subr.bf16.mxu0 0
    %382 = vmatpush1.bf16.msra.mxu0 0
    %383 = vmatprep.subr.bf16.mxu0 0
    %384 = vmatpush1.bf16.msra.mxu0 0
    %385 = vmatprep.subr.bf16.mxu0 0
    %386 = vmatpush1.bf16.msra.mxu0 0
    %387 = vmatprep.subr.bf16.mxu0 0
    %388 = vmatpush1.bf16.msra.mxu0 0
    %389 = vmatprep.subr.bf16.mxu0 0
    %390 = vmatpush1.bf16.msra.mxu0 0
    %391 = vmatprep.subr.bf16.mxu0 0
    %392 = vmatpush1.bf16.msra.mxu0 0
    %393 = vmatprep.subr.bf16.mxu0 0
    %394 = vmatpush1.bf16.msra.mxu0 0
    %395 = vmatprep.mubr.bf16.mxu0 0
    %396 = vmatmul.mubr.bf16.gmra.mrb[0].mxu0 %v355
    %v397 = vpop.f32.mrb[0].mxu0
    %v398 = vadd.f32 0.0, %v397
    %v399 = vpop.f32.mrb[0].mxu0
    %v400 = vpop.f32.mrb[0].mxu0
    %v401 = vadd.f32 0.0, %v400
    %v402 = vpop.f32.mrb[0].mxu0
    %403 = vmatprep.mubr.bf16.mxu0 0
    %404 = vmatmul.mubr.bf16.gmra.mrb[0].mxu0 %v358
    %v405 = vpop.f32.mrb[0].mxu0
    %v406 = vadd.f32 0.0, %v405
    %v407 = vpop.f32.mrb[0].mxu0
    %v408 = vpop.f32.mrb[0].mxu0
    %v409 = vadd.f32 0.0, %v408
    %v410 = vpop.f32.mrb[0].mxu0
    %411 = vdwg.mxu0
    %v412 = vadd.f32 %v334, %v398
    %v413 = vadd.f32 %v337, %v401
    %v414 = vadd.f32 %v342, %v406
    %v415 = vadd.f32 %v345, %v409
    %v416 = vrot.slane %v52, 1
    %v417 = vrot.slane %v53, 1
    %v418 = vrot.slane %v54, 1
    %v419 = vrot.slane %v55, 1
    %vm420 = vcmp.lt.s32.totalorder %v57, 7
    %v421 = vsel %vm420, %v418, %v419
    %v422 = vsel %vm420, %v417, %v418
    %v423 = vsel %vm420, %v416, %v417
    %v424 = vsel %vm420, %v419, %v416
    %v425 = vmul.f32 %v423, %v153
    %v426 = vmul.f32 %v422, %v154
    %v427 = vmul.f32 %v421, %v155
    %v428 = vmul.f32 %v424, %v156
    %v429 = vpack.c.bf16 %v426, %v425
    %v430 = vpack.c.bf16 %v428, %v427
    %v432 = vsel %vm230, %v429, 0
    %v435 = vsel %vm230, %v430, 0
    %v438 = vsel %vm237, %v184, 0
    %440 = vmatprep.subr.bf16.mxu0 0
    %441 = vmatpush1.bf16.msra.mxu0 %v438
    %442 = vmatprep.subr.bf16.mxu0 0
    %443 = vmatpush1.bf16.msra.mxu0 0
    %444 = vmatprep.subr.bf16.mxu0 0
    %445 = vmatpush1.bf16.msra.mxu0 0
    %446 = vmatprep.subr.bf16.mxu0 0
    %447 = vmatpush1.bf16.msra.mxu0 0
    %448 = vmatprep.subr.bf16.mxu0 0
    %449 = vmatpush1.bf16.msra.mxu0 0
    %450 = vmatprep.subr.bf16.mxu0 0
    %451 = vmatpush1.bf16.msra.mxu0 0
    %452 = vmatprep.subr.bf16.mxu0 0
    %453 = vmatpush1.bf16.msra.mxu0 0
    %454 = vmatprep.subr.bf16.mxu0 0
    %455 = vmatpush1.bf16.msra.mxu0 0
    %456 = vmatprep.subr.bf16.mxu0 0
    %457 = vmatpush1.bf16.msra.mxu0 0
    %458 = vmatprep.subr.bf16.mxu0 0
    %459 = vmatpush1.bf16.msra.mxu0 0
    %460 = vmatprep.subr.bf16.mxu0 0
    %461 = vmatpush1.bf16.msra.mxu0 0
    %462 = vmatprep.subr.bf16.mxu0 0
    %463 = vmatpush1.bf16.msra.mxu0 0
    %464 = vmatprep.subr.bf16.mxu0 0
    %465 = vmatpush1.bf16.msra.mxu0 0
    %466 = vmatprep.subr.bf16.mxu0 0
    %467 = vmatpush1.bf16.msra.mxu0 0
    %468 = vmatprep.subr.bf16.mxu0 0
    %469 = vmatpush1.bf16.msra.mxu0 0
    %470 = vmatprep.subr.bf16.mxu0 0
    %471 = vmatpush1.bf16.msra.mxu0 0
    %472 = vmatprep.mubr.bf16.mxu0 0
    %473 = vmatmul.mubr.bf16.gmra.mrb[0].mxu0 %v432
    %v474 = vpop.f32.mrb[0].mxu0
    %v475 = vadd.f32 0.0, %v474
    %v476 = vpop.f32.mrb[0].mxu0
    %v477 = vpop.f32.mrb[0].mxu0
    %v478 = vadd.f32 0.0, %v477
    %v479 = vpop.f32.mrb[0].mxu0
    %480 = vmatprep.mubr.bf16.mxu0 0
    %481 = vmatmul.mubr.bf16.gmra.mrb[0].mxu0 %v435
    %v482 = vpop.f32.mrb[0].mxu0
    %v483 = vadd.f32 0.0, %v482
    %v484 = vpop.f32.mrb[0].mxu0
    %v485 = vpop.f32.mrb[0].mxu0
    %v486 = vadd.f32 0.0, %v485
    %v487 = vpop.f32.mrb[0].mxu0
    %488 = vdwg.mxu0
    %v489 = vadd.f32 %v412, %v475
    %v490 = vadd.f32 %v413, %v478
    %v491 = vadd.f32 %v414, %v483
    %v492 = vadd.f32 %v415, %v486
    %v493 = vrot.slane %v52, 2
    %v494 = vrot.slane %v53, 2
    %v495 = vrot.slane %v54, 2
    %v496 = vrot.slane %v55, 2
    %vm497 = vcmp.lt.s32.totalorder %v57, 6
    %v498 = vsel %vm497, %v495, %v496
    %v499 = vsel %vm497, %v494, %v495
    %v500 = vsel %vm497, %v493, %v494
    %v501 = vsel %vm497, %v496, %v493
    %v502 = vmul.f32 %v500, %v177
    %v503 = vmul.f32 %v499, %v178
    %v504 = vmul.f32 %v498, %v179
    %v505 = vmul.f32 %v501, %v180
    %v506 = vpack.c.bf16 %v503, %v502
    %v507 = vpack.c.bf16 %v505, %v504
    %v509 = vsel %vm230, %v506, 0
    %v512 = vsel %vm230, %v507, 0
    %v515 = vsel %vm237, %v185, 0
    %517 = vmatprep.subr.bf16.mxu0 0
    %518 = vmatpush1.bf16.msra.mxu0 %v515
    %519 = vmatprep.subr.bf16.mxu0 0
    %520 = vmatpush1.bf16.msra.mxu0 0
    %521 = vmatprep.subr.bf16.mxu0 0
    %522 = vmatpush1.bf16.msra.mxu0 0
    %523 = vmatprep.subr.bf16.mxu0 0
    %524 = vmatpush1.bf16.msra.mxu0 0
    %525 = vmatprep.subr.bf16.mxu0 0
    %526 = vmatpush1.bf16.msra.mxu0 0
    %527 = vmatprep.subr.bf16.mxu0 0
    %528 = vmatpush1.bf16.msra.mxu0 0
    %529 = vmatprep.subr.bf16.mxu0 0
    %530 = vmatpush1.bf16.msra.mxu0 0
    %531 = vmatprep.subr.bf16.mxu0 0
    %532 = vmatpush1.bf16.msra.mxu0 0
    %533 = vmatprep.subr.bf16.mxu0 0
    %534 = vmatpush1.bf16.msra.mxu0 0
    %535 = vmatprep.subr.bf16.mxu0 0
    %536 = vmatpush1.bf16.msra.mxu0 0
    %537 = vmatprep.subr.bf16.mxu0 0
    %538 = vmatpush1.bf16.msra.mxu0 0
    %539 = vmatprep.subr.bf16.mxu0 0
    %540 = vmatpush1.bf16.msra.mxu0 0
    %541 = vmatprep.subr.bf16.mxu0 0
    %542 = vmatpush1.bf16.msra.mxu0 0
    %543 = vmatprep.subr.bf16.mxu0 0
    %544 = vmatpush1.bf16.msra.mxu0 0
    %545 = vmatprep.subr.bf16.mxu0 0
    %546 = vmatpush1.bf16.msra.mxu0 0
    %547 = vmatprep.subr.bf16.mxu0 0
    %548 = vmatpush1.bf16.msra.mxu0 0
    %549 = vmatprep.mubr.bf16.mxu0 0
    %550 = vmatmul.mubr.bf16.gmra.mrb[0].mxu0 %v509
    %v551 = vpop.f32.mrb[0].mxu0
    %v552 = vadd.f32 0.0, %v551
    %v553 = vpop.f32.mrb[0].mxu0
    %v554 = vpop.f32.mrb[0].mxu0
    %v555 = vadd.f32 0.0, %v554
    %v556 = vpop.f32.mrb[0].mxu0
    %557 = vmatprep.mubr.bf16.mxu0 0
    %558 = vmatmul.mubr.bf16.gmra.mrb[0].mxu0 %v512
    %v559 = vpop.f32.mrb[0].mxu0
    %v560 = vadd.f32 0.0, %v559
    %v561 = vpop.f32.mrb[0].mxu0
    %v562 = vpop.f32.mrb[0].mxu0
    %v563 = vadd.f32 0.0, %v562
    %v564 = vpop.f32.mrb[0].mxu0
    %565 = vdwg.mxu0
    %v566 = vadd.f32 %v489, %v552
    %v567 = vadd.f32 %v490, %v555
    %v568 = vadd.f32 %v491, %v560
    %v569 = vadd.f32 %v492, %v563
    %vm570 = vcmask 130048
    %v571 = vsel %vm570, %v566, 0.0
    %v572 = vsel %vm570, %v567, 0.0
    %v573 = vadd.f32 %v571, %v572
    %v574 = vsel %vm570, %v568, 0.0
    %v575 = vadd.f32 %v573, %v574
    %v576 = vsel %vm570, %v569, 0.0
    %v577 = vadd.f32 %v575, %v576
    %v578 = vrot.slane %v577, 4
    %v579 = vadd.f32 %v577, %v578
    %v580 = vrot.slane %v579, 2
    %v581 = vadd.f32 %v579, %v580
    %v582 = vrot.slane %v581, 1
    %v583 = vadd.f32 %v581, %v582
    %v584 = vrcp.pop 32.0
    %v585 = vmul.f32 %v583, %v584
    %v586 = vsub.f32 %v566, %v585
    %v587 = vsub.f32 %v567, %v585
    %v588 = vsub.f32 %v568, %v585
    %v589 = vsub.f32 %v569, %v585
    %v590 = vmul.f32 %v586, %v586
    %v591 = vmul.f32 %v587, %v587
    %v592 = vmul.f32 %v588, %v588
    %v593 = vmul.f32 %v589, %v589
    %v594 = vsel %vm570, %v590, 0.0
    %v595 = vsel %vm570, %v591, 0.0
    %v596 = vadd.f32 %v594, %v595
    %v597 = vsel %vm570, %v592, 0.0
    %v598 = vadd.f32 %v596, %v597
    %v599 = vsel %vm570, %v593, 0.0
    %v600 = vadd.f32 %v598, %v599
    %v601 = vrot.slane %v600, 4
    %v602 = vadd.f32 %v600, %v601
    %v603 = vrot.slane %v602, 2
    %v604 = vadd.f32 %v602, %v603
    %v605 = vrot.slane %v604, 1
    %v606 = vadd.f32 %v604, %v605
    %v607 = vmul.f32 %v606, %v584
    %v608 = vadd.f32 %v607, 0.0001
    %v609 = vrsqrt.pop %v608
    %v610 = vmul.f32 %v586, %v609
    %v611 = vmul.f32 %v587, %v609
    %v612 = vmul.f32 %v588, %v609
    %v613 = vmul.f32 %v589, %v609
    %v615 = vlaneseq
    %v616 = vshrl.u32 %v615, 7
    %v617 = vsub.s32 0, %v616
    %v618 = vrot.slane %v186, %v617
    %v620 = vmul.f32 %v610, %v618
    %v621 = vmul.f32 %v611, %v618
    %v622 = vmul.f32 %v612, %v618
    %v623 = vmul.f32 %v613, %v618
    %v625 = vlaneseq
    %v626 = vshrl.u32 %v625, 7
    %v627 = vsub.s32 0, %v626
    %v628 = vrot.slane %v187, %v627
    %v630 = vadd.f32 %v620, %v628
    %v631 = vadd.f32 %v621, %v628
    %v632 = vadd.f32 %v622, %v628
    %v633 = vadd.f32 %v623, %v628
    %vm634 = vcmp.ge.f32.partialorder %v630, 0.0
    %vm635 = vcmp.ge.f32.partialorder %v631, 0.0
    %vm636 = vcmp.ge.f32.partialorder %v632, 0.0
    %vm637 = vcmp.ge.f32.partialorder %v633, 0.0
    %v638 = vmul.f32 %v630, 0.01
    %v639 = vmul.f32 %v631, 0.01
    %v640 = vmul.f32 %v632, 0.01
    %v641 = vmul.f32 %v633, 0.01
    %v642 = vsel %vm634, %v630, %v638
    %v643 = vsel %vm635, %v631, %v639
    %v644 = vsel %vm636, %v632, %v640
    %v645 = vsel %vm637, %v633, %v641
    %v646 = vrot.slane %v642, 6
    %v647 = vrot.slane %v643, 6
    %v648 = vrot.slane %v644, 6
    %v649 = vrot.slane %v645, 6
    %v650 = vsel %vm204, %v648, %v649
    %v651 = vsel %vm204, %v647, %v648
    %v652 = vsel %vm204, %v646, %v647
    %v653 = vsel %vm204, %v649, %v646
    %v654 = vmul.f32 %v653, %v85
    %v655 = vmul.f32 %v652, %v86
    %v656 = vmul.f32 %v651, %v87
    %v657 = vmul.f32 %v650, %v88
    %v658 = vpack.c.bf16 %v655, %v654
    %v659 = vpack.c.bf16 %v657, %v656
    %v660 = vrot.slane %v642, 7
    %v661 = vrot.slane %v643, 7
    %v662 = vrot.slane %v644, 7
    %v663 = vrot.slane %v645, 7
    %v664 = vsel %vm219, %v662, %v663
    %v665 = vsel %vm219, %v661, %v662
    %v666 = vsel %vm219, %v660, %v661
    %v667 = vsel %vm219, %v663, %v660
    %v668 = vmul.f32 %v667, %v109
    %v669 = vmul.f32 %v666, %v110
    %v670 = vmul.f32 %v665, %v111
    %v671 = vmul.f32 %v664, %v112
    %v672 = vpack.c.bf16 %v669, %v668
    %v673 = vpack.c.bf16 %v671, %v670
    %v676 = vunpack.c.l.b16 %v190
    %v677 = vunpack.c.l.b16 %v191
    %v678 = vpack.c.b16 %v677, %v676
    %v681 = vsel %vm570, %v672, 0
    %v684 = vsel %vm570, %v673, 0
    %686 = vmatprep.subr.bf16.mxu0 0
    %687 = vmatpush1.bf16.msra.mxu0 %v678
    %688 = vmatprep.subr.bf16.mxu0 0
    %689 = vmatpush1.bf16.msra.mxu0 0
    %690 = vmatprep.subr.bf16.mxu0 0
    %691 = vmatpush1.bf16.msra.mxu0 0
    %692 = vmatprep.subr.bf16.mxu0 0
    %693 = vmatpush1.bf16.msra.mxu0 0
    %694 = vmatprep.subr.bf16.mxu0 0
    %695 = vmatpush1.bf16.msra.mxu0 0
    %696 = vmatprep.subr.bf16.mxu0 0
    %697 = vmatpush1.bf16.msra.mxu0 0
    %698 = vmatprep.subr.bf16.mxu0 0
    %699 = vmatpush1.bf16.msra.mxu0 0
    %700 = vmatprep.subr.bf16.mxu0 0
    %701 = vmatpush1.bf16.msra.mxu0 0
    %702 = vmatprep.subr.bf16.mxu0 0
    %703 = vmatpush1.bf16.msra.mxu0 0
    %704 = vmatprep.subr.bf16.mxu0 0
    %705 = vmatpush1.bf16.msra.mxu0 0
    %706 = vmatprep.subr.bf16.mxu0 0
    %707 = vmatpush1.bf16.msra.mxu0 0
    %708 = vmatprep.subr.bf16.mxu0 0
    %709 = vmatpush1.bf16.msra.mxu0 0
    %710 = vmatprep.subr.bf16.mxu0 0
    %711 = vmatpush1.bf16.msra.mxu0 0
    %712 = vmatprep.subr.bf16.mxu0 0
    %713 = vmatpush1.bf16.msra.mxu0 0
    %714 = vmatprep.subr.bf16.mxu0 0
    %715 = vmatpush1.bf16.msra.mxu0 0
    %716 = vmatprep.subr.bf16.mxu0 0
    %717 = vmatpush1.bf16.msra.mxu0 0
    %718 = vmatprep.mubr.bf16.mxu0 0
    %719 = vmatmul.mubr.bf16.gmra.mrb[0].mxu0 %v681
    %v720 = vpop.f32.mrb[0].mxu0
    %v721 = vadd.f32 0.0, %v720
    %v722 = vpop.f32.mrb[0].mxu0
    %v723 = vpop.f32.mrb[0].mxu0
    %v724 = vadd.f32 0.0, %v723
    %v725 = vpop.f32.mrb[0].mxu0
    %726 = vmatprep.mubr.bf16.mxu0 0
    %727 = vmatmul.mubr.bf16.gmra.mrb[0].mxu0 %v684
    %v728 = vpop.f32.mrb[0].mxu0
    %v729 = vadd.f32 0.0, %v728
    %v730 = vpop.f32.mrb[0].mxu0
    %v731 = vpop.f32.mrb[0].mxu0
    %v732 = vadd.f32 0.0, %v731
    %v733 = vpop.f32.mrb[0].mxu0
    %734 = vdwg.mxu0
    %v737 = vunpack.c.l.b16 %v188
    %v738 = vunpack.c.l.b16 %v189
    %v739 = vpack.c.b16 %v738, %v737
    %v742 = vsel %vm570, %v658, 0
    %v745 = vsel %vm570, %v659, 0
    %747 = vmatprep.subr.bf16.mxu0 0
    %748 = vmatpush1.bf16.msra.mxu0 %v739
    %749 = vmatprep.subr.bf16.mxu0 0
    %750 = vmatpush1.bf16.msra.mxu0 0
    %751 = vmatprep.subr.bf16.mxu0 0
    %752 = vmatpush1.bf16.msra.mxu0 0
    %753 = vmatprep.subr.bf16.mxu0 0
    %754 = vmatpush1.bf16.msra.mxu0 0
    %755 = vmatprep.subr.bf16.mxu0 0
    %756 = vmatpush1.bf16.msra.mxu0 0
    %757 = vmatprep.subr.bf16.mxu0 0
    %758 = vmatpush1.bf16.msra.mxu0 0
    %759 = vmatprep.subr.bf16.mxu0 0
    %760 = vmatpush1.bf16.msra.mxu0 0
    %761 = vmatprep.subr.bf16.mxu0 0
    %762 = vmatpush1.bf16.msra.mxu0 0
    %763 = vmatprep.subr.bf16.mxu0 0
    %764 = vmatpush1.bf16.msra.mxu0 0
    %765 = vmatprep.subr.bf16.mxu0 0
    %766 = vmatpush1.bf16.msra.mxu0 0
    %767 = vmatprep.subr.bf16.mxu0 0
    %768 = vmatpush1.bf16.msra.mxu0 0
    %769 = vmatprep.subr.bf16.mxu0 0
    %770 = vmatpush1.bf16.msra.mxu0 0
    %771 = vmatprep.subr.bf16.mxu0 0
    %772 = vmatpush1.bf16.msra.mxu0 0
    %773 = vmatprep.subr.bf16.mxu0 0
    %774 = vmatpush1.bf16.msra.mxu0 0
    %775 = vmatprep.subr.bf16.mxu0 0
    %776 = vmatpush1.bf16.msra.mxu0 0
    %777 = vmatprep.subr.bf16.mxu0 0
    %778 = vmatpush1.bf16.msra.mxu0 0
    %779 = vmatprep.mubr.bf16.mxu0 0
    %780 = vmatmul.mubr.bf16.gmra.mrb[0].mxu0 %v742
    %v781 = vpop.f32.mrb[0].mxu0
    %v782 = vadd.f32 %v721, %v781
    %v783 = vpop.f32.mrb[0].mxu0
    %v784 = vpop.f32.mrb[0].mxu0
    %v785 = vadd.f32 %v724, %v784
    %v786 = vpop.f32.mrb[0].mxu0
    %787 = vmatprep.mubr.bf16.mxu0 0
    %788 = vmatmul.mubr.bf16.gmra.mrb[0].mxu0 %v745
    %v789 = vpop.f32.mrb[0].mxu0
    %v790 = vadd.f32 %v729, %v789
    %v791 = vpop.f32.mrb[0].mxu0
    %v792 = vpop.f32.mrb[0].mxu0
    %v793 = vadd.f32 %v732, %v792
    %v794 = vpop.f32.mrb[0].mxu0
    %795 = vdwg.mxu0
    %v796 = vmul.f32 %v642, %v129
    %v797 = vmul.f32 %v643, %v130
    %v798 = vmul.f32 %v644, %v131
    %v799 = vmul.f32 %v645, %v132
    %v800 = vpack.c.bf16 %v797, %v796
    %v801 = vpack.c.bf16 %v799, %v798
    %v804 = vunpack.c.l.b16 %v192
    %v805 = vunpack.c.l.b16 %v193
    %v806 = vpack.c.b16 %v805, %v804
    %v809 = vsel %vm570, %v800, 0
    %v812 = vsel %vm570, %v801, 0
    %814 = vmatprep.subr.bf16.mxu0 0
    %815 = vmatpush1.bf16.msra.mxu0 %v806
    %816 = vmatprep.subr.bf16.mxu0 0
    %817 = vmatpush1.bf16.msra.mxu0 0
    %818 = vmatprep.subr.bf16.mxu0 0
    %819 = vmatpush1.bf16.msra.mxu0 0
    %820 = vmatprep.subr.bf16.mxu0 0
    %821 = vmatpush1.bf16.msra.mxu0 0
    %822 = vmatprep.subr.bf16.mxu0 0
    %823 = vmatpush1.bf16.msra.mxu0 0
    %824 = vmatprep.subr.bf16.mxu0 0
    %825 = vmatpush1.bf16.msra.mxu0 0
    %826 = vmatprep.subr.bf16.mxu0 0
    %827 = vmatpush1.bf16.msra.mxu0 0
    %828 = vmatprep.subr.bf16.mxu0 0
    %829 = vmatpush1.bf16.msra.mxu0 0
    %830 = vmatprep.subr.bf16.mxu0 0
    %831 = vmatpush1.bf16.msra.mxu0 0
    %832 = vmatprep.subr.bf16.mxu0 0
    %833 = vmatpush1.bf16.msra.mxu0 0
    %834 = vmatprep.subr.bf16.mxu0 0
    %835 = vmatpush1.bf16.msra.mxu0 0
    %836 = vmatprep.subr.bf16.mxu0 0
    %837 = vmatpush1.bf16.msra.mxu0 0
    %838 = vmatprep.subr.bf16.mxu0 0
    %839 = vmatpush1.bf16.msra.mxu0 0
    %840 = vmatprep.subr.bf16.mxu0 0
    %841 = vmatpush1.bf16.msra.mxu0 0
    %842 = vmatprep.subr.bf16.mxu0 0
    %843 = vmatpush1.bf16.msra.mxu0 0
    %844 = vmatprep.subr.bf16.mxu0 0
    %845 = vmatpush1.bf16.msra.mxu0 0
    %846 = vmatprep.mubr.bf16.mxu0 0
    %847 = vmatmul.mubr.bf16.gmra.mrb[0].mxu0 %v809
    %v848 = vpop.f32.mrb[0].mxu0
    %v849 = vadd.f32 0.0, %v848
    %v850 = vpop.f32.mrb[0].mxu0
    %v851 = vpop.f32.mrb[0].mxu0
    %v852 = vadd.f32 0.0, %v851
    %v853 = vpop.f32.mrb[0].mxu0
    %854 = vmatprep.mubr.bf16.mxu0 0
    %855 = vmatmul.mubr.bf16.gmra.mrb[0].mxu0 %v812
    %v856 = vpop.f32.mrb[0].mxu0
    %v857 = vadd.f32 0.0, %v856
    %v858 = vpop.f32.mrb[0].mxu0
    %v859 = vpop.f32.mrb[0].mxu0
    %v860 = vadd.f32 0.0, %v859
    %v861 = vpop.f32.mrb[0].mxu0
    %862 = vdwg.mxu0
    %v863 = vadd.f32 %v782, %v849
    %v864 = vadd.f32 %v785, %v852
    %v865 = vadd.f32 %v790, %v857
    %v866 = vadd.f32 %v793, %v860
    %v867 = vrot.slane %v642, 1
    %v868 = vrot.slane %v643, 1
    %v869 = vrot.slane %v644, 1
    %v870 = vrot.slane %v645, 1
    %v871 = vsel %vm420, %v869, %v870
    %v872 = vsel %vm420, %v868, %v869
    %v873 = vsel %vm420, %v867, %v868
    %v874 = vsel %vm420, %v870, %v867
    %v875 = vmul.f32 %v873, %v153
    %v876 = vmul.f32 %v872, %v154
    %v877 = vmul.f32 %v871, %v155
    %v878 = vmul.f32 %v874, %v156
    %v879 = vpack.c.bf16 %v876, %v875
    %v880 = vpack.c.bf16 %v878, %v877
    %v883 = vunpack.c.l.b16 %v194
    %v884 = vunpack.c.l.b16 %v195
    %v885 = vpack.c.b16 %v884, %v883
    %v888 = vsel %vm570, %v879, 0
    %v891 = vsel %vm570, %v880, 0
    %893 = vmatprep.subr.bf16.mxu0 0
    %894 = vmatpush1.bf16.msra.mxu0 %v885
    %895 = vmatprep.subr.bf16.mxu0 0
    %896 = vmatpush1.bf16.msra.mxu0 0
    %897 = vmatprep.subr.bf16.mxu0 0
    %898 = vmatpush1.bf16.msra.mxu0 0
    %899 = vmatprep.subr.bf16.mxu0 0
    %900 = vmatpush1.bf16.msra.mxu0 0
    %901 = vmatprep.subr.bf16.mxu0 0
    %902 = vmatpush1.bf16.msra.mxu0 0
    %903 = vmatprep.subr.bf16.mxu0 0
    %904 = vmatpush1.bf16.msra.mxu0 0
    %905 = vmatprep.subr.bf16.mxu0 0
    %906 = vmatpush1.bf16.msra.mxu0 0
    %907 = vmatprep.subr.bf16.mxu0 0
    %908 = vmatpush1.bf16.msra.mxu0 0
    %909 = vmatprep.subr.bf16.mxu0 0
    %910 = vmatpush1.bf16.msra.mxu0 0
    %911 = vmatprep.subr.bf16.mxu0 0
    %912 = vmatpush1.bf16.msra.mxu0 0
    %913 = vmatprep.subr.bf16.mxu0 0
    %914 = vmatpush1.bf16.msra.mxu0 0
    %915 = vmatprep.subr.bf16.mxu0 0
    %916 = vmatpush1.bf16.msra.mxu0 0
    %917 = vmatprep.subr.bf16.mxu0 0
    %918 = vmatpush1.bf16.msra.mxu0 0
    %919 = vmatprep.subr.bf16.mxu0 0
    %920 = vmatpush1.bf16.msra.mxu0 0
    %921 = vmatprep.subr.bf16.mxu0 0
    %922 = vmatpush1.bf16.msra.mxu0 0
    %923 = vmatprep.subr.bf16.mxu0 0
    %924 = vmatpush1.bf16.msra.mxu0 0
    %925 = vmatprep.mubr.bf16.mxu0 0
    %926 = vmatmul.mubr.bf16.gmra.mrb[0].mxu0 %v888
    %v927 = vpop.f32.mrb[0].mxu0
    %v928 = vadd.f32 0.0, %v927
    %v929 = vpop.f32.mrb[0].mxu0
    %v930 = vpop.f32.mrb[0].mxu0
    %v931 = vadd.f32 0.0, %v930
    %v932 = vpop.f32.mrb[0].mxu0
    %933 = vmatprep.mubr.bf16.mxu0 0
    %934 = vmatmul.mubr.bf16.gmra.mrb[0].mxu0 %v891
    %v935 = vpop.f32.mrb[0].mxu0
    %v936 = vadd.f32 0.0, %v935
    %v937 = vpop.f32.mrb[0].mxu0
    %v938 = vpop.f32.mrb[0].mxu0
    %v939 = vadd.f32 0.0, %v938
    %v940 = vpop.f32.mrb[0].mxu0
    %941 = vdwg.mxu0
    %v942 = vadd.f32 %v863, %v928
    %v943 = vadd.f32 %v864, %v931
    %v944 = vadd.f32 %v865, %v936
    %v945 = vadd.f32 %v866, %v939
    %v946 = vrot.slane %v642, 2
    %v947 = vrot.slane %v643, 2
    %v948 = vrot.slane %v644, 2
    %v949 = vrot.slane %v645, 2
    %v950 = vsel %vm497, %v948, %v949
    %v951 = vsel %vm497, %v947, %v948
    %v952 = vsel %vm497, %v946, %v947
    %v953 = vsel %vm497, %v949, %v946
    %v954 = vmul.f32 %v952, %v177
    %v955 = vmul.f32 %v951, %v178
    %v956 = vmul.f32 %v950, %v179
    %v957 = vmul.f32 %v953, %v180
    %v958 = vpack.c.bf16 %v955, %v954
    %v959 = vpack.c.bf16 %v957, %v956
    %v962 = vunpack.c.l.b16 %v196
    %v963 = vunpack.c.l.b16 %v197
    %v964 = vpack.c.b16 %v963, %v962
    %v967 = vsel %vm570, %v958, 0
    %v970 = vsel %vm570, %v959, 0
    %972 = vmatprep.subr.bf16.mxu0 0
    %973 = vmatpush1.bf16.msra.mxu0 %v964
    %974 = vmatprep.subr.bf16.mxu0 0
    %975 = vmatpush1.bf16.msra.mxu0 0
    %976 = vmatprep.subr.bf16.mxu0 0
    %977 = vmatpush1.bf16.msra.mxu0 0
    %978 = vmatprep.subr.bf16.mxu0 0
    %979 = vmatpush1.bf16.msra.mxu0 0
    %980 = vmatprep.subr.bf16.mxu0 0
    %981 = vmatpush1.bf16.msra.mxu0 0
    %982 = vmatprep.subr.bf16.mxu0 0
    %983 = vmatpush1.bf16.msra.mxu0 0
    %984 = vmatprep.subr.bf16.mxu0 0
    %985 = vmatpush1.bf16.msra.mxu0 0
    %986 = vmatprep.subr.bf16.mxu0 0
    %987 = vmatpush1.bf16.msra.mxu0 0
    %988 = vmatprep.subr.bf16.mxu0 0
    %989 = vmatpush1.bf16.msra.mxu0 0
    %990 = vmatprep.subr.bf16.mxu0 0
    %991 = vmatpush1.bf16.msra.mxu0 0
    %992 = vmatprep.subr.bf16.mxu0 0
    %993 = vmatpush1.bf16.msra.mxu0 0
    %994 = vmatprep.subr.bf16.mxu0 0
    %995 = vmatpush1.bf16.msra.mxu0 0
    %996 = vmatprep.subr.bf16.mxu0 0
    %997 = vmatpush1.bf16.msra.mxu0 0
    %998 = vmatprep.subr.bf16.mxu0 0
    %999 = vmatpush1.bf16.msra.mxu0 0
    %1000 = vmatprep.subr.bf16.mxu0 0
    %1001 = vmatpush1.bf16.msra.mxu0 0
    %1002 = vmatprep.subr.bf16.mxu0 0
    %1003 = vmatpush1.bf16.msra.mxu0 0
    %1004 = vmatprep.mubr.bf16.mxu0 0
    %1005 = vmatmul.mubr.bf16.gmra.mrb[0].mxu0 %v967
    %v1006 = vpop.f32.mrb[0].mxu0
    %v1007 = vadd.f32 0.0, %v1006
    %v1008 = vpop.f32.mrb[0].mxu0
    %v1009 = vpop.f32.mrb[0].mxu0
    %v1010 = vadd.f32 0.0, %v1009
    %v1011 = vpop.f32.mrb[0].mxu0
    %1012 = vmatprep.mubr.bf16.mxu0 0
    %1013 = vmatmul.mubr.bf16.gmra.mrb[0].mxu0 %v970
    %v1014 = vpop.f32.mrb[0].mxu0
    %v1015 = vadd.f32 0.0, %v1014
    %v1016 = vpop.f32.mrb[0].mxu0
    %v1017 = vpop.f32.mrb[0].mxu0
    %v1018 = vadd.f32 0.0, %v1017
    %v1019 = vpop.f32.mrb[0].mxu0
    %1020 = vdwg.mxu0
    %v1021 = vadd.f32 %v942, %v1007
    %v1022 = vadd.f32 %v943, %v1010
    %v1023 = vadd.f32 %v944, %v1015
    %v1024 = vadd.f32 %v945, %v1018
    %v1025 = vsel %vm570, %v1021, 0.0
    %v1026 = vsel %vm570, %v1022, 0.0
    %v1027 = vadd.f32 %v1025, %v1026
    %v1028 = vsel %vm570, %v1023, 0.0
    %v1029 = vadd.f32 %v1027, %v1028
    %v1030 = vsel %vm570, %v1024, 0.0
    %v1031 = vadd.f32 %v1029, %v1030
    %v1032 = vrot.slane %v1031, 4
    %v1033 = vadd.f32 %v1031, %v1032
    %v1034 = vrot.slane %v1033, 2
    %v1035 = vadd.f32 %v1033, %v1034
    %v1036 = vrot.slane %v1035, 1
    %v1037 = vadd.f32 %v1035, %v1036
    %v1038 = vmul.f32 %v1037, %v584
    %v1039 = vsub.f32 %v1021, %v1038
    %v1040 = vsub.f32 %v1022, %v1038
    %v1041 = vsub.f32 %v1023, %v1038
    %v1042 = vsub.f32 %v1024, %v1038
    %v1043 = vmul.f32 %v1039, %v1039
    %v1044 = vmul.f32 %v1040, %v1040
    %v1045 = vmul.f32 %v1041, %v1041
    %v1046 = vmul.f32 %v1042, %v1042
    %v1047 = vsel %vm570, %v1043, 0.0
    %v1048 = vsel %vm570, %v1044, 0.0
    %v1049 = vadd.f32 %v1047, %v1048
    %v1050 = vsel %vm570, %v1045, 0.0
    %v1051 = vadd.f32 %v1049, %v1050
    %v1052 = vsel %vm570, %v1046, 0.0
    %v1053 = vadd.f32 %v1051, %v1052
    %v1054 = vrot.slane %v1053, 4
    %v1055 = vadd.f32 %v1053, %v1054
    %v1056 = vrot.slane %v1055, 2
    %v1057 = vadd.f32 %v1055, %v1056
    %v1058 = vrot.slane %v1057, 1
    %v1059 = vadd.f32 %v1057, %v1058
    %v1060 = vmul.f32 %v1059, %v584
    %v1061 = vadd.f32 %v1060, 0.0001
    %v1062 = vrsqrt.pop %v1061
    %v1063 = vmul.f32 %v1039, %v1062
    %v1064 = vmul.f32 %v1040, %v1062
    %v1065 = vmul.f32 %v1041, %v1062
    %v1066 = vmul.f32 %v1042, %v1062
    %v1068 = vlaneseq
    %v1069 = vshrl.u32 %v1068, 7
    %v1070 = vsub.s32 0, %v1069
    %v1071 = vrot.slane %v198, %v1070
    %v1073 = vmul.f32 %v1063, %v1071
    %v1074 = vmul.f32 %v1064, %v1071
    %v1075 = vmul.f32 %v1065, %v1071
    %v1076 = vmul.f32 %v1066, %v1071
    %v1078 = vlaneseq
    %v1079 = vshrl.u32 %v1078, 7
    %v1080 = vsub.s32 0, %v1079
    %v1081 = vrot.slane %v199, %v1080
    %v1083 = vadd.f32 %v1073, %v1081
    %v1084 = vadd.f32 %v1074, %v1081
    %v1085 = vadd.f32 %v1075, %v1081
    %v1086 = vadd.f32 %v1076, %v1081
    %vm1087 = vcmp.ge.f32.partialorder %v1083, 0.0
    %vm1088 = vcmp.ge.f32.partialorder %v1084, 0.0
    %vm1089 = vcmp.ge.f32.partialorder %v1085, 0.0
    %vm1090 = vcmp.ge.f32.partialorder %v1086, 0.0
    %v1091 = vmul.f32 %v1083, 0.01
    %v1092 = vmul.f32 %v1084, 0.01
    %v1093 = vmul.f32 %v1085, 0.01
    %v1094 = vmul.f32 %v1086, 0.01
    %v1095 = vsel %vm1087, %v1083, %v1091
    %v1096 = vsel %vm1088, %v1084, %v1092
    %v1097 = vsel %vm1089, %v1085, %v1093
    %v1098 = vsel %vm1090, %v1086, %v1094
    %v1103 = vcombine.high %v1095, %v1095
    %v1105 = vunpack.c.l.s4 1983009808
    %v1106 = vunpack.c.0.s8 %v1105
    %v1107 = vlaneseq
    %v1108 = vshrl.u32 %v1107, 7
    %v1109 = vsub.s32 %v1106, %v1108
    %v1110 = vrot.slane %v1095, %v1109
    %v1112 = vunpack.c.l.s4 1983009808
    %v1113 = vunpack.c.0.s8 %v1112
    %v1114 = vlaneseq
    %v1115 = vshrl.u32 %v1114, 7
    %v1116 = vsub.s32 %v1113, %v1115
    %v1117 = vrot.slane %v1103, %v1116
    %v1118 = vcombine.high %v1110, %v1110
    %v1119 = vcombine.high %v1117, %v1117
    %v1120 = vcombine.high %v1096, %v1096
    %v1122 = vunpack.c.l.s4 1983009808
    %v1123 = vunpack.c.0.s8 %v1122
    %v1124 = vlaneseq
    %v1125 = vshrl.u32 %v1124, 7
    %v1126 = vsub.s32 %v1123, %v1125
    %v1127 = vrot.slane %v1096, %v1126
    %v1129 = vunpack.c.l.s4 1983009808
    %v1130 = vunpack.c.0.s8 %v1129
    %v1131 = vlaneseq
    %v1132 = vshrl.u32 %v1131, 7
    %v1133 = vsub.s32 %v1130, %v1132
    %v1134 = vrot.slane %v1120, %v1133
    %v1135 = vcombine.high %v1127, %v1127
    %v1136 = vcombine.high %v1134, %v1134
    %v1137 = vcombine.high %v1097, %v1097
    %v1139 = vunpack.c.l.s4 1983009808
    %v1140 = vunpack.c.0.s8 %v1139
    %v1141 = vlaneseq
    %v1142 = vshrl.u32 %v1141, 7
    %v1143 = vsub.s32 %v1140, %v1142
    %v1144 = vrot.slane %v1097, %v1143
    %v1146 = vunpack.c.l.s4 1983009808
    %v1147 = vunpack.c.0.s8 %v1146
    %v1148 = vlaneseq
    %v1149 = vshrl.u32 %v1148, 7
    %v1150 = vsub.s32 %v1147, %v1149
    %v1151 = vrot.slane %v1137, %v1150
    %v1152 = vcombine.high %v1144, %v1144
    %v1153 = vcombine.high %v1151, %v1151
    %v1154 = vcombine.high %v1098, %v1098
    %v1156 = vunpack.c.l.s4 1983009808
    %v1157 = vunpack.c.0.s8 %v1156
    %v1158 = vlaneseq
    %v1159 = vshrl.u32 %v1158, 7
    %v1160 = vsub.s32 %v1157, %v1159
    %v1161 = vrot.slane %v1098, %v1160
    %v1163 = vunpack.c.l.s4 1983009808
    %v1164 = vunpack.c.0.s8 %v1163
    %v1165 = vlaneseq
    %v1166 = vshrl.u32 %v1165, 7
    %v1167 = vsub.s32 %v1164, %v1166
    %v1168 = vrot.slane %v1154, %v1167
    %v1169 = vcombine.high %v1161, %v1161
    %v1170 = vcombine.high %v1168, %v1168
    %v1187 = vrot.slane %v1110, 7
    %v1188 = vrot.slane %v1187, 2
    %v1189 = vrot.slane %v1118, 7
    %v1190 = vrot.slane %v1189, 2
    %v1191 = vrot.slane %v1117, 7
    %v1192 = vrot.slane %v1191, 2
    %v1193 = vrot.slane %v1119, 7
    %v1194 = vrot.slane %v1193, 2
    %v1195 = vrot.slane %v1127, 7
    %v1196 = vrot.slane %v1195, 2
    %v1197 = vrot.slane %v1135, 7
    %v1198 = vrot.slane %v1197, 2
    %v1199 = vrot.slane %v1134, 7
    %v1200 = vrot.slane %v1199, 2
    %v1201 = vrot.slane %v1136, 7
    %v1202 = vrot.slane %v1201, 2
    %v1203 = vrot.slane %v1144, 7
    %v1204 = vrot.slane %v1203, 2
    %v1205 = vrot.slane %v1152, 7
    %v1206 = vrot.slane %v1205, 2
    %v1207 = vrot.slane %v1151, 7
    %v1208 = vrot.slane %v1207, 2
    %v1209 = vrot.slane %v1153, 7
    %v1210 = vrot.slane %v1209, 2
    %v1211 = vrot.slane %v1161, 7
    %v1212 = vrot.slane %v1211, 2
    %v1213 = vrot.slane %v1169, 7
    %v1214 = vrot.slane %v1213, 2
    %v1215 = vrot.slane %v1168, 7
    %v1216 = vrot.slane %v1215, 2
    %v1217 = vrot.slane %v1170, 7
    %v1218 = vrot.slane %v1217, 2
    %v1235 = vmax.f32 %v1110, %v1188
    %v1236 = vmax.f32 %v1118, %v1190
    %v1237 = vmax.f32 %v1117, %v1192
    %v1238 = vmax.f32 %v1119, %v1194
    %v1239 = vmax.f32 %v1127, %v1196
    %v1240 = vmax.f32 %v1135, %v1198
    %v1241 = vmax.f32 %v1134, %v1200
    %v1242 = vmax.f32 %v1136, %v1202
    %v1243 = vmax.f32 %v1144, %v1204
    %v1244 = vmax.f32 %v1152, %v1206
    %v1245 = vmax.f32 %v1151, %v1208
    %v1246 = vmax.f32 %v1153, %v1210
    %v1247 = vmax.f32 %v1161, %v1212
    %v1248 = vmax.f32 %v1169, %v1214
    %v1249 = vmax.f32 %v1168, %v1216
    %v1250 = vmax.f32 %v1170, %v1218
    %v1251 = vand.u32 %v57, 7
    %v1252 = vand.u32 %v58, 7
    %v1253 = vadd.s32 %v1251, 4294967294
    %v1254 = vadd.s32 %v1252, 4294967294
    %vm1255 = vcmp.ge.s32.totalorder %v1253, 0
    %vm1256 = vcmp.ge.s32.totalorder %v1254, 0
    %vm1257 = vcmp.lt.s32.totalorder %v1253, 8
    %vm1258 = vcmp.lt.s32.totalorder %v1254, 8
    %vm1259 = vmand %vm1255, %vm1257
    %vm1260 = vmand %vm1256, %vm1258
    %v1261 = vsel %vm1259, 1, 0
    %v1262 = vsel %vm1260, 1, 0
    %v1263 = vcvt.s32.f32 %v1261
    %v1264 = vcvt.s32.f32 %v1262
    %v1265 = vadd.s32 %v1251, 4294967295
    %v1266 = vadd.s32 %v1252, 4294967295
    %vm1267 = vcmp.ge.s32.totalorder %v1265, 0
    %vm1268 = vcmp.ge.s32.totalorder %v1266, 0
    %vm1269 = vcmp.lt.s32.totalorder %v1265, 8
    %vm1270 = vcmp.lt.s32.totalorder %v1266, 8
    %vm1271 = vmand %vm1267, %vm1269
    %vm1272 = vmand %vm1268, %vm1270
    %v1273 = vsel %vm1271, 1, 0
    %v1274 = vsel %vm1272, 1, 0
    %v1275 = vcvt.s32.f32 %v1273
    %v1276 = vcvt.s32.f32 %v1274
    %vm1277 = vcmp.ge.s32.totalorder %v1251, 0
    %vm1278 = vcmp.ge.s32.totalorder %v1252, 0
    %vm1279 = vcmp.lt.s32.totalorder %v1251, 8
    %vm1280 = vcmp.lt.s32.totalorder %v1252, 8
    %vm1281 = vmand %vm1277, %vm1279
    %vm1282 = vmand %vm1278, %vm1280
    %v1283 = vsel %vm1281, 1, 0
    %v1284 = vsel %vm1282, 1, 0
    %v1285 = vcvt.s32.f32 %v1283
    %v1286 = vcvt.s32.f32 %v1284
    %v1287 = vadd.s32 %v1251, 1
    %v1288 = vadd.s32 %v1252, 1
    %vm1289 = vcmp.ge.s32.totalorder %v1287, 0
    %vm1290 = vcmp.ge.s32.totalorder %v1288, 0
    %vm1291 = vcmp.lt.s32.totalorder %v1287, 8
    %vm1292 = vcmp.lt.s32.totalorder %v1288, 8
    %vm1293 = vmand %vm1289, %vm1291
    %vm1294 = vmand %vm1290, %vm1292
    %v1295 = vsel %vm1293, 1, 0
    %v1296 = vsel %vm1294, 1, 0
    %v1297 = vcvt.s32.f32 %v1295
    %v1298 = vcvt.s32.f32 %v1296
    %v1299 = vadd.s32 %v1251, 2
    %v1300 = vadd.s32 %v1252, 2
    %vm1301 = vcmp.ge.s32.totalorder %v1299, 0
    %vm1302 = vcmp.ge.s32.totalorder %v1300, 0
    %vm1303 = vcmp.lt.s32.totalorder %v1299, 8
    %vm1304 = vcmp.lt.s32.totalorder %v1300, 8
    %vm1305 = vmand %vm1301, %vm1303
    %vm1306 = vmand %vm1302, %vm1304
    %v1307 = vsel %vm1305, 1, 0
    %v1308 = vsel %vm1306, 1, 0
    %v1309 = vcvt.s32.f32 %v1307
    %v1310 = vcvt.s32.f32 %v1308
    %v1311 = vld [vmem:[%s7] sm:$0xf]
    %v1312 = vld [vmem:[%s7 + $0x4] sm:$0xf]
    %v1313 = vld [vmem:[%s7 + $0x8] sm:$0xf]
    %v1314 = vld [vmem:[%s7 + $0xc] sm:$0xf]
    %v1315 = vld [vmem:[%s7 + $0x10] sm:$0xf]
    %v1316 = vld [vmem:[%s7 + $0x14] sm:$0xf]
    %v1317 = vld [vmem:[%s7 + $0x18] sm:$0xf]
    %v1318 = vld [vmem:[%s7 + $0x1c] sm:$0xf]
    %v1319 = vld [vmem:[%s7 + $0x20] sm:$0xf]
    %v1320 = vld [vmem:[%s7 + $0x24] sm:$0xf]
    %v1321 = vld [vmem:[%s8] sm:$0x1]
    %v1322 = vld [vmem:[%s9] sm:$0x1]
    %v1323 = vld [vmem:[%s10] sm:$0xf]
    %v1324 = vld [vmem:[%s10 + $0x4] sm:$0xf]
    %v1325 = vld [vmem:[%s10 + $0x8] sm:$0xf]
    %v1326 = vld [vmem:[%s10 + $0xc] sm:$0xf]
    %v1327 = vld [vmem:[%s10 + $0x10] sm:$0xf]
    %v1328 = vld [vmem:[%s10 + $0x14] sm:$0xf]
    %v1329 = vld [vmem:[%s10 + $0x18] sm:$0xf]
    %v1330 = vld [vmem:[%s10 + $0x1c] sm:$0xf]
    %v1331 = vld [vmem:[%s10 + $0x20] sm:$0xf]
    %v1332 = vld [vmem:[%s10 + $0x24] sm:$0xf]
    %v1333 = vld [vmem:[%s11] sm:$0x1]
    %v1334 = vld [vmem:[%s12] sm:$0x1]
    %v1351 = vlaneseq
    %v1352 = vshrl.u32 %v1351, 7
    %v1353 = vsub.s32 0, %v1352
    %v1354 = vrot.slane %v1235, %v1353
    %v1355 = vlaneseq
    %v1356 = vshrl.u32 %v1355, 7
    %v1357 = vsub.s32 0, %v1356
    %v1358 = vrot.slane %v1236, %v1357
    %v1359 = vlaneseq
    %v1360 = vshrl.u32 %v1359, 7
    %v1361 = vsub.s32 0, %v1360
    %v1362 = vrot.slane %v1237, %v1361
    %v1363 = vlaneseq
    %v1364 = vshrl.u32 %v1363, 7
    %v1365 = vsub.s32 0, %v1364
    %v1366 = vrot.slane %v1238, %v1365
    %v1367 = vlaneseq
    %v1368 = vshrl.u32 %v1367, 7
    %v1369 = vsub.s32 0, %v1368
    %v1370 = vrot.slane %v1239, %v1369
    %v1371 = vlaneseq
    %v1372 = vshrl.u32 %v1371, 7
    %v1373 = vsub.s32 0, %v1372
    %v1374 = vrot.slane %v1240, %v1373
    %v1375 = vlaneseq
    %v1376 = vshrl.u32 %v1375, 7
    %v1377 = vsub.s32 0, %v1376
    %v1378 = vrot.slane %v1241, %v1377
    %v1379 = vlaneseq
    %v1380 = vshrl.u32 %v1379, 7
    %v1381 = vsub.s32 0, %v1380
    %v1382 = vrot.slane %v1242, %v1381
    %v1383 = vlaneseq
    %v1384 = vshrl.u32 %v1383, 7
    %v1385 = vsub.s32 0, %v1384
    %v1386 = vrot.slane %v1243, %v1385
    %v1387 = vlaneseq
    %v1388 = vshrl.u32 %v1387, 7
    %v1389 = vsub.s32 0, %v1388
    %v1390 = vrot.slane %v1244, %v1389
    %v1391 = vlaneseq
    %v1392 = vshrl.u32 %v1391, 7
    %v1393 = vsub.s32 0, %v1392
    %v1394 = vrot.slane %v1245, %v1393
    %v1395 = vlaneseq
    %v1396 = vshrl.u32 %v1395, 7
    %v1397 = vsub.s32 0, %v1396
    %v1398 = vrot.slane %v1246, %v1397
    %v1399 = vlaneseq
    %v1400 = vshrl.u32 %v1399, 7
    %v1401 = vsub.s32 0, %v1400
    %v1402 = vrot.slane %v1247, %v1401
    %v1403 = vlaneseq
    %v1404 = vshrl.u32 %v1403, 7
    %v1405 = vsub.s32 0, %v1404
    %v1406 = vrot.slane %v1248, %v1405
    %v1407 = vlaneseq
    %v1408 = vshrl.u32 %v1407, 7
    %v1409 = vsub.s32 0, %v1408
    %v1410 = vrot.slane %v1249, %v1409
    %v1411 = vlaneseq
    %v1412 = vshrl.u32 %v1411, 7
    %v1413 = vsub.s32 0, %v1412
    %v1414 = vrot.slane %v1250, %v1413
    %vm1415 = vcmask 1041409
    %v1416 = vsel %vm1415, %v1358, %v1354
    %vm1417 = vcmask 1042434
    %v1418 = vsel %vm1417, %v1362, %v1416
    %vm1419 = vcmask 1043459
    %v1420 = vsel %vm1419, %v1366, %v1418
    %vm1421 = vcmask 1044484
    %v1422 = vsel %vm1421, %v1370, %v1420
    %vm1423 = vcmask 1045509
    %v1424 = vsel %vm1423, %v1374, %v1422
    %vm1425 = vcmask 1046534
    %v1426 = vsel %vm1425, %v1378, %v1424
    %vm1427 = vcmask 1047559
    %v1428 = vsel %vm1427, %v1382, %v1426
    %v1429 = vsel %vm1415, %v1390, %v1386
    %v1430 = vsel %vm1417, %v1394, %v1429
    %v1431 = vsel %vm1419, %v1398, %v1430
    %v1432 = vsel %vm1421, %v1402, %v1431
    %v1433 = vsel %vm1423, %v1406, %v1432
    %v1434 = vsel %vm1425, %v1410, %v1433
    %v1435 = vsel %vm1427, %v1414, %v1434
    %v1438 = vrot.slane %v1428, 6
    %v1439 = vrot.slane %v1435, 6
    %v1440 = vsel %vm204, %v1438, %v1439
    %v1441 = vsel %vm204, %v1439, %v1438
    %v1442 = vmul.f32 %v1441, %v1263
    %v1443 = vmul.f32 %v1440, %v1264
    %v1444 = vpack.c.bf16 %v1443, %v1442
    %v1445 = vrot.slane %v1428, 7
    %v1446 = vrot.slane %v1435, 7
    %v1447 = vsel %vm219, %v1445, %v1446
    %v1448 = vsel %vm219, %v1446, %v1445
    %v1449 = vmul.f32 %v1448, %v1275
    %v1450 = vmul.f32 %v1447, %v1276
    %v1451 = vpack.c.bf16 %v1450, %v1449
    %v1454 = vunpack.c.l.b16 %v1313
    %v1455 = vunpack.c.l.b16 %v1314
    %v1456 = vpack.c.b16 %v1455, %v1454
    %v1459 = vsel %vm570, %v1451, 0
    %1461 = vmatprep.subr.bf16.mxu0 0
    %1462 = vmatpush1.bf16.msra.mxu0 %v1456
    %1463 = vmatprep.subr.bf16.mxu0 0
    %1464 = vmatpush1.bf16.msra.mxu0 0
    %1465 = vmatprep.subr.bf16.mxu0 0
    %1466 = vmatpush1.bf16.msra.mxu0 0
    %1467 = vmatprep.subr.bf16.mxu0 0
    %1468 = vmatpush1.bf16.msra.mxu0 0
    %1469 = vmatprep.subr.bf16.mxu0 0
    %1470 = vmatpush1.bf16.msra.mxu0 0
    %1471 = vmatprep.subr.bf16.mxu0 0
    %1472 = vmatpush1.bf16.msra.mxu0 0
    %1473 = vmatprep.subr.bf16.mxu0 0
    %1474 = vmatpush1.bf16.msra.mxu0 0
    %1475 = vmatprep.subr.bf16.mxu0 0
    %1476 = vmatpush1.bf16.msra.mxu0 0
    %1477 = vmatprep.subr.bf16.mxu0 0
    %1478 = vmatpush1.bf16.msra.mxu0 0
    %1479 = vmatprep.subr.bf16.mxu0 0
    %1480 = vmatpush1.bf16.msra.mxu0 0
    %1481 = vmatprep.subr.bf16.mxu0 0
    %1482 = vmatpush1.bf16.msra.mxu0 0
    %1483 = vmatprep.subr.bf16.mxu0 0
    %1484 = vmatpush1.bf16.msra.mxu0 0
    %1485 = vmatprep.subr.bf16.mxu0 0
    %1486 = vmatpush1.bf16.msra.mxu0 0
    %1487 = vmatprep.subr.bf16.mxu0 0
    %1488 = vmatpush1.bf16.msra.mxu0 0
    %1489 = vmatprep.subr.bf16.mxu0 0
    %1490 = vmatpush1.bf16.msra.mxu0 0
    %1491 = vmatprep.subr.bf16.mxu0 0
    %1492 = vmatpush1.bf16.msra.mxu0 0
    %1493 = vmatprep.mubr.bf16.mxu0 0
    %1494 = vmatmul.mubr.bf16.gmra.mrb[0].mxu0 %v1459
    %v1495 = vpop.f32.mrb[0].mxu0
    %v1496 = vadd.f32 0.0, %v1495
    %v1497 = vpop.f32.mrb[0].mxu0
    %v1498 = vpop.f32.mrb[0].mxu0
    %v1499 = vadd.f32 0.0, %v1498
    %v1500 = vpop.f32.mrb[0].mxu0
    %1501 = vdwg.mxu0
    %v1504 = vunpack.c.l.b16 %v1311
    %v1505 = vunpack.c.l.b16 %v1312
    %v1506 = vpack.c.b16 %v1505, %v1504
    %v1509 = vsel %vm570, %v1444, 0
    %1511 = vmatprep.subr.bf16.mxu0 0
    %1512 = vmatpush1.bf16.msra.mxu0 %v1506
    %1513 = vmatprep.subr.bf16.mxu0 0
    %1514 = vmatpush1.bf16.msra.mxu0 0
    %1515 = vmatprep.subr.bf16.mxu0 0
    %1516 = vmatpush1.bf16.msra.mxu0 0
    %1517 = vmatprep.subr.bf16.mxu0 0
    %1518 = vmatpush1.bf16.msra.mxu0 0
    %1519 = vmatprep.subr.bf16.mxu0 0
    %1520 = vmatpush1.bf16.msra.mxu0 0
    %1521 = vmatprep.subr.bf16.mxu0 0
    %1522 = vmatpush1.bf16.msra.mxu0 0
    %1523 = vmatprep.subr.bf16.mxu0 0
    %1524 = vmatpush1.bf16.msra.mxu0 0
    %1525 = vmatprep.subr.bf16.mxu0 0
    %1526 = vmatpush1.bf16.msra.mxu0 0
    %1527 = vmatprep.subr.bf16.mxu0 0
    %1528 = vmatpush1.bf16.msra.mxu0 0
    %1529 = vmatprep.subr.bf16.mxu0 0
    %1530 = vmatpush1.bf16.msra.mxu0 0
    %1531 = vmatprep.subr.bf16.mxu0 0
    %1532 = vmatpush1.bf16.msra.mxu0 0
    %1533 = vmatprep.subr.bf16.mxu0 0
    %1534 = vmatpush1.bf16.msra.mxu0 0
    %1535 = vmatprep.subr.bf16.mxu0 0
    %1536 = vmatpush1.bf16.msra.mxu0 0
    %1537 = vmatprep.subr.bf16.mxu0 0
    %1538 = vmatpush1.bf16.msra.mxu0 0
    %1539 = vmatprep.subr.bf16.mxu0 0
    %1540 = vmatpush1.bf16.msra.mxu0 0
    %1541 = vmatprep.subr.bf16.mxu0 0
    %1542 = vmatpush1.bf16.msra.mxu0 0
    %1543 = vmatprep.mubr.bf16.mxu0 0
    %1544 = vmatmul.mubr.bf16.gmra.mrb[0].mxu0 %v1509
    %v1545 = vpop.f32.mrb[0].mxu0
    %v1546 = vadd.f32 %v1496, %v1545
    %v1547 = vpop.f32.mrb[0].mxu0
    %v1548 = vpop.f32.mrb[0].mxu0
    %v1549 = vadd.f32 %v1499, %v1548
    %v1550 = vpop.f32.mrb[0].mxu0
    %1551 = vdwg.mxu0
    %v1555 = vunpack.c.l.s4 269488144
    %v1556 = vunpack.c.0.s8 %v1555
    %v1557 = vlaneseq
    %v1558 = vshrl.u32 %v1557, 7
    %v1559 = vsub.s32 %v1556, %v1558
    %v1560 = vrot.slane %v1285, %v1559
    %v1562 = vunpack.c.l.s4 842150450
    %v1563 = vunpack.c.0.s8 %v1562
    %v1564 = vlaneseq
    %v1565 = vshrl.u32 %v1564, 7
    %v1566 = vsub.s32 %v1563, %v1565
    %v1567 = vrot.slane %v1285, %v1566
    %v1569 = vunpack.c.l.s4 1414812756
    %v1570 = vunpack.c.0.s8 %v1569
    %v1571 = vlaneseq
    %v1572 = vshrl.u32 %v1571, 7
    %v1573 = vsub.s32 %v1570, %v1572
    %v1574 = vrot.slane %v1285, %v1573
    %v1576 = vunpack.c.l.s4 1987475062
    %v1577 = vunpack.c.0.s8 %v1576
    %v1578 = vlaneseq
    %v1579 = vshrl.u32 %v1578, 7
    %v1580 = vsub.s32 %v1577, %v1579
    %v1581 = vrot.slane %v1285, %v1580
    %v1583 = vunpack.c.l.s4 269488144
    %v1584 = vunpack.c.0.s8 %v1583
    %v1585 = vlaneseq
    %v1586 = vshrl.u32 %v1585, 7
    %v1587 = vsub.s32 %v1584, %v1586
    %v1588 = vrot.slane %v1286, %v1587
    %v1590 = vunpack.c.l.s4 842150450
    %v1591 = vunpack.c.0.s8 %v1590
    %v1592 = vlaneseq
    %v1593 = vshrl.u32 %v1592, 7
    %v1594 = vsub.s32 %v1591, %v1593
    %v1595 = vrot.slane %v1286, %v1594
    %v1597 = vunpack.c.l.s4 1414812756
    %v1598 = vunpack.c.0.s8 %v1597
    %v1599 = vlaneseq
    %v1600 = vshrl.u32 %v1599, 7
    %v1601 = vsub.s32 %v1598, %v1600
    %v1602 = vrot.slane %v1286, %v1601
    %v1604 = vunpack.c.l.s4 1987475062
    %v1605 = vunpack.c.0.s8 %v1604
    %v1606 = vlaneseq
    %v1607 = vshrl.u32 %v1606, 7
    %v1608 = vsub.s32 %v1605, %v1607
    %v1609 = vrot.slane %v1286, %v1608
    %v1610 = vrot.slane %v1560, 1
    %v1611 = vrot.slane %v1567, 1
    %v1612 = vrot.slane %v1574, 1
    %v1613 = vrot.slane %v1581, 1
    %v1614 = vrot.slane %v1588, 1
    %v1615 = vrot.slane %v1595, 1
    %v1616 = vrot.slane %v1602, 1
    %v1617 = vrot.slane %v1609, 1
    %v1634 = vmul.f32 %v1235, %v1560
    %v1635 = vmul.f32 %v1236, %v1610
    %v1636 = vmul.f32 %v1237, %v1567
    %v1637 = vmul.f32 %v1238, %v1611
    %v1638 = vmul.f32 %v1239, %v1574
    %v1639 = vmul.f32 %v1240, %v1612
    %v1640 = vmul.f32 %v1241, %v1581
    %v1641 = vmul.f32 %v1242, %v1613
    %v1642 = vmul.f32 %v1243, %v1588
    %v1643 = vmul.f32 %v1244, %v1614
    %v1644 = vmul.f32 %v1245, %v1595
    %v1645 = vmul.f32 %v1246, %v1615
    %v1646 = vmul.f32 %v1247, %v1602
    %v1647 = vmul.f32 %v1248, %v1616
    %v1648 = vmul.f32 %v1249, %v1609
    %v1649 = vmul.f32 %v1250, %v1617
    %v1650 = vpack.c.bf16 %v1634, %v1634
    %v1651 = vpack.c.bf16 %v1635, %v1635
    %v1652 = vpack.c.bf16 %v1636, %v1636
    %v1653 = vpack.c.bf16 %v1637, %v1637
    %v1654 = vpack.c.bf16 %v1638, %v1638
    %v1655 = vpack.c.bf16 %v1639, %v1639
    %v1656 = vpack.c.bf16 %v1640, %v1640
    %v1657 = vpack.c.bf16 %v1641, %v1641
    %v1658 = vpack.c.bf16 %v1642, %v1642
    %v1659 = vpack.c.bf16 %v1643, %v1643
    %v1660 = vpack.c.bf16 %v1644, %v1644
    %v1661 = vpack.c.bf16 %v1645, %v1645
    %v1662 = vpack.c.bf16 %v1646, %v1646
    %v1663 = vpack.c.bf16 %v1647, %v1647
    %v1664 = vpack.c.bf16 %v1648, %v1648
    %v1665 = vpack.c.bf16 %v1649, %v1649
    %v1682 = vunpack.c.l.b16 %v1650
    %v1683 = vunpack.c.l.b16 %v1651
    %v1684 = vunpack.c.l.b16 %v1652
    %v1685 = vunpack.c.l.b16 %v1653
    %v1686 = vunpack.c.l.b16 %v1654
    %v1687 = vunpack.c.l.b16 %v1655
    %v1688 = vunpack.c.l.b16 %v1656
    %v1689 = vunpack.c.l.b16 %v1657
    %v1690 = vunpack.c.l.b16 %v1658
    %v1691 = vunpack.c.l.b16 %v1659
    %v1692 = vunpack.c.l.b16 %v1660
    %v1693 = vunpack.c.l.b16 %v1661
    %v1694 = vunpack.c.l.b16 %v1662
    %v1695 = vunpack.c.l.b16 %v1663
    %v1696 = vunpack.c.l.b16 %v1664
    %v1697 = vunpack.c.l.b16 %v1665
    %v1698 = vrot.slane %v1683, 7
    %v1699 = vsel %vm1415, %v1698, %v1682
    %v1700 = vrot.slane %v1684, 6
    %v1701 = vsel %vm1417, %v1700, %v1699
    %v1702 = vrot.slane %v1685, 5
    %v1703 = vsel %vm1419, %v1702, %v1701
    %v1704 = vrot.slane %v1686, 4
    %v1705 = vsel %vm1421, %v1704, %v1703
    %v1706 = vrot.slane %v1687, 3
    %v1707 = vsel %vm1423, %v1706, %v1705
    %v1708 = vrot.slane %v1688, 2
    %v1709 = vsel %vm1425, %v1708, %v1707
    %v1710 = vrot.slane %v1689, 1
    %v1711 = vsel %vm1427, %v1710, %v1709
    %v1712 = vrot.slane %v1691, 7
    %v1713 = vsel %vm1415, %v1712, %v1690
    %v1714 = vrot.slane %v1692, 6
    %v1715 = vsel %vm1417, %v1714, %v1713
    %v1716 = vrot.slane %v1693, 5
    %v1717 = vsel %vm1419, %v1716, %v1715
    %v1718 = vrot.slane %v1694, 4
    %v1719 = vsel %vm1421, %v1718, %v1717
    %v1720 = vrot.slane %v1695, 3
    %v1721 = vsel %vm1423, %v1720, %v1719
    %v1722 = vrot.slane %v1696, 2
    %v1723 = vsel %vm1425, %v1722, %v1721
    %v1724 = vrot.slane %v1697, 1
    %v1725 = vsel %vm1427, %v1724, %v1723
    %v1726 = vpack.c.b16 %v1725, %v1711
    %v1729 = vunpack.c.l.b16 %v1315
    %v1730 = vunpack.c.l.b16 %v1316
    %v1731 = vpack.c.b16 %v1730, %v1729
    %v1734 = vsel %vm570, %v1726, 0
    %1736 = vmatprep.subr.bf16.mxu0 0
    %1737 = vmatpush1.bf16.msra.mxu0 %v1731
    %1738 = vmatprep.subr.bf16.mxu0 0
    %1739 = vmatpush1.bf16.msra.mxu0 0
    %1740 = vmatprep.subr.bf16.mxu0 0
    %1741 = vmatpush1.bf16.msra.mxu0 0
    %1742 = vmatprep.subr.bf16.mxu0 0
    %1743 = vmatpush1.bf16.msra.mxu0 0
    %1744 = vmatprep.subr.bf16.mxu0 0
    %1745 = vmatpush1.bf16.msra.mxu0 0
    %1746 = vmatprep.subr.bf16.mxu0 0
    %1747 = vmatpush1.bf16.msra.mxu0 0
    %1748 = vmatprep.subr.bf16.mxu0 0
    %1749 = vmatpush1.bf16.msra.mxu0 0
    %1750 = vmatprep.subr.bf16.mxu0 0
    %1751 = vmatpush1.bf16.msra.mxu0 0
    %1752 = vmatprep.subr.bf16.mxu0 0
    %1753 = vmatpush1.bf16.msra.mxu0 0
    %1754 = vmatprep.subr.bf16.mxu0 0
    %1755 = vmatpush1.bf16.msra.mxu0 0
    %1756 = vmatprep.subr.bf16.mxu0 0
    %1757 = vmatpush1.bf16.msra.mxu0 0
    %1758 = vmatprep.subr.bf16.mxu0 0
    %1759 = vmatpush1.bf16.msra.mxu0 0
    %1760 = vmatprep.subr.bf16.mxu0 0
    %1761 = vmatpush1.bf16.msra.mxu0 0
    %1762 = vmatprep.subr.bf16.mxu0 0
    %1763 = vmatpush1.bf16.msra.mxu0 0
    %1764 = vmatprep.subr.bf16.mxu0 0
    %1765 = vmatpush1.bf16.msra.mxu0 0
    %1766 = vmatprep.subr.bf16.mxu0 0
    %1767 = vmatpush1.bf16.msra.mxu0 0
    %1768 = vmatprep.mubr.bf16.mxu0 0
    %1769 = vmatmul.mubr.bf16.gmra.mrb[0].mxu0 %v1734
    %v1770 = vpop.f32.mrb[0].mxu0
    %v1771 = vadd.f32 0.0, %v1770
    %v1772 = vpop.f32.mrb[0].mxu0
    %v1773 = vpop.f32.mrb[0].mxu0
    %v1774 = vadd.f32 0.0, %v1773
    %v1775 = vpop.f32.mrb[0].mxu0
    %1776 = vdwg.mxu0
    %v1777 = vadd.f32 %v1546, %v1771
    %v1778 = vadd.f32 %v1549, %v1774
    %v1779 = vrot.slane %v1428, 1
    %v1780 = vrot.slane %v1435, 1
    %v1781 = vsel %vm420, %v1779, %v1780
    %v1782 = vsel %vm420, %v1780, %v1779
    %v1783 = vmul.f32 %v1781, %v1297
    %v1784 = vmul.f32 %v1782, %v1298
    %v1785 = vpack.c.bf16 %v1784, %v1783
    %v1788 = vunpack.c.l.b16 %v1317
    %v1789 = vunpack.c.l.b16 %v1318
    %v1790 = vpack.c.b16 %v1789, %v1788
    %v1793 = vsel %vm570, %v1785, 0
    %1795 = vmatprep.subr.bf16.mxu0 0
    %1796 = vmatpush1.bf16.msra.mxu0 %v1790
    %1797 = vmatprep.subr.bf16.mxu0 0
    %1798 = vmatpush1.bf16.msra.mxu0 0
    %1799 = vmatprep.subr.bf16.mxu0 0
    %1800 = vmatpush1.bf16.msra.mxu0 0
    %1801 = vmatprep.subr.bf16.mxu0 0
    %1802 = vmatpush1.bf16.msra.mxu0 0
    %1803 = vmatprep.subr.bf16.mxu0 0
    %1804 = vmatpush1.bf16.msra.mxu0 0
    %1805 = vmatprep.subr.bf16.mxu0 0
    %1806 = vmatpush1.bf16.msra.mxu0 0
    %1807 = vmatprep.subr.bf16.mxu0 0
    %1808 = vmatpush1.bf16.msra.mxu0 0
    %1809 = vmatprep.subr.bf16.mxu0 0
    %1810 = vmatpush1.bf16.msra.mxu0 0
    %1811 = vmatprep.subr.bf16.mxu0 0
    %1812 = vmatpush1.bf16.msra.mxu0 0
    %1813 = vmatprep.subr.bf16.mxu0 0
    %1814 = vmatpush1.bf16.msra.mxu0 0
    %1815 = vmatprep.subr.bf16.mxu0 0
    %1816 = vmatpush1.bf16.msra.mxu0 0
    %1817 = vmatprep.subr.bf16.mxu0 0
    %1818 = vmatpush1.bf16.msra.mxu0 0
    %1819 = vmatprep.subr.bf16.mxu0 0
    %1820 = vmatpush1.bf16.msra.mxu0 0
    %1821 = vmatprep.subr.bf16.mxu0 0
    %1822 = vmatpush1.bf16.msra.mxu0 0
    %1823 = vmatprep.subr.bf16.mxu0 0
    %1824 = vmatpush1.bf16.msra.mxu0 0
    %1825 = vmatprep.subr.bf16.mxu0 0
    %1826 = vmatpush1.bf16.msra.mxu0 0
    %1827 = vmatprep.mubr.bf16.mxu0 0
    %1828 = vmatmul.mubr.bf16.gmra.mrb[0].mxu0 %v1793
    %v1829 = vpop.f32.mrb[0].mxu0
    %v1830 = vadd.f32 0.0, %v1829
    %v1831 = vpop.f32.mrb[0].mxu0
    %v1832 = vpop.f32.mrb[0].mxu0
    %v1833 = vadd.f32 0.0, %v1832
    %v1834 = vpop.f32.mrb[0].mxu0
    %1835 = vdwg.mxu0
    %v1836 = vadd.f32 %v1777, %v1830
    %v1837 = vadd.f32 %v1778, %v1833
    %v1838 = vrot.slane %v1428, 2
    %v1839 = vrot.slane %v1435, 2
    %v1840 = vsel %vm497, %v1838, %v1839
    %v1841 = vsel %vm497, %v1839, %v1838
    %v1842 = vmul.f32 %v1840, %v1309
    %v1843 = vmul.f32 %v1841, %v1310
    %v1844 = vpack.c.bf16 %v1843, %v1842
    %v1847 = vunpack.c.l.b16 %v1319
    %v1848 = vunpack.c.l.b16 %v1320
    %v1849 = vpack.c.b16 %v1848, %v1847
    %v1852 = vsel %vm570, %v1844, 0
    %1854 = vmatprep.subr.bf16.mxu0 0
    %1855 = vmatpush1.bf16.msra.mxu0 %v1849
    %1856 = vmatprep.subr.bf16.mxu0 0
    %1857 = vmatpush1.bf16.msra.mxu0 0
    %1858 = vmatprep.subr.bf16.mxu0 0
    %1859 = vmatpush1.bf16.msra.mxu0 0
    %1860 = vmatprep.subr.bf16.mxu0 0
    %1861 = vmatpush1.bf16.msra.mxu0 0
    %1862 = vmatprep.subr.bf16.mxu0 0
    %1863 = vmatpush1.bf16.msra.mxu0 0
    %1864 = vmatprep.subr.bf16.mxu0 0
    %1865 = vmatpush1.bf16.msra.mxu0 0
    %1866 = vmatprep.subr.bf16.mxu0 0
    %1867 = vmatpush1.bf16.msra.mxu0 0
    %1868 = vmatprep.subr.bf16.mxu0 0
    %1869 = vmatpush1.bf16.msra.mxu0 0
    %1870 = vmatprep.subr.bf16.mxu0 0
    %1871 = vmatpush1.bf16.msra.mxu0 0
    %1872 = vmatprep.subr.bf16.mxu0 0
    %1873 = vmatpush1.bf16.msra.mxu0 0
    %1874 = vmatprep.subr.bf16.mxu0 0
    %1875 = vmatpush1.bf16.msra.mxu0 0
    %1876 = vmatprep.subr.bf16.mxu0 0
    %1877 = vmatpush1.bf16.msra.mxu0 0
    %1878 = vmatprep.subr.bf16.mxu0 0
    %1879 = vmatpush1.bf16.msra.mxu0 0
    %1880 = vmatprep.subr.bf16.mxu0 0
    %1881 = vmatpush1.bf16.msra.mxu0 0
    %1882 = vmatprep.subr.bf16.mxu0 0
    %1883 = vmatpush1.bf16.msra.mxu0 0
    %1884 = vmatprep.subr.bf16.mxu0 0
    %1885 = vmatpush1.bf16.msra.mxu0 0
    %1886 = vmatprep.mubr.bf16.mxu0 0
    %1887 = vmatmul.mubr.bf16.gmra.mrb[0].mxu0 %v1852
    %v1888 = vpop.f32.mrb[0].mxu0
    %v1889 = vadd.f32 0.0, %v1888
    %v1890 = vpop.f32.mrb[0].mxu0
    %v1891 = vpop.f32.mrb[0].mxu0
    %v1892 = vadd.f32 0.0, %v1891
    %v1893 = vpop.f32.mrb[0].mxu0
    %1894 = vdwg.mxu0
    %v1895 = vadd.f32 %v1836, %v1889
    %v1896 = vadd.f32 %v1837, %v1892
    %v1897 = vsel %vm570, %v1895, 0.0
    %v1898 = vsel %vm570, %v1896, 0.0
    %v1899 = vadd.f32 %v1897, %v1898
    %v1900 = vrot.slane %v1899, 4
    %v1901 = vadd.f32 %v1899, %v1900
    %v1902 = vrot.slane %v1901, 2
    %v1903 = vadd.f32 %v1901, %v1902
    %v1904 = vrot.slane %v1903, 1
    %v1905 = vadd.f32 %v1903, %v1904
    %v1906 = vrcp.pop 16.0
    %v1907 = vmul.f32 %v1905, %v1906
    %v1908 = vsub.f32 %v1895, %v1907
    %v1909 = vsub.f32 %v1896, %v1907
    %v1910 = vmul.f32 %v1908, %v1908
    %v1911 = vmul.f32 %v1909, %v1909
    %v1912 = vsel %vm570, %v1910, 0.0
    %v1913 = vsel %vm570, %v1911, 0.0
    %v1914 = vadd.f32 %v1912, %v1913
    %v1915 = vrot.slane %v1914, 4
    %v1916 = vadd.f32 %v1914, %v1915
    %v1917 = vrot.slane %v1916, 2
    %v1918 = vadd.f32 %v1916, %v1917
    %v1919 = vrot.slane %v1918, 1
    %v1920 = vadd.f32 %v1918, %v1919
    %v1921 = vmul.f32 %v1920, %v1906
    %v1922 = vadd.f32 %v1921, 0.0001
    %v1923 = vrsqrt.pop %v1922
    %v1924 = vmul.f32 %v1908, %v1923
    %v1925 = vmul.f32 %v1909, %v1923
    %v1927 = vlaneseq
    %v1928 = vshrl.u32 %v1927, 7
    %v1929 = vsub.s32 0, %v1928
    %v1930 = vrot.slane %v1321, %v1929
    %v1932 = vmul.f32 %v1924, %v1930
    %v1933 = vmul.f32 %v1925, %v1930
    %v1935 = vlaneseq
    %v1936 = vshrl.u32 %v1935, 7
    %v1937 = vsub.s32 0, %v1936
    %v1938 = vrot.slane %v1322, %v1937
    %v1940 = vadd.f32 %v1932, %v1938
    %v1941 = vadd.f32 %v1933, %v1938
    %vm1942 = vcmp.ge.f32.partialorder %v1940, 0.0
    %vm1943 = vcmp.ge.f32.partialorder %v1941, 0.0
    %v1944 = vmul.f32 %v1940, 0.01
    %v1945 = vmul.f32 %v1941, 0.01
    %v1946 = vsel %vm1942, %v1940, %v1944
    %v1947 = vsel %vm1943, %v1941, %v1945
    %v1948 = vrot.slane %v1946, 6
    %v1949 = vrot.slane %v1947, 6
    %v1950 = vsel %vm204, %v1948, %v1949
    %v1951 = vsel %vm204, %v1949, %v1948
    %v1952 = vmul.f32 %v1951, %v1263
    %v1953 = vmul.f32 %v1950, %v1264
    %v1954 = vpack.c.bf16 %v1953, %v1952
    %v1955 = vrot.slane %v1946, 7
    %v1956 = vrot.slane %v1947, 7
    %v1957 = vsel %vm219, %v1955, %v1956
    %v1958 = vsel %vm219, %v1956, %v1955
    %v1959 = vmul.f32 %v1958, %v1275
    %v1960 = vmul.f32 %v1957, %v1276
    %v1961 = vpack.c.bf16 %v1960, %v1959
    %v1964 = vunpack.c.l.b16 %v1325
    %v1965 = vunpack.c.l.b16 %v1326
    %v1966 = vpack.c.b16 %v1965, %v1964
    %v1969 = vsel %vm570, %v1961, 0
    %1971 = vmatprep.subr.bf16.mxu0 0
    %1972 = vmatpush1.bf16.msra.mxu0 %v1966
    %1973 = vmatprep.subr.bf16.mxu0 0
    %1974 = vmatpush1.bf16.msra.mxu0 0
    %1975 = vmatprep.subr.bf16.mxu0 0
    %1976 = vmatpush1.bf16.msra.mxu0 0
    %1977 = vmatprep.subr.bf16.mxu0 0
    %1978 = vmatpush1.bf16.msra.mxu0 0
    %1979 = vmatprep.subr.bf16.mxu0 0
    %1980 = vmatpush1.bf16.msra.mxu0 0
    %1981 = vmatprep.subr.bf16.mxu0 0
    %1982 = vmatpush1.bf16.msra.mxu0 0
    %1983 = vmatprep.subr.bf16.mxu0 0
    %1984 = vmatpush1.bf16.msra.mxu0 0
    %1985 = vmatprep.subr.bf16.mxu0 0
    %1986 = vmatpush1.bf16.msra.mxu0 0
    %1987 = vmatprep.subr.bf16.mxu0 0
    %1988 = vmatpush1.bf16.msra.mxu0 0
    %1989 = vmatprep.subr.bf16.mxu0 0
    %1990 = vmatpush1.bf16.msra.mxu0 0
    %1991 = vmatprep.subr.bf16.mxu0 0
    %1992 = vmatpush1.bf16.msra.mxu0 0
    %1993 = vmatprep.subr.bf16.mxu0 0
    %1994 = vmatpush1.bf16.msra.mxu0 0
    %1995 = vmatprep.subr.bf16.mxu0 0
    %1996 = vmatpush1.bf16.msra.mxu0 0
    %1997 = vmatprep.subr.bf16.mxu0 0
    %1998 = vmatpush1.bf16.msra.mxu0 0
    %1999 = vmatprep.subr.bf16.mxu0 0
    %2000 = vmatpush1.bf16.msra.mxu0 0
    %2001 = vmatprep.subr.bf16.mxu0 0
    %2002 = vmatpush1.bf16.msra.mxu0 0
    %2003 = vmatprep.mubr.bf16.mxu0 0
    %2004 = vmatmul.mubr.bf16.gmra.mrb[0].mxu0 %v1969
    %v2005 = vpop.f32.mrb[0].mxu0
    %v2006 = vadd.f32 0.0, %v2005
    %v2007 = vpop.f32.mrb[0].mxu0
    %v2008 = vpop.f32.mrb[0].mxu0
    %v2009 = vadd.f32 0.0, %v2008
    %v2010 = vpop.f32.mrb[0].mxu0
    %2011 = vdwg.mxu0
    %v2014 = vunpack.c.l.b16 %v1323
    %v2015 = vunpack.c.l.b16 %v1324
    %v2016 = vpack.c.b16 %v2015, %v2014
    %v2019 = vsel %vm570, %v1954, 0
    %2021 = vmatprep.subr.bf16.mxu0 0
    %2022 = vmatpush1.bf16.msra.mxu0 %v2016
    %2023 = vmatprep.subr.bf16.mxu0 0
    %2024 = vmatpush1.bf16.msra.mxu0 0
    %2025 = vmatprep.subr.bf16.mxu0 0
    %2026 = vmatpush1.bf16.msra.mxu0 0
    %2027 = vmatprep.subr.bf16.mxu0 0
    %2028 = vmatpush1.bf16.msra.mxu0 0
    %2029 = vmatprep.subr.bf16.mxu0 0
    %2030 = vmatpush1.bf16.msra.mxu0 0
    %2031 = vmatprep.subr.bf16.mxu0 0
    %2032 = vmatpush1.bf16.msra.mxu0 0
    %2033 = vmatprep.subr.bf16.mxu0 0
    %2034 = vmatpush1.bf16.msra.mxu0 0
    %2035 = vmatprep.subr.bf16.mxu0 0
    %2036 = vmatpush1.bf16.msra.mxu0 0
    %2037 = vmatprep.subr.bf16.mxu0 0
    %2038 = vmatpush1.bf16.msra.mxu0 0
    %2039 = vmatprep.subr.bf16.mxu0 0
    %2040 = vmatpush1.bf16.msra.mxu0 0
    %2041 = vmatprep.subr.bf16.mxu0 0
    %2042 = vmatpush1.bf16.msra.mxu0 0
    %2043 = vmatprep.subr.bf16.mxu0 0
    %2044 = vmatpush1.bf16.msra.mxu0 0
    %2045 = vmatprep.subr.bf16.mxu0 0
    %2046 = vmatpush1.bf16.msra.mxu0 0
    %2047 = vmatprep.subr.bf16.mxu0 0
    %2048 = vmatpush1.bf16.msra.mxu0 0
    %2049 = vmatprep.subr.bf16.mxu0 0
    %2050 = vmatpush1.bf16.msra.mxu0 0
    %2051 = vmatprep.subr.bf16.mxu0 0
    %2052 = vmatpush1.bf16.msra.mxu0 0
    %2053 = vmatprep.mubr.bf16.mxu0 0
    %2054 = vmatmul.mubr.bf16.gmra.mrb[0].mxu0 %v2019
    %v2055 = vpop.f32.mrb[0].mxu0
    %v2056 = vadd.f32 %v2006, %v2055
    %v2057 = vpop.f32.mrb[0].mxu0
    %v2058 = vpop.f32.mrb[0].mxu0
    %v2059 = vadd.f32 %v2009, %v2058
    %v2060 = vpop.f32.mrb[0].mxu0
    %2061 = vdwg.mxu0
    %v2062 = vmul.f32 %v1946, %v1285
    %v2063 = vmul.f32 %v1947, %v1286
    %v2064 = vpack.c.bf16 %v2063, %v2062
    %v2067 = vunpack.c.l.b16 %v1327
    %v2068 = vunpack.c.l.b16 %v1328
    %v2069 = vpack.c.b16 %v2068, %v2067
    %v2072 = vsel %vm570, %v2064, 0
    %2074 = vmatprep.subr.bf16.mxu0 0
    %2075 = vmatpush1.bf16.msra.mxu0 %v2069
    %2076 = vmatprep.subr.bf16.mxu0 0
    %2077 = vmatpush1.bf16.msra.mxu0 0
    %2078 = vmatprep.subr.bf16.mxu0 0
    %2079 = vmatpush1.bf16.msra.mxu0 0
    %2080 = vmatprep.subr.bf16.mxu0 0
    %2081 = vmatpush1.bf16.msra.mxu0 0
    %2082 = vmatprep.subr.bf16.mxu0 0
    %2083 = vmatpush1.bf16.msra.mxu0 0
    %2084 = vmatprep.subr.bf16.mxu0 0
    %2085 = vmatpush1.bf16.msra.mxu0 0
    %2086 = vmatprep.subr.bf16.mxu0 0
    %2087 = vmatpush1.bf16.msra.mxu0 0
    %2088 = vmatprep.subr.bf16.mxu0 0
    %2089 = vmatpush1.bf16.msra.mxu0 0
    %2090 = vmatprep.subr.bf16.mxu0 0
    %2091 = vmatpush1.bf16.msra.mxu0 0
    %2092 = vmatprep.subr.bf16.mxu0 0
    %2093 = vmatpush1.bf16.msra.mxu0 0
    %2094 = vmatprep.subr.bf16.mxu0 0
    %2095 = vmatpush1.bf16.msra.mxu0 0
    %2096 = vmatprep.subr.bf16.mxu0 0
    %2097 = vmatpush1.bf16.msra.mxu0 0
    %2098 = vmatprep.subr.bf16.mxu0 0
    %2099 = vmatpush1.bf16.msra.mxu0 0
    %2100 = vmatprep.subr.bf16.mxu0 0
    %2101 = vmatpush1.bf16.msra.mxu0 0
    %2102 = vmatprep.subr.bf16.mxu0 0
    %2103 = vmatpush1.bf16.msra.mxu0 0
    %2104 = vmatprep.subr.bf16.mxu0 0
    %2105 = vmatpush1.bf16.msra.mxu0 0
    %2106 = vmatprep.mubr.bf16.mxu0 0
    %2107 = vmatmul.mubr.bf16.gmra.mrb[0].mxu0 %v2072
    %v2108 = vpop.f32.mrb[0].mxu0
    %v2109 = vadd.f32 0.0, %v2108
    %v2110 = vpop.f32.mrb[0].mxu0
    %v2111 = vpop.f32.mrb[0].mxu0
    %v2112 = vadd.f32 0.0, %v2111
    %v2113 = vpop.f32.mrb[0].mxu0
    %2114 = vdwg.mxu0
    %v2115 = vadd.f32 %v2056, %v2109
    %v2116 = vadd.f32 %v2059, %v2112
    %v2117 = vrot.slane %v1946, 1
    %v2118 = vrot.slane %v1947, 1
    %v2119 = vsel %vm420, %v2117, %v2118
    %v2120 = vsel %vm420, %v2118, %v2117
    %v2121 = vmul.f32 %v2119, %v1297
    %v2122 = vmul.f32 %v2120, %v1298
    %v2123 = vpack.c.bf16 %v2122, %v2121
    %v2126 = vunpack.c.l.b16 %v1329
    %v2127 = vunpack.c.l.b16 %v1330
    %v2128 = vpack.c.b16 %v2127, %v2126
    %v2131 = vsel %vm570, %v2123, 0
    %2133 = vmatprep.subr.bf16.mxu0 0
    %2134 = vmatpush1.bf16.msra.mxu0 %v2128
    %2135 = vmatprep.subr.bf16.mxu0 0
    %2136 = vmatpush1.bf16.msra.mxu0 0
    %2137 = vmatprep.subr.bf16.mxu0 0
    %2138 = vmatpush1.bf16.msra.mxu0 0
    %2139 = vmatprep.subr.bf16.mxu0 0
    %2140 = vmatpush1.bf16.msra.mxu0 0
    %2141 = vmatprep.subr.bf16.mxu0 0
    %2142 = vmatpush1.bf16.msra.mxu0 0
    %2143 = vmatprep.subr.bf16.mxu0 0
    %2144 = vmatpush1.bf16.msra.mxu0 0
    %2145 = vmatprep.subr.bf16.mxu0 0
    %2146 = vmatpush1.bf16.msra.mxu0 0
    %2147 = vmatprep.subr.bf16.mxu0 0
    %2148 = vmatpush1.bf16.msra.mxu0 0
    %2149 = vmatprep.subr.bf16.mxu0 0
    %2150 = vmatpush1.bf16.msra.mxu0 0
    %2151 = vmatprep.subr.bf16.mxu0 0
    %2152 = vmatpush1.bf16.msra.mxu0 0
    %2153 = vmatprep.subr.bf16.mxu0 0
    %2154 = vmatpush1.bf16.msra.mxu0 0
    %2155 = vmatprep.subr.bf16.mxu0 0
    %2156 = vmatpush1.bf16.msra.mxu0 0
    %2157 = vmatprep.subr.bf16.mxu0 0
    %2158 = vmatpush1.bf16.msra.mxu0 0
    %2159 = vmatprep.subr.bf16.mxu0 0
    %2160 = vmatpush1.bf16.msra.mxu0 0
    %2161 = vmatprep.subr.bf16.mxu0 0
    %2162 = vmatpush1.bf16.msra.mxu0 0
    %2163 = vmatprep.subr.bf16.mxu0 0
    %2164 = vmatpush1.bf16.msra.mxu0 0
    %2165 = vmatprep.mubr.bf16.mxu0 0
    %2166 = vmatmul.mubr.bf16.gmra.mrb[0].mxu0 %v2131
    %v2167 = vpop.f32.mrb[0].mxu0
    %v2168 = vadd.f32 0.0, %v2167
    %v2169 = vpop.f32.mrb[0].mxu0
    %v2170 = vpop.f32.mrb[0].mxu0
    %v2171 = vadd.f32 0.0, %v2170
    %v2172 = vpop.f32.mrb[0].mxu0
    %2173 = vdwg.mxu0
    %v2174 = vadd.f32 %v2115, %v2168
    %v2175 = vadd.f32 %v2116, %v2171
    %v2176 = vrot.slane %v1946, 2
    %v2177 = vrot.slane %v1947, 2
    %v2178 = vsel %vm497, %v2176, %v2177
    %v2179 = vsel %vm497, %v2177, %v2176
    %v2180 = vmul.f32 %v2178, %v1309
    %v2181 = vmul.f32 %v2179, %v1310
    %v2182 = vpack.c.bf16 %v2181, %v2180
    %v2185 = vunpack.c.l.b16 %v1331
    %v2186 = vunpack.c.l.b16 %v1332
    %v2187 = vpack.c.b16 %v2186, %v2185
    %v2190 = vsel %vm570, %v2182, 0
    %2192 = vmatprep.subr.bf16.mxu0 0
    %2193 = vmatpush1.bf16.msra.mxu0 %v2187
    %2194 = vmatprep.subr.bf16.mxu0 0
    %2195 = vmatpush1.bf16.msra.mxu0 0
    %2196 = vmatprep.subr.bf16.mxu0 0
    %2197 = vmatpush1.bf16.msra.mxu0 0
    %2198 = vmatprep.subr.bf16.mxu0 0
    %2199 = vmatpush1.bf16.msra.mxu0 0
    %2200 = vmatprep.subr.bf16.mxu0 0
    %2201 = vmatpush1.bf16.msra.mxu0 0
    %2202 = vmatprep.subr.bf16.mxu0 0
    %2203 = vmatpush1.bf16.msra.mxu0 0
    %2204 = vmatprep.subr.bf16.mxu0 0
    %2205 = vmatpush1.bf16.msra.mxu0 0
    %2206 = vmatprep.subr.bf16.mxu0 0
    %2207 = vmatpush1.bf16.msra.mxu0 0
    %2208 = vmatprep.subr.bf16.mxu0 0
    %2209 = vmatpush1.bf16.msra.mxu0 0
    %2210 = vmatprep.subr.bf16.mxu0 0
    %2211 = vmatpush1.bf16.msra.mxu0 0
    %2212 = vmatprep.subr.bf16.mxu0 0
    %2213 = vmatpush1.bf16.msra.mxu0 0
    %2214 = vmatprep.subr.bf16.mxu0 0
    %2215 = vmatpush1.bf16.msra.mxu0 0
    %2216 = vmatprep.subr.bf16.mxu0 0
    %2217 = vmatpush1.bf16.msra.mxu0 0
    %2218 = vmatprep.subr.bf16.mxu0 0
    %2219 = vmatpush1.bf16.msra.mxu0 0
    %2220 = vmatprep.subr.bf16.mxu0 0
    %2221 = vmatpush1.bf16.msra.mxu0 0
    %2222 = vmatprep.subr.bf16.mxu0 0
    %2223 = vmatpush1.bf16.msra.mxu0 0
    %2224 = vmatprep.mubr.bf16.mxu0 0
    %2225 = vmatmul.mubr.bf16.gmra.mrb[0].mxu0 %v2190
    %v2226 = vpop.f32.mrb[0].mxu0
    %v2227 = vadd.f32 0.0, %v2226
    %v2228 = vpop.f32.mrb[0].mxu0
    %v2229 = vpop.f32.mrb[0].mxu0
    %v2230 = vadd.f32 0.0, %v2229
    %v2231 = vpop.f32.mrb[0].mxu0
    %2232 = vdwg.mxu0
    %v2233 = vadd.f32 %v2174, %v2227
    %v2234 = vadd.f32 %v2175, %v2230
    %v2235 = vsel %vm570, %v2233, 0.0
    %v2236 = vsel %vm570, %v2234, 0.0
    %v2237 = vadd.f32 %v2235, %v2236
    %v2238 = vrot.slane %v2237, 4
    %v2239 = vadd.f32 %v2237, %v2238
    %v2240 = vrot.slane %v2239, 2
    %v2241 = vadd.f32 %v2239, %v2240
    %v2242 = vrot.slane %v2241, 1
    %v2243 = vadd.f32 %v2241, %v2242
    %v2244 = vmul.f32 %v2243, %v1906
    %v2245 = vsub.f32 %v2233, %v2244
    %v2246 = vsub.f32 %v2234, %v2244
    %v2247 = vmul.f32 %v2245, %v2245
    %v2248 = vmul.f32 %v2246, %v2246
    %v2249 = vsel %vm570, %v2247, 0.0
    %v2250 = vsel %vm570, %v2248, 0.0
    %v2251 = vadd.f32 %v2249, %v2250
    %v2252 = vrot.slane %v2251, 4
    %v2253 = vadd.f32 %v2251, %v2252
    %v2254 = vrot.slane %v2253, 2
    %v2255 = vadd.f32 %v2253, %v2254
    %v2256 = vrot.slane %v2255, 1
    %v2257 = vadd.f32 %v2255, %v2256
    %v2258 = vmul.f32 %v2257, %v1906
    %v2259 = vadd.f32 %v2258, 0.0001
    %v2260 = vrsqrt.pop %v2259
    %v2261 = vmul.f32 %v2245, %v2260
    %v2262 = vmul.f32 %v2246, %v2260
    %v2264 = vlaneseq
    %v2265 = vshrl.u32 %v2264, 7
    %v2266 = vsub.s32 0, %v2265
    %v2267 = vrot.slane %v1333, %v2266
    %v2269 = vmul.f32 %v2261, %v2267
    %v2270 = vmul.f32 %v2262, %v2267
    %v2272 = vlaneseq
    %v2273 = vshrl.u32 %v2272, 7
    %v2274 = vsub.s32 0, %v2273
    %v2275 = vrot.slane %v1334, %v2274
    %v2277 = vadd.f32 %v2269, %v2275
    %v2278 = vadd.f32 %v2270, %v2275
    %v2279 = vadd.f32 %v2277, %v1428
    %v2280 = vadd.f32 %v2278, %v1435
    %vm2281 = vcmp.ge.f32.partialorder %v2279, 0.0
    %vm2282 = vcmp.ge.f32.partialorder %v2280, 0.0
    %v2283 = vmul.f32 %v2279, 0.01
    %v2284 = vmul.f32 %v2280, 0.01
    %v2285 = vsel %vm2281, %v2279, %v2283
    %v2286 = vsel %vm2282, %v2280, %v2284
    %v2289 = vcombine.high %v2285, %v2285
    %v2291 = vunpack.c.l.s4 1983009808
    %v2292 = vunpack.c.0.s8 %v2291
    %v2293 = vlaneseq
    %v2294 = vshrl.u32 %v2293, 7
    %v2295 = vsub.s32 %v2292, %v2294
    %v2296 = vrot.slane %v2285, %v2295
    %v2298 = vunpack.c.l.s4 1983009808
    %v2299 = vunpack.c.0.s8 %v2298
    %v2300 = vlaneseq
    %v2301 = vshrl.u32 %v2300, 7
    %v2302 = vsub.s32 %v2299, %v2301
    %v2303 = vrot.slane %v2289, %v2302
    %v2304 = vcombine.high %v2296, %v2296
    %v2305 = vcombine.high %v2303, %v2303
    %v2306 = vcombine.high %v2286, %v2286
    %v2308 = vunpack.c.l.s4 1983009808
    %v2309 = vunpack.c.0.s8 %v2308
    %v2310 = vlaneseq
    %v2311 = vshrl.u32 %v2310, 7
    %v2312 = vsub.s32 %v2309, %v2311
    %v2313 = vrot.slane %v2286, %v2312
    %v2315 = vunpack.c.l.s4 1983009808
    %v2316 = vunpack.c.0.s8 %v2315
    %v2317 = vlaneseq
    %v2318 = vshrl.u32 %v2317, 7
    %v2319 = vsub.s32 %v2316, %v2318
    %v2320 = vrot.slane %v2306, %v2319
    %v2321 = vcombine.high %v2313, %v2313
    %v2322 = vcombine.high %v2320, %v2320
    %v2331 = vrot.slane %v2296, 7
    %v2332 = vrot.slane %v2331, 2
    %v2333 = vrot.slane %v2304, 7
    %v2334 = vrot.slane %v2333, 2
    %v2335 = vrot.slane %v2303, 7
    %v2336 = vrot.slane %v2335, 2
    %v2337 = vrot.slane %v2305, 7
    %v2338 = vrot.slane %v2337, 2
    %v2339 = vrot.slane %v2313, 7
    %v2340 = vrot.slane %v2339, 2
    %v2341 = vrot.slane %v2321, 7
    %v2342 = vrot.slane %v2341, 2
    %v2343 = vrot.slane %v2320, 7
    %v2344 = vrot.slane %v2343, 2
    %v2345 = vrot.slane %v2322, 7
    %v2346 = vrot.slane %v2345, 2
    %v2355 = vmax.f32 %v2296, %v2332
    %v2356 = vmax.f32 %v2304, %v2334
    %v2357 = vmax.f32 %v2303, %v2336
    %v2358 = vmax.f32 %v2305, %v2338
    %v2359 = vmax.f32 %v2313, %v2340
    %v2360 = vmax.f32 %v2321, %v2342
    %v2361 = vmax.f32 %v2320, %v2344
    %v2362 = vmax.f32 %v2322, %v2346
    %v2363 = vand.u32 %v57, 3
    %v2364 = vadd.s32 %v2363, 4294967294
    %vm2365 = vcmp.ge.s32.totalorder %v2364, 0
    %vm2366 = vcmp.lt.s32.totalorder %v2364, 4
    %vm2367 = vmand %vm2365, %vm2366
    %v2368 = vsel %vm2367, 1, 0
    %v2369 = vcvt.s32.f32 %v2368
    %v2370 = vadd.s32 %v2363, 4294967295
    %vm2371 = vcmp.ge.s32.totalorder %v2370, 0
    %vm2372 = vcmp.lt.s32.totalorder %v2370, 4
    %vm2373 = vmand %vm2371, %vm2372
    %v2374 = vsel %vm2373, 1, 0
    %v2375 = vcvt.s32.f32 %v2374
    %vm2376 = vcmp.ge.s32.totalorder %v2363, 0
    %vm2377 = vcmp.lt.s32.totalorder %v2363, 4
    %vm2378 = vmand %vm2376, %vm2377
    %v2379 = vsel %vm2378, 1, 0
    %v2380 = vcvt.s32.f32 %v2379
    %v2381 = vadd.s32 %v2363, 1
    %vm2382 = vcmp.ge.s32.totalorder %v2381, 0
    %vm2383 = vcmp.lt.s32.totalorder %v2381, 4
    %vm2384 = vmand %vm2382, %vm2383
    %v2385 = vsel %vm2384, 1, 0
    %v2386 = vcvt.s32.f32 %v2385
    %v2387 = vadd.s32 %v2363, 2
    %vm2388 = vcmp.ge.s32.totalorder %v2387, 0
    %vm2389 = vcmp.lt.s32.totalorder %v2387, 4
    %vm2390 = vmand %vm2388, %vm2389
    %v2391 = vsel %vm2390, 1, 0
    %v2392 = vcvt.s32.f32 %v2391
    %s2393 = scalar_lea.vmem %s7, 40
    %v2394 = vld [vmem:[%s2393] sm:$0xf]
    %v2395 = vld [vmem:[%s2393 + $0x4] sm:$0xf]
    %v2396 = vld [vmem:[%s2393 + $0x8] sm:$0xf]
    %v2397 = vld [vmem:[%s2393 + $0xc] sm:$0xf]
    %v2398 = vld [vmem:[%s2393 + $0x10] sm:$0xf]
    %v2399 = vld [vmem:[%s2393 + $0x14] sm:$0xf]
    %v2400 = vld [vmem:[%s2393 + $0x18] sm:$0xf]
    %v2401 = vld [vmem:[%s2393 + $0x1c] sm:$0xf]
    %v2402 = vld [vmem:[%s2393 + $0x20] sm:$0xf]
    %v2403 = vld [vmem:[%s2393 + $0x24] sm:$0xf]
    %s2404 = scalar_lea.vmem %s8, 1
    %v2405 = vld [vmem:[%s2404] sm:$0x1]
    %s2406 = scalar_lea.vmem %s9, 1
    %v2407 = vld [vmem:[%s2406] sm:$0x1]
    %s2408 = scalar_lea.vmem %s10, 40
    %v2409 = vld [vmem:[%s2408] sm:$0xf]
    %v2410 = vld [vmem:[%s2408 + $0x4] sm:$0xf]
    %v2411 = vld [vmem:[%s2408 + $0x8] sm:$0xf]
    %v2412 = vld [vmem:[%s2408 + $0xc] sm:$0xf]
    %v2413 = vld [vmem:[%s2408 + $0x10] sm:$0xf]
    %v2414 = vld [vmem:[%s2408 + $0x14] sm:$0xf]
    %v2415 = vld [vmem:[%s2408 + $0x18] sm:$0xf]
    %v2416 = vld [vmem:[%s2408 + $0x1c] sm:$0xf]
    %v2417 = vld [vmem:[%s2408 + $0x20] sm:$0xf]
    %v2418 = vld [vmem:[%s2408 + $0x24] sm:$0xf]
    %s2419 = scalar_lea.vmem %s11, 1
    %v2420 = vld [vmem:[%s2419] sm:$0x1]
    %s2421 = scalar_lea.vmem %s12, 1
    %v2422 = vld [vmem:[%s2421] sm:$0x1]
    %v2431 = vlaneseq
    %v2432 = vshrl.u32 %v2431, 7
    %v2433 = vsub.s32 0, %v2432
    %v2434 = vrot.slane %v2355, %v2433
    %v2435 = vlaneseq
    %v2436 = vshrl.u32 %v2435, 7
    %v2437 = vsub.s32 0, %v2436
    %v2438 = vrot.slane %v2356, %v2437
    %v2439 = vlaneseq
    %v2440 = vshrl.u32 %v2439, 7
    %v2441 = vsub.s32 0, %v2440
    %v2442 = vrot.slane %v2357, %v2441
    %v2443 = vlaneseq
    %v2444 = vshrl.u32 %v2443, 7
    %v2445 = vsub.s32 0, %v2444
    %v2446 = vrot.slane %v2358, %v2445
    %v2447 = vlaneseq
    %v2448 = vshrl.u32 %v2447, 7
    %v2449 = vsub.s32 0, %v2448
    %v2450 = vrot.slane %v2359, %v2449
    %v2451 = vlaneseq
    %v2452 = vshrl.u32 %v2451, 7
    %v2453 = vsub.s32 0, %v2452
    %v2454 = vrot.slane %v2360, %v2453
    %v2455 = vlaneseq
    %v2456 = vshrl.u32 %v2455, 7
    %v2457 = vsub.s32 0, %v2456
    %v2458 = vrot.slane %v2361, %v2457
    %v2459 = vlaneseq
    %v2460 = vshrl.u32 %v2459, 7
    %v2461 = vsub.s32 0, %v2460
    %v2462 = vrot.slane %v2362, %v2461
    %v2463 = vsel %vm1415, %v2438, %v2434
    %v2464 = vsel %vm1417, %v2442, %v2463
    %v2465 = vsel %vm1419, %v2446, %v2464
    %v2466 = vsel %vm1421, %v2450, %v2465
    %v2467 = vsel %vm1423, %v2454, %v2466
    %v2468 = vsel %vm1425, %v2458, %v2467
    %v2469 = vsel %vm1427, %v2462, %v2468
    %v2471 = vrot.slane %v2469, 6
    %v2472 = vmul.f32 %v2471, %v2369
    %v2473 = vpack.c.bf16 %v2472, %v2472
    %v2474 = vrot.slane %v2469, 7
    %v2475 = vmul.f32 %v2474, %v2375
    %v2476 = vpack.c.bf16 %v2475, %v2475
    %v2479 = vunpack.c.l.b16 %v2396
    %v2480 = vunpack.c.l.b16 %v2397
    %v2481 = vpack.c.b16 %v2480, %v2479
    %v2484 = vsel %vm570, %v2476, 0
    %2486 = vmatprep.subr.bf16.mxu0 0
    %2487 = vmatpush1.bf16.msra.mxu0 %v2481
    %2488 = vmatprep.subr.bf16.mxu0 0
    %2489 = vmatpush1.bf16.msra.mxu0 0
    %2490 = vmatprep.subr.bf16.mxu0 0
    %2491 = vmatpush1.bf16.msra.mxu0 0
    %2492 = vmatprep.subr.bf16.mxu0 0
    %2493 = vmatpush1.bf16.msra.mxu0 0
    %2494 = vmatprep.subr.bf16.mxu0 0
    %2495 = vmatpush1.bf16.msra.mxu0 0
    %2496 = vmatprep.subr.bf16.mxu0 0
    %2497 = vmatpush1.bf16.msra.mxu0 0
    %2498 = vmatprep.subr.bf16.mxu0 0
    %2499 = vmatpush1.bf16.msra.mxu0 0
    %2500 = vmatprep.subr.bf16.mxu0 0
    %2501 = vmatpush1.bf16.msra.mxu0 0
    %2502 = vmatprep.subr.bf16.mxu0 0
    %2503 = vmatpush1.bf16.msra.mxu0 0
    %2504 = vmatprep.subr.bf16.mxu0 0
    %2505 = vmatpush1.bf16.msra.mxu0 0
    %2506 = vmatprep.subr.bf16.mxu0 0
    %2507 = vmatpush1.bf16.msra.mxu0 0
    %2508 = vmatprep.subr.bf16.mxu0 0
    %2509 = vmatpush1.bf16.msra.mxu0 0
    %2510 = vmatprep.subr.bf16.mxu0 0
    %2511 = vmatpush1.bf16.msra.mxu0 0
    %2512 = vmatprep.subr.bf16.mxu0 0
    %2513 = vmatpush1.bf16.msra.mxu0 0
    %2514 = vmatprep.subr.bf16.mxu0 0
    %2515 = vmatpush1.bf16.msra.mxu0 0
    %2516 = vmatprep.subr.bf16.mxu0 0
    %2517 = vmatpush1.bf16.msra.mxu0 0
    %2518 = vmatprep.mubr.bf16.mxu0 0
    %2519 = vmatmul.mubr.bf16.gmra.mrb[0].mxu0 %v2484
    %v2520 = vpop.f32.mrb[0].mxu0
    %v2521 = vadd.f32 0.0, %v2520
    %v2522 = vpop.f32.mrb[0].mxu0
    %v2523 = vpop.f32.mrb[0].mxu0
    %v2524 = vpop.f32.mrb[0].mxu0
    %2525 = vdwg.mxu0
    %v2528 = vunpack.c.l.b16 %v2394
    %v2529 = vunpack.c.l.b16 %v2395
    %v2530 = vpack.c.b16 %v2529, %v2528
    %v2533 = vsel %vm570, %v2473, 0
    %2535 = vmatprep.subr.bf16.mxu0 0
    %2536 = vmatpush1.bf16.msra.mxu0 %v2530
    %2537 = vmatprep.subr.bf16.mxu0 0
    %2538 = vmatpush1.bf16.msra.mxu0 0
    %2539 = vmatprep.subr.bf16.mxu0 0
    %2540 = vmatpush1.bf16.msra.mxu0 0
    %2541 = vmatprep.subr.bf16.mxu0 0
    %2542 = vmatpush1.bf16.msra.mxu0 0
    %2543 = vmatprep.subr.bf16.mxu0 0
    %2544 = vmatpush1.bf16.msra.mxu0 0
    %2545 = vmatprep.subr.bf16.mxu0 0
    %2546 = vmatpush1.bf16.msra.mxu0 0
    %2547 = vmatprep.subr.bf16.mxu0 0
    %2548 = vmatpush1.bf16.msra.mxu0 0
    %2549 = vmatprep.subr.bf16.mxu0 0
    %2550 = vmatpush1.bf16.msra.mxu0 0
    %2551 = vmatprep.subr.bf16.mxu0 0
    %2552 = vmatpush1.bf16.msra.mxu0 0
    %2553 = vmatprep.subr.bf16.mxu0 0
    %2554 = vmatpush1.bf16.msra.mxu0 0
    %2555 = vmatprep.subr.bf16.mxu0 0
    %2556 = vmatpush1.bf16.msra.mxu0 0
    %2557 = vmatprep.subr.bf16.mxu0 0
    %2558 = vmatpush1.bf16.msra.mxu0 0
    %2559 = vmatprep.subr.bf16.mxu0 0
    %2560 = vmatpush1.bf16.msra.mxu0 0
    %2561 = vmatprep.subr.bf16.mxu0 0
    %2562 = vmatpush1.bf16.msra.mxu0 0
    %2563 = vmatprep.subr.bf16.mxu0 0
    %2564 = vmatpush1.bf16.msra.mxu0 0
    %2565 = vmatprep.subr.bf16.mxu0 0
    %2566 = vmatpush1.bf16.msra.mxu0 0
    %2567 = vmatprep.mubr.bf16.mxu0 0
    %2568 = vmatmul.mubr.bf16.gmra.mrb[0].mxu0 %v2533
    %v2569 = vpop.f32.mrb[0].mxu0
    %v2570 = vadd.f32 %v2521, %v2569
    %v2571 = vpop.f32.mrb[0].mxu0
    %v2572 = vpop.f32.mrb[0].mxu0
    %v2573 = vpop.f32.mrb[0].mxu0
    %2574 = vdwg.mxu0
    %v2577 = vunpack.c.l.s4 269488144
    %v2578 = vunpack.c.0.s8 %v2577
    %v2579 = vlaneseq
    %v2580 = vshrl.u32 %v2579, 7
    %v2581 = vsub.s32 %v2578, %v2580
    %v2582 = vrot.slane %v2380, %v2581
    %v2584 = vunpack.c.l.s4 842150450
    %v2585 = vunpack.c.0.s8 %v2584
    %v2586 = vlaneseq
    %v2587 = vshrl.u32 %v2586, 7
    %v2588 = vsub.s32 %v2585, %v2587
    %v2589 = vrot.slane %v2380, %v2588
    %v2591 = vunpack.c.l.s4 1414812756
    %v2592 = vunpack.c.0.s8 %v2591
    %v2593 = vlaneseq
    %v2594 = vshrl.u32 %v2593, 7
    %v2595 = vsub.s32 %v2592, %v2594
    %v2596 = vrot.slane %v2380, %v2595
    %v2598 = vunpack.c.l.s4 1987475062
    %v2599 = vunpack.c.0.s8 %v2598
    %v2600 = vlaneseq
    %v2601 = vshrl.u32 %v2600, 7
    %v2602 = vsub.s32 %v2599, %v2601
    %v2603 = vrot.slane %v2380, %v2602
    %v2604 = vrot.slane %v2582, 1
    %v2605 = vrot.slane %v2589, 1
    %v2606 = vrot.slane %v2596, 1
    %v2607 = vrot.slane %v2603, 1
    %v2616 = vmul.f32 %v2355, %v2582
    %v2617 = vmul.f32 %v2356, %v2604
    %v2618 = vmul.f32 %v2357, %v2589
    %v2619 = vmul.f32 %v2358, %v2605
    %v2620 = vmul.f32 %v2359, %v2596
    %v2621 = vmul.f32 %v2360, %v2606
    %v2622 = vmul.f32 %v2361, %v2603
    %v2623 = vmul.f32 %v2362, %v2607
    %v2624 = vpack.c.bf16 %v2616, %v2616
    %v2625 = vpack.c.bf16 %v2617, %v2617
    %v2626 = vpack.c.bf16 %v2618, %v2618
    %v2627 = vpack.c.bf16 %v2619, %v2619
    %v2628 = vpack.c.bf16 %v2620, %v2620
    %v2629 = vpack.c.bf16 %v2621, %v2621
    %v2630 = vpack.c.bf16 %v2622, %v2622
    %v2631 = vpack.c.bf16 %v2623, %v2623
    %v2640 = vunpack.c.l.b16 %v2624
    %v2641 = vunpack.c.l.b16 %v2625
    %v2642 = vunpack.c.l.b16 %v2626
    %v2643 = vunpack.c.l.b16 %v2627
    %v2644 = vunpack.c.l.b16 %v2628
    %v2645 = vunpack.c.l.b16 %v2629
    %v2646 = vunpack.c.l.b16 %v2630
    %v2647 = vunpack.c.l.b16 %v2631
    %v2648 = vrot.slane %v2641, 7
    %v2649 = vsel %vm1415, %v2648, %v2640
    %v2650 = vrot.slane %v2642, 6
    %v2651 = vsel %vm1417, %v2650, %v2649
    %v2652 = vrot.slane %v2643, 5
    %v2653 = vsel %vm1419, %v2652, %v2651
    %v2654 = vrot.slane %v2644, 4
    %v2655 = vsel %vm1421, %v2654, %v2653
    %v2656 = vrot.slane %v2645, 3
    %v2657 = vsel %vm1423, %v2656, %v2655
    %v2658 = vrot.slane %v2646, 2
    %v2659 = vsel %vm1425, %v2658, %v2657
    %v2660 = vrot.slane %v2647, 1
    %v2661 = vsel %vm1427, %v2660, %v2659
    %v2662 = vpack.c.b16 %v2661, %v2661
    %v2665 = vunpack.c.l.b16 %v2398
    %v2666 = vunpack.c.l.b16 %v2399
    %v2667 = vpack.c.b16 %v2666, %v2665
    %v2670 = vsel %vm570, %v2662, 0
    %2672 = vmatprep.subr.bf16.mxu0 0
    %2673 = vmatpush1.bf16.msra.mxu0 %v2667
    %2674 = vmatprep.subr.bf16.mxu0 0
    %2675 = vmatpush1.bf16.msra.mxu0 0
    %2676 = vmatprep.subr.bf16.mxu0 0
    %2677 = vmatpush1.bf16.msra.mxu0 0
    %2678 = vmatprep.subr.bf16.mxu0 0
    %2679 = vmatpush1.bf16.msra.mxu0 0
    %2680 = vmatprep.subr.bf16.mxu0 0
    %2681 = vmatpush1.bf16.msra.mxu0 0
    %2682 = vmatprep.subr.bf16.mxu0 0
    %2683 = vmatpush1.bf16.msra.mxu0 0
    %2684 = vmatprep.subr.bf16.mxu0 0
    %2685 = vmatpush1.bf16.msra.mxu0 0
    %2686 = vmatprep.subr.bf16.mxu0 0
    %2687 = vmatpush1.bf16.msra.mxu0 0
    %2688 = vmatprep.subr.bf16.mxu0 0
    %2689 = vmatpush1.bf16.msra.mxu0 0
    %2690 = vmatprep.subr.bf16.mxu0 0
    %2691 = vmatpush1.bf16.msra.mxu0 0
    %2692 = vmatprep.subr.bf16.mxu0 0
    %2693 = vmatpush1.bf16.msra.mxu0 0
    %2694 = vmatprep.subr.bf16.mxu0 0
    %2695 = vmatpush1.bf16.msra.mxu0 0
    %2696 = vmatprep.subr.bf16.mxu0 0
    %2697 = vmatpush1.bf16.msra.mxu0 0
    %2698 = vmatprep.subr.bf16.mxu0 0
    %2699 = vmatpush1.bf16.msra.mxu0 0
    %2700 = vmatprep.subr.bf16.mxu0 0
    %2701 = vmatpush1.bf16.msra.mxu0 0
    %2702 = vmatprep.subr.bf16.mxu0 0
    %2703 = vmatpush1.bf16.msra.mxu0 0
    %2704 = vmatprep.mubr.bf16.mxu0 0
    %2705 = vmatmul.mubr.bf16.gmra.mrb[0].mxu0 %v2670
    %v2706 = vpop.f32.mrb[0].mxu0
    %v2707 = vadd.f32 0.0, %v2706
    %v2708 = vpop.f32.mrb[0].mxu0
    %v2709 = vpop.f32.mrb[0].mxu0
    %v2710 = vpop.f32.mrb[0].mxu0
    %2711 = vdwg.mxu0
    %v2712 = vadd.f32 %v2570, %v2707
    %v2713 = vrot.slane %v2469, 1
    %v2714 = vmul.f32 %v2713, %v2386
    %v2715 = vpack.c.bf16 %v2714, %v2714
    %v2718 = vunpack.c.l.b16 %v2400
    %v2719 = vunpack.c.l.b16 %v2401
    %v2720 = vpack.c.b16 %v2719, %v2718
    %v2723 = vsel %vm570, %v2715, 0
    %2725 = vmatprep.subr.bf16.mxu0 0
    %2726 = vmatpush1.bf16.msra.mxu0 %v2720
    %2727 = vmatprep.subr.bf16.mxu0 0
    %2728 = vmatpush1.bf16.msra.mxu0 0
    %2729 = vmatprep.subr.bf16.mxu0 0
    %2730 = vmatpush1.bf16.msra.mxu0 0
    %2731 = vmatprep.subr.bf16.mxu0 0
    %2732 = vmatpush1.bf16.msra.mxu0 0
    %2733 = vmatprep.subr.bf16.mxu0 0
    %2734 = vmatpush1.bf16.msra.mxu0 0
    %2735 = vmatprep.subr.bf16.mxu0 0
    %2736 = vmatpush1.bf16.msra.mxu0 0
    %2737 = vmatprep.subr.bf16.mxu0 0
    %2738 = vmatpush1.bf16.msra.mxu0 0
    %2739 = vmatprep.subr.bf16.mxu0 0
    %2740 = vmatpush1.bf16.msra.mxu0 0
    %2741 = vmatprep.subr.bf16.mxu0 0
    %2742 = vmatpush1.bf16.msra.mxu0 0
    %2743 = vmatprep.subr.bf16.mxu0 0
    %2744 = vmatpush1.bf16.msra.mxu0 0
    %2745 = vmatprep.subr.bf16.mxu0 0
    %2746 = vmatpush1.bf16.msra.mxu0 0
    %2747 = vmatprep.subr.bf16.mxu0 0
    %2748 = vmatpush1.bf16.msra.mxu0 0
    %2749 = vmatprep.subr.bf16.mxu0 0
    %2750 = vmatpush1.bf16.msra.mxu0 0
    %2751 = vmatprep.subr.bf16.mxu0 0
    %2752 = vmatpush1.bf16.msra.mxu0 0
    %2753 = vmatprep.subr.bf16.mxu0 0
    %2754 = vmatpush1.bf16.msra.mxu0 0
    %2755 = vmatprep.subr.bf16.mxu0 0
    %2756 = vmatpush1.bf16.msra.mxu0 0
    %2757 = vmatprep.mubr.bf16.mxu0 0
    %2758 = vmatmul.mubr.bf16.gmra.mrb[0].mxu0 %v2723
    %v2759 = vpop.f32.mrb[0].mxu0
    %v2760 = vadd.f32 0.0, %v2759
    %v2761 = vpop.f32.mrb[0].mxu0
    %v2762 = vpop.f32.mrb[0].mxu0
    %v2763 = vpop.f32.mrb[0].mxu0
    %2764 = vdwg.mxu0
    %v2765 = vadd.f32 %v2712, %v2760
    %v2766 = vrot.slane %v2469, 2
    %v2767 = vmul.f32 %v2766, %v2392
    %v2768 = vpack.c.bf16 %v2767, %v2767
    %v2771 = vunpack.c.l.b16 %v2402
    %v2772 = vunpack.c.l.b16 %v2403
    %v2773 = vpack.c.b16 %v2772, %v2771
    %v2776 = vsel %vm570, %v2768, 0
    %2778 = vmatprep.subr.bf16.mxu0 0
    %2779 = vmatpush1.bf16.msra.mxu0 %v2773
    %2780 = vmatprep.subr.bf16.mxu0 0
    %2781 = vmatpush1.bf16.msra.mxu0 0
    %2782 = vmatprep.subr.bf16.mxu0 0
    %2783 = vmatpush1.bf16.msra.mxu0 0
    %2784 = vmatprep.subr.bf16.mxu0 0
    %2785 = vmatpush1.bf16.msra.mxu0 0
    %2786 = vmatprep.subr.bf16.mxu0 0
    %2787 = vmatpush1.bf16.msra.mxu0 0
    %2788 = vmatprep.subr.bf16.mxu0 0
    %2789 = vmatpush1.bf16.msra.mxu0 0
    %2790 = vmatprep.subr.bf16.mxu0 0
    %2791 = vmatpush1.bf16.msra.mxu0 0
    %2792 = vmatprep.subr.bf16.mxu0 0
    %2793 = vmatpush1.bf16.msra.mxu0 0
    %2794 = vmatprep.subr.bf16.mxu0 0
    %2795 = vmatpush1.bf16.msra.mxu0 0
    %2796 = vmatprep.subr.bf16.mxu0 0
    %2797 = vmatpush1.bf16.msra.mxu0 0
    %2798 = vmatprep.subr.bf16.mxu0 0
    %2799 = vmatpush1.bf16.msra.mxu0 0
    %2800 = vmatprep.subr.bf16.mxu0 0
    %2801 = vmatpush1.bf16.msra.mxu0 0
    %2802 = vmatprep.subr.bf16.mxu0 0
    %2803 = vmatpush1.bf16.msra.mxu0 0
    %2804 = vmatprep.subr.bf16.mxu0 0
    %2805 = vmatpush1.bf16.msra.mxu0 0
    %2806 = vmatprep.subr.bf16.mxu0 0
    %2807 = vmatpush1.bf16.msra.mxu0 0
    %2808 = vmatprep.subr.bf16.mxu0 0
    %2809 = vmatpush1.bf16.msra.mxu0 0
    %2810 = vmatprep.mubr.bf16.mxu0 0
    %2811 = vmatmul.mubr.bf16.gmra.mrb[0].mxu0 %v2776
    %v2812 = vpop.f32.mrb[0].mxu0
    %v2813 = vadd.f32 0.0, %v2812
    %v2814 = vpop.f32.mrb[0].mxu0
    %v2815 = vpop.f32.mrb[0].mxu0
    %v2816 = vpop.f32.mrb[0].mxu0
    %2817 = vdwg.mxu0
    %v2818 = vadd.f32 %v2765, %v2813
    %v2819 = vsel %vm570, %v2818, 0.0
    %v2820 = vrot.slane %v2819, 4
    %v2821 = vadd.f32 %v2819, %v2820
    %v2822 = vrot.slane %v2821, 2
    %v2823 = vadd.f32 %v2821, %v2822
    %v2824 = vrot.slane %v2823, 1
    %v2825 = vadd.f32 %v2823, %v2824
    %v2826 = vrcp.pop 8.0
    %v2827 = vmul.f32 %v2825, %v2826
    %v2828 = vsub.f32 %v2818, %v2827
    %v2829 = vmul.f32 %v2828, %v2828
    %v2830 = vsel %vm570, %v2829, 0.0
    %v2831 = vrot.slane %v2830, 4
    %v2832 = vadd.f32 %v2830, %v2831
    %v2833 = vrot.slane %v2832, 2
    %v2834 = vadd.f32 %v2832, %v2833
    %v2835 = vrot.slane %v2834, 1
    %v2836 = vadd.f32 %v2834, %v2835
    %v2837 = vmul.f32 %v2836, %v2826
    %v2838 = vadd.f32 %v2837, 0.0001
    %v2839 = vrsqrt.pop %v2838
    %v2840 = vmul.f32 %v2828, %v2839
    %v2842 = vlaneseq
    %v2843 = vshrl.u32 %v2842, 7
    %v2844 = vsub.s32 0, %v2843
    %v2845 = vrot.slane %v2405, %v2844
    %v2847 = vmul.f32 %v2840, %v2845
    %v2849 = vlaneseq
    %v2850 = vshrl.u32 %v2849, 7
    %v2851 = vsub.s32 0, %v2850
    %v2852 = vrot.slane %v2407, %v2851
    %v2854 = vadd.f32 %v2847, %v2852
    %vm2855 = vcmp.ge.f32.partialorder %v2854, 0.0
    %v2856 = vmul.f32 %v2854, 0.01
    %v2857 = vsel %vm2855, %v2854, %v2856
    %v2858 = vrot.slane %v2857, 6
    %v2859 = vmul.f32 %v2858, %v2369
    %v2860 = vpack.c.bf16 %v2859, %v2859
    %v2861 = vrot.slane %v2857, 7
    %v2862 = vmul.f32 %v2861, %v2375
    %v2863 = vpack.c.bf16 %v2862, %v2862
    %v2866 = vunpack.c.l.b16 %v2411
    %v2867 = vunpack.c.l.b16 %v2412
    %v2868 = vpack.c.b16 %v2867, %v2866
    %v2871 = vsel %vm570, %v2863, 0
    %2873 = vmatprep.subr.bf16.mxu0 0
    %2874 = vmatpush1.bf16.msra.mxu0 %v2868
    %2875 = vmatprep.subr.bf16.mxu0 0
    %2876 = vmatpush1.bf16.msra.mxu0 0
    %2877 = vmatprep.subr.bf16.mxu0 0
    %2878 = vmatpush1.bf16.msra.mxu0 0
    %2879 = vmatprep.subr.bf16.mxu0 0
    %2880 = vmatpush1.bf16.msra.mxu0 0
    %2881 = vmatprep.subr.bf16.mxu0 0
    %2882 = vmatpush1.bf16.msra.mxu0 0
    %2883 = vmatprep.subr.bf16.mxu0 0
    %2884 = vmatpush1.bf16.msra.mxu0 0
    %2885 = vmatprep.subr.bf16.mxu0 0
    %2886 = vmatpush1.bf16.msra.mxu0 0
    %2887 = vmatprep.subr.bf16.mxu0 0
    %2888 = vmatpush1.bf16.msra.mxu0 0
    %2889 = vmatprep.subr.bf16.mxu0 0
    %2890 = vmatpush1.bf16.msra.mxu0 0
    %2891 = vmatprep.subr.bf16.mxu0 0
    %2892 = vmatpush1.bf16.msra.mxu0 0
    %2893 = vmatprep.subr.bf16.mxu0 0
    %2894 = vmatpush1.bf16.msra.mxu0 0
    %2895 = vmatprep.subr.bf16.mxu0 0
    %2896 = vmatpush1.bf16.msra.mxu0 0
    %2897 = vmatprep.subr.bf16.mxu0 0
    %2898 = vmatpush1.bf16.msra.mxu0 0
    %2899 = vmatprep.subr.bf16.mxu0 0
    %2900 = vmatpush1.bf16.msra.mxu0 0
    %2901 = vmatprep.subr.bf16.mxu0 0
    %2902 = vmatpush1.bf16.msra.mxu0 0
    %2903 = vmatprep.subr.bf16.mxu0 0
    %2904 = vmatpush1.bf16.msra.mxu0 0
    %2905 = vmatprep.mubr.bf16.mxu0 0
    %2906 = vmatmul.mubr.bf16.gmra.mrb[0].mxu0 %v2871
    %v2907 = vpop.f32.mrb[0].mxu0
    %v2908 = vadd.f32 0.0, %v2907
    %v2909 = vpop.f32.mrb[0].mxu0
    %v2910 = vpop.f32.mrb[0].mxu0
    %v2911 = vpop.f32.mrb[0].mxu0
    %2912 = vdwg.mxu0
    %v2915 = vunpack.c.l.b16 %v2409
    %v2916 = vunpack.c.l.b16 %v2410
    %v2917 = vpack.c.b16 %v2916, %v2915
    %v2920 = vsel %vm570, %v2860, 0
    %2922 = vmatprep.subr.bf16.mxu0 0
    %2923 = vmatpush1.bf16.msra.mxu0 %v2917
    %2924 = vmatprep.subr.bf16.mxu0 0
    %2925 = vmatpush1.bf16.msra.mxu0 0
    %2926 = vmatprep.subr.bf16.mxu0 0
    %2927 = vmatpush1.bf16.msra.mxu0 0
    %2928 = vmatprep.subr.bf16.mxu0 0
    %2929 = vmatpush1.bf16.msra.mxu0 0
    %2930 = vmatprep.subr.bf16.mxu0 0
    %2931 = vmatpush1.bf16.msra.mxu0 0
    %2932 = vmatprep.subr.bf16.mxu0 0
    %2933 = vmatpush1.bf16.msra.mxu0 0
    %2934 = vmatprep.subr.bf16.mxu0 0
    %2935 = vmatpush1.bf16.msra.mxu0 0
    %2936 = vmatprep.subr.bf16.mxu0 0
    %2937 = vmatpush1.bf16.msra.mxu0 0
    %2938 = vmatprep.subr.bf16.mxu0 0
    %2939 = vmatpush1.bf16.msra.mxu0 0
    %2940 = vmatprep.subr.bf16.mxu0 0
    %2941 = vmatpush1.bf16.msra.mxu0 0
    %2942 = vmatprep.subr.bf16.mxu0 0
    %2943 = vmatpush1.bf16.msra.mxu0 0
    %2944 = vmatprep.subr.bf16.mxu0 0
    %2945 = vmatpush1.bf16.msra.mxu0 0
    %2946 = vmatprep.subr.bf16.mxu0 0
    %2947 = vmatpush1.bf16.msra.mxu0 0
    %2948 = vmatprep.subr.bf16.mxu0 0
    %2949 = vmatpush1.bf16.msra.mxu0 0
    %2950 = vmatprep.subr.bf16.mxu0 0
    %2951 = vmatpush1.bf16.msra.mxu0 0
    %2952 = vmatprep.subr.bf16.mxu0 0
    %2953 = vmatpush1.bf16.msra.mxu0 0
    %2954 = vmatprep.mubr.bf16.mxu0 0
    %2955 = vmatmul.mubr.bf16.gmra.mrb[0].mxu0 %v2920
    %v2956 = vpop.f32.mrb[0].mxu0
    %v2957 = vadd.f32 %v2908, %v2956
    %v2958 = vpop.f32.mrb[0].mxu0
    %v2959 = vpop.f32.mrb[0].mxu0
    %v2960 = vpop.f32.mrb[0].mxu0
    %2961 = vdwg.mxu0
    %v2962 = vmul.f32 %v2857, %v2380
    %v2963 = vpack.c.bf16 %v2962, %v2962
    %v2966 = vunpack.c.l.b16 %v2413
    %v2967 = vunpack.c.l.b16 %v2414
    %v2968 = vpack.c.b16 %v2967, %v2966
    %v2971 = vsel %vm570, %v2963, 0
    %2973 = vmatprep.subr.bf16.mxu0 0
    %2974 = vmatpush1.bf16.msra.mxu0 %v2968
    %2975 = vmatprep.subr.bf16.mxu0 0
    %2976 = vmatpush1.bf16.msra.mxu0 0
    %2977 = vmatprep.subr.bf16.mxu0 0
    %2978 = vmatpush1.bf16.msra.mxu0 0
    %2979 = vmatprep.subr.bf16.mxu0 0
    %2980 = vmatpush1.bf16.msra.mxu0 0
    %2981 = vmatprep.subr.bf16.mxu0 0
    %2982 = vmatpush1.bf16.msra.mxu0 0
    %2983 = vmatprep.subr.bf16.mxu0 0
    %2984 = vmatpush1.bf16.msra.mxu0 0
    %2985 = vmatprep.subr.bf16.mxu0 0
    %2986 = vmatpush1.bf16.msra.mxu0 0
    %2987 = vmatprep.subr.bf16.mxu0 0
    %2988 = vmatpush1.bf16.msra.mxu0 0
    %2989 = vmatprep.subr.bf16.mxu0 0
    %2990 = vmatpush1.bf16.msra.mxu0 0
    %2991 = vmatprep.subr.bf16.mxu0 0
    %2992 = vmatpush1.bf16.msra.mxu0 0
    %2993 = vmatprep.subr.bf16.mxu0 0
    %2994 = vmatpush1.bf16.msra.mxu0 0
    %2995 = vmatprep.subr.bf16.mxu0 0
    %2996 = vmatpush1.bf16.msra.mxu0 0
    %2997 = vmatprep.subr.bf16.mxu0 0
    %2998 = vmatpush1.bf16.msra.mxu0 0
    %2999 = vmatprep.subr.bf16.mxu0 0
    %3000 = vmatpush1.bf16.msra.mxu0 0
    %3001 = vmatprep.subr.bf16.mxu0 0
    %3002 = vmatpush1.bf16.msra.mxu0 0
    %3003 = vmatprep.subr.bf16.mxu0 0
    %3004 = vmatpush1.bf16.msra.mxu0 0
    %3005 = vmatprep.mubr.bf16.mxu0 0
    %3006 = vmatmul.mubr.bf16.gmra.mrb[0].mxu0 %v2971
    %v3007 = vpop.f32.mrb[0].mxu0
    %v3008 = vadd.f32 0.0, %v3007
    %v3009 = vpop.f32.mrb[0].mxu0
    %v3010 = vpop.f32.mrb[0].mxu0
    %v3011 = vpop.f32.mrb[0].mxu0
    %3012 = vdwg.mxu0
    %v3013 = vadd.f32 %v2957, %v3008
    %v3014 = vrot.slane %v2857, 1
    %v3015 = vmul.f32 %v3014, %v2386
    %v3016 = vpack.c.bf16 %v3015, %v3015
    %v3019 = vunpack.c.l.b16 %v2415
    %v3020 = vunpack.c.l.b16 %v2416
    %v3021 = vpack.c.b16 %v3020, %v3019
    %v3024 = vsel %vm570, %v3016, 0
    %3026 = vmatprep.subr.bf16.mxu0 0
    %3027 = vmatpush1.bf16.msra.mxu0 %v3021
    %3028 = vmatprep.subr.bf16.mxu0 0
    %3029 = vmatpush1.bf16.msra.mxu0 0
    %3030 = vmatprep.subr.bf16.mxu0 0
    %3031 = vmatpush1.bf16.msra.mxu0 0
    %3032 = vmatprep.subr.bf16.mxu0 0
    %3033 = vmatpush1.bf16.msra.mxu0 0
    %3034 = vmatprep.subr.bf16.mxu0 0
    %3035 = vmatpush1.bf16.msra.mxu0 0
    %3036 = vmatprep.subr.bf16.mxu0 0
    %3037 = vmatpush1.bf16.msra.mxu0 0
    %3038 = vmatprep.subr.bf16.mxu0 0
    %3039 = vmatpush1.bf16.msra.mxu0 0
    %3040 = vmatprep.subr.bf16.mxu0 0
    %3041 = vmatpush1.bf16.msra.mxu0 0
    %3042 = vmatprep.subr.bf16.mxu0 0
    %3043 = vmatpush1.bf16.msra.mxu0 0
    %3044 = vmatprep.subr.bf16.mxu0 0
    %3045 = vmatpush1.bf16.msra.mxu0 0
    %3046 = vmatprep.subr.bf16.mxu0 0
    %3047 = vmatpush1.bf16.msra.mxu0 0
    %3048 = vmatprep.subr.bf16.mxu0 0
    %3049 = vmatpush1.bf16.msra.mxu0 0
    %3050 = vmatprep.subr.bf16.mxu0 0
    %3051 = vmatpush1.bf16.msra.mxu0 0
    %3052 = vmatprep.subr.bf16.mxu0 0
    %3053 = vmatpush1.bf16.msra.mxu0 0
    %3054 = vmatprep.subr.bf16.mxu0 0
    %3055 = vmatpush1.bf16.msra.mxu0 0
    %3056 = vmatprep.subr.bf16.mxu0 0
    %3057 = vmatpush1.bf16.msra.mxu0 0
    %3058 = vmatprep.mubr.bf16.mxu0 0
    %3059 = vmatmul.mubr.bf16.gmra.mrb[0].mxu0 %v3024
    %v3060 = vpop.f32.mrb[0].mxu0
    %v3061 = vadd.f32 0.0, %v3060
    %v3062 = vpop.f32.mrb[0].mxu0
    %v3063 = vpop.f32.mrb[0].mxu0
    %v3064 = vpop.f32.mrb[0].mxu0
    %3065 = vdwg.mxu0
    %v3066 = vadd.f32 %v3013, %v3061
    %v3067 = vrot.slane %v2857, 2
    %v3068 = vmul.f32 %v3067, %v2392
    %v3069 = vpack.c.bf16 %v3068, %v3068
    %v3072 = vunpack.c.l.b16 %v2417
    %v3073 = vunpack.c.l.b16 %v2418
    %v3074 = vpack.c.b16 %v3073, %v3072
    %v3077 = vsel %vm570, %v3069, 0
    %3079 = vmatprep.subr.bf16.mxu0 0
    %3080 = vmatpush1.bf16.msra.mxu0 %v3074
    %3081 = vmatprep.subr.bf16.mxu0 0
    %3082 = vmatpush1.bf16.msra.mxu0 0
    %3083 = vmatprep.subr.bf16.mxu0 0
    %3084 = vmatpush1.bf16.msra.mxu0 0
    %3085 = vmatprep.subr.bf16.mxu0 0
    %3086 = vmatpush1.bf16.msra.mxu0 0
    %3087 = vmatprep.subr.bf16.mxu0 0
    %3088 = vmatpush1.bf16.msra.mxu0 0
    %3089 = vmatprep.subr.bf16.mxu0 0
    %3090 = vmatpush1.bf16.msra.mxu0 0
    %3091 = vmatprep.subr.bf16.mxu0 0
    %3092 = vmatpush1.bf16.msra.mxu0 0
    %3093 = vmatprep.subr.bf16.mxu0 0
    %3094 = vmatpush1.bf16.msra.mxu0 0
    %3095 = vmatprep.subr.bf16.mxu0 0
    %3096 = vmatpush1.bf16.msra.mxu0 0
    %3097 = vmatprep.subr.bf16.mxu0 0
    %3098 = vmatpush1.bf16.msra.mxu0 0
    %3099 = vmatprep.subr.bf16.mxu0 0
    %3100 = vmatpush1.bf16.msra.mxu0 0
    %3101 = vmatprep.subr.bf16.mxu0 0
    %3102 = vmatpush1.bf16.msra.mxu0 0
    %3103 = vmatprep.subr.bf16.mxu0 0
    %3104 = vmatpush1.bf16.msra.mxu0 0
    %3105 = vmatprep.subr.bf16.mxu0 0
    %3106 = vmatpush1.bf16.msra.mxu0 0
    %3107 = vmatprep.subr.bf16.mxu0 0
    %3108 = vmatpush1.bf16.msra.mxu0 0
    %3109 = vmatprep.subr.bf16.mxu0 0
    %3110 = vmatpush1.bf16.msra.mxu0 0
    %3111 = vmatprep.mubr.bf16.mxu0 0
    %3112 = vmatmul.mubr.bf16.gmra.mrb[0].mxu0 %v3077
    %v3113 = vpop.f32.mrb[0].mxu0
    %v3114 = vadd.f32 0.0, %v3113
    %v3115 = vpop.f32.mrb[0].mxu0
    %v3116 = vpop.f32.mrb[0].mxu0
    %v3117 = vpop.f32.mrb[0].mxu0
    %3118 = vdwg.mxu0
    %v3119 = vadd.f32 %v3066, %v3114
    %v3120 = vsel %vm570, %v3119, 0.0
    %v3121 = vrot.slane %v3120, 4
    %v3122 = vadd.f32 %v3120, %v3121
    %v3123 = vrot.slane %v3122, 2
    %v3124 = vadd.f32 %v3122, %v3123
    %v3125 = vrot.slane %v3124, 1
    %v3126 = vadd.f32 %v3124, %v3125
    %v3127 = vmul.f32 %v3126, %v2826
    %v3128 = vsub.f32 %v3119, %v3127
    %v3129 = vmul.f32 %v3128, %v3128
    %v3130 = vsel %vm570, %v3129, 0.0
    %v3131 = vrot.slane %v3130, 4
    %v3132 = vadd.f32 %v3130, %v3131
    %v3133 = vrot.slane %v3132, 2
    %v3134 = vadd.f32 %v3132, %v3133
    %v3135 = vrot.slane %v3134, 1
    %v3136 = vadd.f32 %v3134, %v3135
    %v3137 = vmul.f32 %v3136, %v2826
    %v3138 = vadd.f32 %v3137, 0.0001
    %v3139 = vrsqrt.pop %v3138
    %v3140 = vmul.f32 %v3128, %v3139
    %v3142 = vlaneseq
    %v3143 = vshrl.u32 %v3142, 7
    %v3144 = vsub.s32 0, %v3143
    %v3145 = vrot.slane %v2420, %v3144
    %v3147 = vmul.f32 %v3140, %v3145
    %v3149 = vlaneseq
    %v3150 = vshrl.u32 %v3149, 7
    %v3151 = vsub.s32 0, %v3150
    %v3152 = vrot.slane %v2422, %v3151
    %v3154 = vadd.f32 %v3147, %v3152
    %v3155 = vadd.f32 %v3154, %v2469
    %vm3156 = vcmp.ge.f32.partialorder %v3155, 0.0
    %v3157 = vmul.f32 %v3155, 0.01
    %v3158 = vsel %vm3156, %v3155, %v3157
    %v3160 = vcombine.high %v3158, %v3158
    %vm3162 = vcmask 125952
    %v3163 = vsel %vm3162, %v3158, 0.0
    %v3164 = vrot.slane %v3163, 4
    %v3165 = vadd.f32 %v3163, %v3164
    %v3166 = vrot.slane %v3165, 2
    %v3167 = vadd.f32 %v3165, %v3166
    %v3168 = vrot.slane %v3167, 1
    %v3169 = vadd.f32 %v3167, %v3168
    %v3170 = vsel %vm3162, %v3160, 0.0
    %v3171 = vrot.slane %v3170, 4
    %v3172 = vadd.f32 %v3170, %v3171
    %v3173 = vrot.slane %v3172, 2
    %v3174 = vadd.f32 %v3172, %v3173
    %v3175 = vrot.slane %v3174, 1
    %v3176 = vadd.f32 %v3174, %v3175
    %v3177 = vrcp.pop 4.0
    %v3178 = vmul.f32 %v3169, %v3177
    %v3179 = vmul.f32 %v3176, %v3177
    %v3180 = vpack.c.bf16 %v3178, %v3178
    %v3181 = vpack.c.bf16 %v3179, %v3179
    %v3182 = vld [vmem:[%s13] sm:$0xf]
    %v3183 = vld [vmem:[%s13 + $0x4] sm:$0xf]
    %v3184 = vld [vmem:[%s14] sm:$0x1]
    %v3186 = vlaneseq
    %v3187 = vshrl.u32 %v3186, 7
    %v3188 = vsub.s32 0, %v3187
    %v3189 = vrot.slane %v3184, %v3188
    %v3193 = vunpack.c.l.b16 %v3180
    %v3194 = vunpack.c.l.b16 %v3181
    %v3195 = vsel %vm1415, %v3194, %v3193
    %v3196 = vpack.c.b16 %v3195, %v3195
    %v3199 = vunpack.c.l.b16 %v3182
    %v3200 = vunpack.c.l.b16 %v3183
    %v3201 = vpack.c.b16 %v3200, %v3199
    %v3204 = vsel %vm570, %v3196, 0
    %3206 = vmatprep.subr.bf16.mxu0 0
    %3207 = vmatpush1.bf16.msra.mxu0 %v3201
    %3208 = vmatprep.subr.bf16.mxu0 0
    %3209 = vmatpush1.bf16.msra.mxu0 0
    %3210 = vmatprep.subr.bf16.mxu0 0
    %3211 = vmatpush1.bf16.msra.mxu0 0
    %3212 = vmatprep.subr.bf16.mxu0 0
    %3213 = vmatpush1.bf16.msra.mxu0 0
    %3214 = vmatprep.subr.bf16.mxu0 0
    %3215 = vmatpush1.bf16.msra.mxu0 0
    %3216 = vmatprep.subr.bf16.mxu0 0
    %3217 = vmatpush1.bf16.msra.mxu0 0
    %3218 = vmatprep.subr.bf16.mxu0 0
    %3219 = vmatpush1.bf16.msra.mxu0 0
    %3220 = vmatprep.subr.bf16.mxu0 0
    %3221 = vmatpush1.bf16.msra.mxu0 0
    %3222 = vmatprep.subr.bf16.mxu0 0
    %3223 = vmatpush1.bf16.msra.mxu0 0
    %3224 = vmatprep.subr.bf16.mxu0 0
    %3225 = vmatpush1.bf16.msra.mxu0 0
    %3226 = vmatprep.subr.bf16.mxu0 0
    %3227 = vmatpush1.bf16.msra.mxu0 0
    %3228 = vmatprep.subr.bf16.mxu0 0
    %3229 = vmatpush1.bf16.msra.mxu0 0
    %3230 = vmatprep.subr.bf16.mxu0 0
    %3231 = vmatpush1.bf16.msra.mxu0 0
    %3232 = vmatprep.subr.bf16.mxu0 0
    %3233 = vmatpush1.bf16.msra.mxu0 0
    %3234 = vmatprep.subr.bf16.mxu0 0
    %3235 = vmatpush1.bf16.msra.mxu0 0
    %3236 = vmatprep.subr.bf16.mxu0 0
    %3237 = vmatpush1.bf16.msra.mxu0 0
    %3238 = vmatprep.mubr.bf16.mxu0 0
    %3239 = vmatmul.mubr.bf16.gmra.mrb[0].mxu0 %v3204
    %v3240 = vpop.f32.mrb[0].mxu0
    %v3241 = vadd.f32 %v3189, %v3240
    %v3242 = vpop.f32.mrb[0].mxu0
    %v3243 = vpop.f32.mrb[0].mxu0
    %v3244 = vpop.f32.mrb[0].mxu0
    %3245 = vdwg.mxu0
    %vm3246 = vcmask 17408
    %3247 = vst.msk [vmem:[#allocation2] sm:$0x3] %vm3246, %v3241
    // Predicated region
    $region62: #{resnet_forward.1} parent=1 // pred_check
      _
    $region63: #{resnet_forward.1} parent=1 // pred_check_branch
      %3249 = sbr.rel (0) target = $region65
    $region64: #{resnet_forward.1} parent=1 // pred_region
      %s3251 = ssub.s32 32, 32
      %3252 = vsyncadd [#allocation3], %s3251
      %s3254 = sshll.u32 [#allocation2], 4
      %s3255 = int_to_ptr.vmem [resolvable:$true] %s3254
      %3257 = dma.vmem_to_hbm [thread:$0]  %s3255, 32, %s15, [#allocation3]
    $region65: #{resnet_forward.1} parent=1 // pred_fallthru
      _
    // Predicated region
    $region66: #{resnet_forward.1} parent=1 // pred_check
      _
    $region67: #{resnet_forward.1} parent=1 // pred_check_branch
      %3259 = sbr.rel (0) target = $region69
    $region68: #{resnet_forward.1} parent=1 // pred_region
      %3260 = dma.done [#allocation3], 32
    $region69: #{resnet_forward.1} parent=1 // pred_fallthru
      _
    %3261 = vsyncpa [#allocation3], 1

</llo_original>
